<compile_context>
chip_gen: v7x
topology: tpu7x:2x2x1
jax: 0.10.0
libtpu: 0.0.40
codegen_flags: <defaults>
</compile_context>

<pallas_src>
import numpy as np
import jax
import jax.numpy as jnp
from jax.experimental import pallas as pl
from jax.experimental.pallas import tpu as pltpu


# ---------------------------------------------------------------------------
# Kernel 1: fused conv trunk (conv1+ReLU+pool1+conv2+ReLU+pool2), per image
# ---------------------------------------------------------------------------
def _conv_trunk_kernel(xq_ref, a1_ref, b1t_ref, a2_ref, b2t_ref, o_ref):
    # xq_ref : (1, 4, 11, 46)  padded input rows, split by (row mod 4)
    # a1_ref : (138, 704)      conv1 banded+pool-structured weight
    # b1t_ref: (1, 352)        conv1 bias tiled over the 22 pooled columns
    # a2_ref : (1056, 640)     conv2 banded+pool-structured weight
    # b2t_ref: (1, 320)        conv2 bias tiled over the 10 pooled columns
    # o_ref  : (1, 9, 320)     pooled conv2 output, out[i, 32*j + c]

    def pool4(y, r0, nrow, half):
        # 2x2-pool: rows [r0:r0+nrow] vs [r0+nrow:r0+2nrow]  (row parity)
        #           cols [0:half]      vs [half:2*half]       (col parity)
        q00 = y[r0:r0 + nrow, :half]
        q01 = y[r0:r0 + nrow, half:2 * half]
        q10 = y[r0 + nrow:r0 + 2 * nrow, :half]
        q11 = y[r0 + nrow:r0 + 2 * nrow, half:2 * half]
        return jnp.maximum(jnp.maximum(q00, q01), jnp.maximum(q10, q11))

    # ---- conv1 + ReLU + pool1: one MXU matmul ------------------------------
    groups = []
    for pi in range(2):              # parity of the pooled-output row
        for rho in range(2):         # pre-pool row within the pooling window
            taps = []
            for dy in range(3):
                t = 2 * pi + rho + dy            # absolute input-row offset
                taps.append(xq_ref[0, t % 4, (t // 4):(t // 4) + 10, :])  # (10, 46)
            groups.append(jnp.concatenate(taps, axis=-1))                 # (10, 138)
    lhs1 = jnp.concatenate(groups, axis=0)                                # (40, 138)
    y1 = jnp.dot(lhs1, a1_ref[...], preferred_element_type=jnp.float32)   # (40, 704)

    b1t = b1t_ref[...]
    # p1[parity][m, 16*j + c] = pooled1[2*m + parity, j, c]   (never hits HBM)
    p1 = (jnp.maximum(pool4(y1, 0, 10, 352) + b1t, 0.0),      # even pooled rows
          jnp.maximum(pool4(y1, 20, 10, 352) + b1t, 0.0))     # odd pooled rows

    # ---- conv2 + ReLU + pool2: one MXU matmul ------------------------------
    rows = []
    for rho in range(2):             # pre-pool row within the pooling window
        taps = []
        for dy in range(3):
            u = rho + dy
            taps.append(p1[u % 2][(u // 2):(u // 2) + 9, :])   # (9, 352)
        rows.append(jnp.concatenate(taps, axis=-1))            # (9, 1056)
    lhs2 = jnp.concatenate(rows, axis=0)                        # (18, 1056)
    z = jnp.dot(lhs2, a2_ref[...], preferred_element_type=jnp.float32)    # (18, 640)

    out = jnp.maximum(pool4(z, 0, 9, 320) + b2t_ref[...], 0.0)            # (9, 320)
    o_ref[0] = out.astype(o_ref.dtype)


def conv_trunk(xq, a1, b1t, a2, b2t):
    B = xq.shape[0]
    return pl.pallas_call(
        _conv_trunk_kernel,
        out_shape=jax.ShapeDtypeStruct((B, 9, 320), jnp.float32),
        grid=(B,),
        in_specs=[
            pl.BlockSpec((1, 4, 11, 46), lambda b: (b, 0, 0, 0)),
            pl.BlockSpec((138, 704), lambda b: (0, 0)),
            pl.BlockSpec((1, 352), lambda b: (0, 0)),
            pl.BlockSpec((1056, 640), lambda b: (0, 0)),
            pl.BlockSpec((1, 320), lambda b: (0, 0)),
        ],
        out_specs=pl.BlockSpec((1, 9, 320), lambda b: (b, 0, 0)),
        compiler_params=pltpu.CompilerParams(
            dimension_semantics=("parallel",),
            vmem_limit_bytes=32 * 1024 * 1024),
    )(xq, a1, b1t, a2, b2t)


# ---------------------------------------------------------------------------
# Kernel 2: fused fc1 + ReLU + fc2
# ---------------------------------------------------------------------------
def _mlp_kernel(x_ref, w1_ref, b1_ref, w2_ref, b2_ref, o_ref):
    h = jnp.dot(x_ref[...], w1_ref[...], preferred_element_type=jnp.float32) + b1_ref[...]
    h = jnp.maximum(h, 0.0)
    o = jnp.dot(h, w2_ref[...], preferred_element_type=jnp.float32) + b2_ref[...]
    o_ref[...] = o.astype(o_ref.dtype)


def mlp(x, w1, b1, w2, b2):
    B, K = x.shape
    H = w1.shape[1]
    N = w2.shape[1]
    tb = min(B, 1024)
    return pl.pallas_call(
        _mlp_kernel,
        out_shape=jax.ShapeDtypeStruct((B, N), jnp.float32),
        grid=(pl.cdiv(B, tb),),
        in_specs=[pl.BlockSpec((tb, K), lambda i: (i, 0)),
                  pl.BlockSpec((K, H), lambda i: (0, 0)),
                  pl.BlockSpec((1, H), lambda i: (0, 0)),
                  pl.BlockSpec((H, N), lambda i: (0, 0)),
                  pl.BlockSpec((1, N), lambda i: (0, 0))],
        out_specs=pl.BlockSpec((tb, N), lambda i: (i, 0)),
        compiler_params=pltpu.CompilerParams(
            dimension_semantics=("parallel",),
            vmem_limit_bytes=32 * 1024 * 1024),
    )(x, w1, b1, w2, b2)


# ---------------------------------------------------------------------------
# Forward pass
# ---------------------------------------------------------------------------
def simple_cnn_forward(x, kp):
    """x: (B, 1, 40, 44) NCHW (PyTorch layout); kp: output of prepare_params."""
    B = x.shape[0]
    img = x.reshape(B, 40, 44)
    # conv1 padding=1 (+2 extra zero rows so H=44 splits cleanly by mod-4;
    # rows 42/43 are never read).  Same byte count as the input: no inflation.
    xpad = jnp.pad(img, ((0, 0), (1, 3), (1, 1)))                    # (B, 44, 46)
    xq = xpad.reshape(B, 11, 4, 46).transpose(0, 2, 1, 3)            # (B, 4, 11, 46)

    a2 = conv_trunk(xq, kp["a1"], kp["b1t"], kp["a2"], kp["b2t"])    # (B, 9, 320)
    flat = a2.reshape(B, 2880)          # row-major == NHWC flatten (free reshape)
    return mlp(flat, kp["wl1m"], kp["bl1"], kp["wl2m"], kp["bl2"])   # (B, NC)


# ---------------------------------------------------------------------------
# Parameters (PyTorch state-dict shapes) and one-time kernel repack
# ---------------------------------------------------------------------------
def init_params(key, num_classes):
    ks = jax.random.split(key, 8)
    s = 0.05
    return {
        "w1":  s * jax.random.normal(ks[0], (16, 1, 3, 3), jnp.float32),
        "b1":  s * jax.random.normal(ks[1], (16,), jnp.float32),
        "w2":  s * jax.random.normal(ks[2], (32, 16, 3, 3), jnp.float32),
        "b2":  s * jax.random.normal(ks[3], (32,), jnp.float32),
        "wl1": s * jax.random.normal(ks[4], (64, 32 * 9 * 10), jnp.float32),
        "bl1": s * jax.random.normal(ks[5], (64,), jnp.float32),
        "wl2": s * jax.random.normal(ks[6], (num_classes, 64), jnp.float32),
        "bl2": s * jax.random.normal(ks[7], (num_classes,), jnp.float32),
    }


def prepare_params(p):
    """One-time repack (host side): torch conv/fc weights -> banded, pool-aware
    matmul weights + permuted fc1 weight (absorbs NCHW->NHWC flatten)."""
    w1 = np.asarray(p["w1"]); b1 = np.asarray(p["b1"])
    w2 = np.asarray(p["w2"]); b2 = np.asarray(p["b2"])
    wl1 = np.asarray(p["wl1"]); bl1 = np.asarray(p["bl1"])
    wl2 = np.asarray(p["wl2"]); bl2 = np.asarray(p["bl2"])
    nc = wl2.shape[0]

    # conv1: LHS row = [xpad[h+0,0:46], xpad[h+1,0:46], xpad[h+2,0:46]] (138)
    # output col = sigma*352 + 16*j + c   (w = 2*j + sigma, pre-pool column)
    A1 = np.zeros((3 * 46, 2 * 22 * 16), np.float32)
    for dy in range(3):
        for sig in range(2):
            for j in range(22):
                w = 2 * j + sig
                for dx in range(3):
                    A1[dy * 46 + w + dx,
                       sig * 352 + 16 * j: sig * 352 + 16 * j + 16] = w1[:, 0, dy, dx]
    b1t = np.tile(b1, 22).reshape(1, 352)

    # conv2: LHS row = [p1[h+0,:,:], p1[h+1,:,:], p1[h+2,:,:]] flattened (j,ci) (1056)
    # output col = sigma*320 + 32*j' + co   (w = 2*j' + sigma)
    A2 = np.zeros((3 * 352, 2 * 10 * 32), np.float32)
    for dy in range(3):
        for sig in range(2):
            for jp in range(10):
                w = 2 * jp + sig
                for dx in range(3):
                    jj = w + dx
                    A2[dy * 352 + 16 * jj: dy * 352 + 16 * jj + 16,
                       sig * 320 + 32 * jp: sig * 320 + 32 * jp + 32] = w2[:, :, dy, dx].T
    b2t = np.tile(b2, 10).reshape(1, 320)

    # fc1: kernel flatten order is (h, w, c); torch flatten order is (c, h, w).
    W1m = wl1.reshape(64, 32, 9, 10).transpose(0, 2, 3, 1).reshape(64, 2880).T

    return {
        "a1":  jnp.asarray(A1),
        "b1t": jnp.asarray(b1t),
        "a2":  jnp.asarray(A2),
        "b2t": jnp.asarray(b2t),
        "wl1m": jnp.asarray(W1m),
        "bl1":  jnp.asarray(bl1.reshape(1, 64)),
        "wl2m": jnp.asarray(wl2.T),
        "bl2":  jnp.asarray(bl2.reshape(1, nc)),
    }


# ---------------------------------------------------------------------------
# Pure-JAX reference (torch semantics) for the correctness check
# ---------------------------------------------------------------------------
def reference_forward(x, p):
    dn = ("NCHW", "OIHW", "NCHW")
    y = jax.lax.conv_general_dilated(x, p["w1"], (1, 1), ((1, 1), (1, 1)),
                                     dimension_numbers=dn)
    y = jax.nn.relu(y + p["b1"][None, :, None, None])
    y = jax.lax.reduce_window(y, -jnp.inf, jax.lax.max,
                              (1, 1, 2, 2), (1, 1, 2, 2), "VALID")
    y = jax.lax.conv_general_dilated(y, p["w2"], (1, 1), ((0, 0), (0, 0)),
                                     dimension_numbers=dn)
    y = jax.nn.relu(y + p["b2"][None, :, None, None])
    y = jax.lax.reduce_window(y, -jnp.inf, jax.lax.max,
                              (1, 1, 2, 2), (1, 1, 2, 2), "VALID")
    y = y.reshape(y.shape[0], -1)
    y = jax.nn.relu(y @ p["wl1"].T + p["bl1"])
    return y @ p["wl2"].T + p["bl2"]


if __name__ == "__main__":
    num_classes = 10
    key = jax.random.PRNGKey(0)
    k_x, k_p = jax.random.split(key)
    # Input spatial size implied by Linear(32*9*10, 64): H=40, W=44.
    x = jax.random.normal(k_x, (2, 1, 40, 44), jnp.float32)
    params = init_params(k_p, num_classes)
    kparams = prepare_params(params)   # one-time weight repack (not per call)

    out = jax.jit(simple_cnn_forward)(x, kparams)
    out = jax.block_until_ready(out)
    assert out.shape == (2, num_classes), out.shape

    ref = jax.block_until_ready(jax.jit(reference_forward)(x, params))
    assert jnp.allclose(out, ref, atol=2e-3, rtol=2e-3), "mismatch vs reference"

    print("KERNEL_OK")
</pallas_src>

<mosaic_0001>
module attributes {stable_mosaic.version = 11 : i64} {
  func.func @_mlp_kernel(%arg0: i32, %arg1: memref<2x2880xf32, #tpu.memory_space<vmem>>, %arg2: memref<2880x64xf32, #tpu.memory_space<vmem>>, %arg3: memref<1x64xf32, #tpu.memory_space<vmem>>, %arg4: memref<64x10xf32, #tpu.memory_space<vmem>>, %arg5: memref<1x10xf32, #tpu.memory_space<vmem>>, %arg6: memref<2x10xf32, #tpu.memory_space<vmem>>) attributes {dimension_semantics = [#tpu.dimension_semantics<parallel>], iteration_bounds = array<i64: 1>, scalar_prefetch = 0 : i64, scratch_operands = 0 : i64, tpu.core_type = #tpu.core_type<tc>, window_params = [{transform_indices = @transform_0, window_bounds = array<i64: 2, 2880>}, {pipeline_mode = #tpu.pipeline_mode<synchronous>, transform_indices = @transform_1, window_bounds = array<i64: 2880, 64>}, {pipeline_mode = #tpu.pipeline_mode<synchronous>, transform_indices = @transform_2, window_bounds = array<i64: 1, 64>}, {pipeline_mode = #tpu.pipeline_mode<synchronous>, transform_indices = @transform_3, window_bounds = array<i64: 64, 10>}, {pipeline_mode = #tpu.pipeline_mode<synchronous>, transform_indices = @transform_4, window_bounds = array<i64: 1, 10>}, {transform_indices = @transform_5, window_bounds = array<i64: 2, 10>}]} {
    %c0 = arith.constant 0 : index
    %c0_0 = arith.constant 0 : index
    %0 = vector.load %arg1[%c0, %c0_0] : memref<2x2880xf32, #tpu.memory_space<vmem>>, vector<2x2880xf32>
    %c0_1 = arith.constant 0 : index
    %c0_2 = arith.constant 0 : index
    %1 = vector.load %arg2[%c0_1, %c0_2] : memref<2880x64xf32, #tpu.memory_space<vmem>>, vector<2880x64xf32>
    %cst = arith.constant dense<0.000000e+00> : vector<2x64xf32>
    %2 = tpu.matmul %0, %1, %cst {dimension_numbers = #tpu.dot_dimension_numbers<[1], [0], [0], [1], [0, 0, 1, 1], [], []>} : vector<2x2880xf32>, vector<2880x64xf32>, vector<2x64xf32> -> vector<2x64xf32>
    %c0_3 = arith.constant 0 : index
    %c0_4 = arith.constant 0 : index
    %3 = vector.load %arg3[%c0_3, %c0_4] : memref<1x64xf32, #tpu.memory_space<vmem>>, vector<1x64xf32>
    %4 = vector.broadcast %3 : vector<1x64xf32> to vector<2x64xf32>
    %5 = arith.addf %2, %4 : vector<2x64xf32>
    %cst_5 = arith.constant 0.000000e+00 : f32
    %6 = vector.broadcast %cst_5 : f32 to vector<2x64xf32>
    %7 = arith.maximumf %5, %6 : vector<2x64xf32>
    %c0_6 = arith.constant 0 : index
    %c0_7 = arith.constant 0 : index
    %8 = vector.load %arg4[%c0_6, %c0_7] : memref<64x10xf32, #tpu.memory_space<vmem>>, vector<64x10xf32>
    %cst_8 = arith.constant dense<0.000000e+00> : vector<2x10xf32>
    %9 = tpu.matmul %7, %8, %cst_8 {dimension_numbers = #tpu.dot_dimension_numbers<[1], [0], [0], [1], [0, 0, 1, 1], [], []>} : vector<2x64xf32>, vector<64x10xf32>, vector<2x10xf32> -> vector<2x10xf32>
    %c0_9 = arith.constant 0 : index
    %c0_10 = arith.constant 0 : index
    %10 = vector.load %arg5[%c0_9, %c0_10] : memref<1x10xf32, #tpu.memory_space<vmem>>, vector<1x10xf32>
    %11 = vector.broadcast %10 : vector<1x10xf32> to vector<2x10xf32>
    %12 = arith.addf %9, %11 : vector<2x10xf32>
    %c0_11 = arith.constant 0 : index
    %c0_12 = arith.constant 0 : index
    %13 = vector.load %arg6[%c0_11, %c0_12] : memref<2x10xf32, #tpu.memory_space<vmem>>, vector<2x10xf32>
    tpu.vector_store %arg6[%c0_11, %c0_12], %12 {strides = array<i32>} : memref<2x10xf32, #tpu.memory_space<vmem>>, vector<2x10xf32>,
    return
  }
  func.func @transform_0(%arg0: i32) -> (i32, i32) {
    %c0_i32 = arith.constant 0 : i32
    %c0_i32_0 = arith.constant 0 : i32
    return %arg0, %c0_i32 : i32, i32
  }
  func.func @transform_1(%arg0: i32) -> (i32, i32) {
    %c0_i32 = arith.constant 0 : i32
    %c0_i32_0 = arith.constant 0 : i32
    %c0_i32_1 = arith.constant 0 : i32
    return %c0_i32, %c0_i32_0 : i32, i32
  }
  func.func @transform_2(%arg0: i32) -> (i32, i32) {
    %c0_i32 = arith.constant 0 : i32
    %c0_i32_0 = arith.constant 0 : i32
    %c0_i32_1 = arith.constant 0 : i32
    return %c0_i32, %c0_i32_0 : i32, i32
  }
  func.func @transform_3(%arg0: i32) -> (i32, i32) {
    %c0_i32 = arith.constant 0 : i32
    %c0_i32_0 = arith.constant 0 : i32
    %c0_i32_1 = arith.constant 0 : i32
    return %c0_i32, %c0_i32_0 : i32, i32
  }
  func.func @transform_4(%arg0: i32) -> (i32, i32) {
    %c0_i32 = arith.constant 0 : i32
    %c0_i32_0 = arith.constant 0 : i32
    %c0_i32_1 = arith.constant 0 : i32
    return %c0_i32, %c0_i32_0 : i32, i32
  }
  func.func @transform_5(%arg0: i32) -> (i32, i32) {
    %c0_i32 = arith.constant 0 : i32
    %c0_i32_0 = arith.constant 0 : i32
    return %arg0, %c0_i32 : i32, i32
  }
}

module attributes {stable_mosaic.version = 11 : i64} {
  func.func @_conv_trunk_kernel(%arg0: i32, %arg1: memref<1x4x11x46xf32, #tpu.memory_space<vmem>>, %arg2: memref<138x704xf32, #tpu.memory_space<vmem>>, %arg3: memref<1x352xf32, #tpu.memory_space<vmem>>, %arg4: memref<1056x640xf32, #tpu.memory_space<vmem>>, %arg5: memref<1x320xf32, #tpu.memory_space<vmem>>, %arg6: memref<1x9x320xf32, #tpu.memory_space<vmem>>) attributes {dimension_semantics = [#tpu.dimension_semantics<parallel>], iteration_bounds = array<i64: 2>, scalar_prefetch = 0 : i64, scratch_operands = 0 : i64, tpu.core_type = #tpu.core_type<tc>, window_params = [{transform_indices = @transform_0, window_bounds = array<i64: 1, 4, 11, 46>}, {pipeline_mode = #tpu.pipeline_mode<synchronous>, transform_indices = @transform_1, window_bounds = array<i64: 138, 704>}, {pipeline_mode = #tpu.pipeline_mode<synchronous>, transform_indices = @transform_2, window_bounds = array<i64: 1, 352>}, {pipeline_mode = #tpu.pipeline_mode<synchronous>, transform_indices = @transform_3, window_bounds = array<i64: 1056, 640>}, {pipeline_mode = #tpu.pipeline_mode<synchronous>, transform_indices = @transform_4, window_bounds = array<i64: 1, 320>}, {transform_indices = @transform_5, window_bounds = array<i64: 1, 9, 320>}]} {
    %c0 = arith.constant 0 : index
    %c0_0 = arith.constant 0 : index
    %c0_1 = arith.constant 0 : index
    %c0_2 = arith.constant 0 : index
    %0 = vector.load %arg1[%c0, %c0_0, %c0_1, %c0_2] : memref<1x4x11x46xf32, #tpu.memory_space<vmem>>, vector<1x1x10x46xf32>
    %1 = vector.shape_cast %0 : vector<1x1x10x46xf32> to vector<10x46xf32>
    %c0_3 = arith.constant 0 : index
    %c1 = arith.constant 1 : index
    %c0_4 = arith.constant 0 : index
    %c0_5 = arith.constant 0 : index
    %2 = vector.load %arg1[%c0_3, %c1, %c0_4, %c0_5] : memref<1x4x11x46xf32, #tpu.memory_space<vmem>>, vector<1x1x10x46xf32>
    %3 = vector.shape_cast %2 : vector<1x1x10x46xf32> to vector<10x46xf32>
    %c0_6 = arith.constant 0 : index
    %c2 = arith.constant 2 : index
    %c0_7 = arith.constant 0 : index
    %c0_8 = arith.constant 0 : index
    %4 = vector.load %arg1[%c0_6, %c2, %c0_7, %c0_8] : memref<1x4x11x46xf32, #tpu.memory_space<vmem>>, vector<1x1x10x46xf32>
    %5 = vector.shape_cast %4 : vector<1x1x10x46xf32> to vector<10x46xf32>
    %6 = tpu.concatenate %1, %3, %5 in 1 : vector<10x46xf32>, vector<10x46xf32>, vector<10x46xf32> -> vector<10x138xf32>
    %c0_9 = arith.constant 0 : index
    %c1_10 = arith.constant 1 : index
    %c0_11 = arith.constant 0 : index
    %c0_12 = arith.constant 0 : index
    %7 = vector.load %arg1[%c0_9, %c1_10, %c0_11, %c0_12] : memref<1x4x11x46xf32, #tpu.memory_space<vmem>>, vector<1x1x10x46xf32>
    %8 = vector.shape_cast %7 : vector<1x1x10x46xf32> to vector<10x46xf32>
    %c0_13 = arith.constant 0 : index
    %c2_14 = arith.constant 2 : index
    %c0_15 = arith.constant 0 : index
    %c0_16 = arith.constant 0 : index
    %9 = vector.load %arg1[%c0_13, %c2_14, %c0_15, %c0_16] : memref<1x4x11x46xf32, #tpu.memory_space<vmem>>, vector<1x1x10x46xf32>
    %10 = vector.shape_cast %9 : vector<1x1x10x46xf32> to vector<10x46xf32>
    %c0_17 = arith.constant 0 : index
    %c3 = arith.constant 3 : index
    %c0_18 = arith.constant 0 : index
    %c0_19 = arith.constant 0 : index
    %11 = vector.load %arg1[%c0_17, %c3, %c0_18, %c0_19] : memref<1x4x11x46xf32, #tpu.memory_space<vmem>>, vector<1x1x10x46xf32>
    %12 = vector.shape_cast %11 : vector<1x1x10x46xf32> to vector<10x46xf32>
    %13 = tpu.concatenate %8, %10, %12 in 1 : vector<10x46xf32>, vector<10x46xf32>, vector<10x46xf32> -> vector<10x138xf32>
    %c0_20 = arith.constant 0 : index
    %c2_21 = arith.constant 2 : index
    %c0_22 = arith.constant 0 : index
    %c0_23 = arith.constant 0 : index
    %14 = vector.load %arg1[%c0_20, %c2_21, %c0_22, %c0_23] : memref<1x4x11x46xf32, #tpu.memory_space<vmem>>, vector<1x1x10x46xf32>
    %15 = vector.shape_cast %14 : vector<1x1x10x46xf32> to vector<10x46xf32>
    %c0_24 = arith.constant 0 : index
    %c3_25 = arith.constant 3 : index
    %c0_26 = arith.constant 0 : index
    %c0_27 = arith.constant 0 : index
    %16 = vector.load %arg1[%c0_24, %c3_25, %c0_26, %c0_27] : memref<1x4x11x46xf32, #tpu.memory_space<vmem>>, vector<1x1x10x46xf32>
    %17 = vector.shape_cast %16 : vector<1x1x10x46xf32> to vector<10x46xf32>
    %c0_28 = arith.constant 0 : index
    %c0_29 = arith.constant 0 : index
    %c1_30 = arith.constant 1 : index
    %c0_31 = arith.constant 0 : index
    %18 = vector.load %arg1[%c0_28, %c0_29, %c1_30, %c0_31] : memref<1x4x11x46xf32, #tpu.memory_space<vmem>>, vector<1x1x10x46xf32>
    %19 = vector.shape_cast %18 : vector<1x1x10x46xf32> to vector<10x46xf32>
    %20 = tpu.concatenate %15, %17, %19 in 1 : vector<10x46xf32>, vector<10x46xf32>, vector<10x46xf32> -> vector<10x138xf32>
    %c0_32 = arith.constant 0 : index
    %c3_33 = arith.constant 3 : index
    %c0_34 = arith.constant 0 : index
    %c0_35 = arith.constant 0 : index
    %21 = vector.load %arg1[%c0_32, %c3_33, %c0_34, %c0_35] : memref<1x4x11x46xf32, #tpu.memory_space<vmem>>, vector<1x1x10x46xf32>
    %22 = vector.shape_cast %21 : vector<1x1x10x46xf32> to vector<10x46xf32>
    %c0_36 = arith.constant 0 : index
    %c0_37 = arith.constant 0 : index
    %c1_38 = arith.constant 1 : index
    %c0_39 = arith.constant 0 : index
    %23 = vector.load %arg1[%c0_36, %c0_37, %c1_38, %c0_39] : memref<1x4x11x46xf32, #tpu.memory_space<vmem>>, vector<1x1x10x46xf32>
    %24 = vector.shape_cast %23 : vector<1x1x10x46xf32> to vector<10x46xf32>
    %c0_40 = arith.constant 0 : index
    %c1_41 = arith.constant 1 : index
    %c1_42 = arith.constant 1 : index
    %c0_43 = arith.constant 0 : index
    %25 = vector.load %arg1[%c0_40, %c1_41, %c1_42, %c0_43] : memref<1x4x11x46xf32, #tpu.memory_space<vmem>>, vector<1x1x10x46xf32>
    %26 = vector.shape_cast %25 : vector<1x1x10x46xf32> to vector<10x46xf32>
    %27 = tpu.concatenate %22, %24, %26 in 1 : vector<10x46xf32>, vector<10x46xf32>, vector<10x46xf32> -> vector<10x138xf32>
    %28 = tpu.concatenate %6, %13, %20, %27 in 0 : vector<10x138xf32>, vector<10x138xf32>, vector<10x138xf32>, vector<10x138xf32> -> vector<40x138xf32>
    %c0_44 = arith.constant 0 : index
    %c0_45 = arith.constant 0 : index
    %29 = vector.load %arg2[%c0_44, %c0_45] : memref<138x704xf32, #tpu.memory_space<vmem>>, vector<138x704xf32>
    %cst = arith.constant dense<0.000000e+00> : vector<40x704xf32>
    %30 = tpu.matmul %28, %29, %cst {dimension_numbers = #tpu.dot_dimension_numbers<[1], [0], [0], [1], [0, 0, 1, 1], [], []>} : vector<40x138xf32>, vector<138x704xf32>, vector<40x704xf32> -> vector<40x704xf32>
    %c0_46 = arith.constant 0 : index
    %c0_47 = arith.constant 0 : index
    %31 = vector.load %arg3[%c0_46, %c0_47] : memref<1x352xf32, #tpu.memory_space<vmem>>, vector<1x352xf32>
    %32 = vector.extract_strided_slice %30 {offsets = [0, 0], sizes = [10, 352], strides = [1, 1]} : vector<40x704xf32> to vector<10x352xf32>
    %33 = vector.extract_strided_slice %30 {offsets = [0, 352], sizes = [10, 352], strides = [1, 1]} : vector<40x704xf32> to vector<10x352xf32>
    %34 = vector.extract_strided_slice %30 {offsets = [10, 0], sizes = [10, 352], strides = [1, 1]} : vector<40x704xf32> to vector<10x352xf32>
    %35 = vector.extract_strided_slice %30 {offsets = [10, 352], sizes = [10, 352], strides = [1, 1]} : vector<40x704xf32> to vector<10x352xf32>
    %36 = arith.maximumf %32, %33 : vector<10x352xf32>
    %37 = arith.maximumf %34, %35 : vector<10x352xf32>
    %38 = arith.maximumf %36, %37 : vector<10x352xf32>
    %39 = vector.broadcast %31 : vector<1x352xf32> to vector<10x352xf32>
    %40 = arith.addf %38, %39 : vector<10x352xf32>
    %cst_48 = arith.constant 0.000000e+00 : f32
    %41 = vector.broadcast %cst_48 : f32 to vector<10x352xf32>
    %42 = arith.maximumf %40, %41 : vector<10x352xf32>
    %43 = vector.extract_strided_slice %30 {offsets = [20, 0], sizes = [10, 352], strides = [1, 1]} : vector<40x704xf32> to vector<10x352xf32>
    %44 = vector.extract_strided_slice %30 {offsets = [20, 352], sizes = [10, 352], strides = [1, 1]} : vector<40x704xf32> to vector<10x352xf32>
    %45 = vector.extract_strided_slice %30 {offsets = [30, 0], sizes = [10, 352], strides = [1, 1]} : vector<40x704xf32> to vector<10x352xf32>
    %46 = vector.extract_strided_slice %30 {offsets = [30, 352], sizes = [10, 352], strides = [1, 1]} : vector<40x704xf32> to vector<10x352xf32>
    %47 = arith.maximumf %43, %44 : vector<10x352xf32>
    %48 = arith.maximumf %45, %46 : vector<10x352xf32>
    %49 = arith.maximumf %47, %48 : vector<10x352xf32>
    %50 = vector.broadcast %31 : vector<1x352xf32> to vector<10x352xf32>
    %51 = arith.addf %49, %50 : vector<10x352xf32>
    %cst_49 = arith.constant 0.000000e+00 : f32
    %52 = vector.broadcast %cst_49 : f32 to vector<10x352xf32>
    %53 = arith.maximumf %51, %52 : vector<10x352xf32>
    %54 = vector.extract_strided_slice %42 {offsets = [0, 0], sizes = [9, 352], strides = [1, 1]} : vector<10x352xf32> to vector<9x352xf32>
    %55 = vector.extract_strided_slice %53 {offsets = [0, 0], sizes = [9, 352], strides = [1, 1]} : vector<10x352xf32> to vector<9x352xf32>
    %56 = vector.extract_strided_slice %42 {offsets = [1, 0], sizes = [9, 352], strides = [1, 1]} : vector<10x352xf32> to vector<9x352xf32>
    %57 = tpu.concatenate %54, %55, %56 in 1 : vector<9x352xf32>, vector<9x352xf32>, vector<9x352xf32> -> vector<9x1056xf32>
    %58 = vector.extract_strided_slice %53 {offsets = [0, 0], sizes = [9, 352], strides = [1, 1]} : vector<10x352xf32> to vector<9x352xf32>
    %59 = vector.extract_strided_slice %42 {offsets = [1, 0], sizes = [9, 352], strides = [1, 1]} : vector<10x352xf32> to vector<9x352xf32>
    %60 = vector.extract_strided_slice %53 {offsets = [1, 0], sizes = [9, 352], strides = [1, 1]} : vector<10x352xf32> to vector<9x352xf32>
    %61 = tpu.concatenate %58, %59, %60 in 1 : vector<9x352xf32>, vector<9x352xf32>, vector<9x352xf32> -> vector<9x1056xf32>
    %62 = tpu.concatenate %57, %61 in 0 : vector<9x1056xf32>, vector<9x1056xf32> -> vector<18x1056xf32>
    %c0_50 = arith.constant 0 : index
    %c0_51 = arith.constant 0 : index
    %63 = vector.load %arg4[%c0_50, %c0_51] : memref<1056x640xf32, #tpu.memory_space<vmem>>, vector<1056x640xf32>
    %cst_52 = arith.constant dense<0.000000e+00> : vector<18x640xf32>
    %64 = tpu.matmul %62, %63, %cst_52 {dimension_numbers = #tpu.dot_dimension_numbers<[1], [0], [0], [1], [0, 0, 1, 1], [], []>} : vector<18x1056xf32>, vector<1056x640xf32>, vector<18x640xf32> -> vector<18x640xf32>
    %65 = vector.extract_strided_slice %64 {offsets = [0, 0], sizes = [9, 320], strides = [1, 1]} : vector<18x640xf32> to vector<9x320xf32>
    %66 = vector.extract_strided_slice %64 {offsets = [0, 320], sizes = [9, 320], strides = [1, 1]} : vector<18x640xf32> to vector<9x320xf32>
    %67 = vector.extract_strided_slice %64 {offsets = [9, 0], sizes = [9, 320], strides = [1, 1]} : vector<18x640xf32> to vector<9x320xf32>
    %68 = vector.extract_strided_slice %64 {offsets = [9, 320], sizes = [9, 320], strides = [1, 1]} : vector<18x640xf32> to vector<9x320xf32>
    %69 = arith.maximumf %65, %66 : vector<9x320xf32>
    %70 = arith.maximumf %67, %68 : vector<9x320xf32>
    %71 = arith.maximumf %69, %70 : vector<9x320xf32>
    %c0_53 = arith.constant 0 : index
    %c0_54 = arith.constant 0 : index
    %72 = vector.load %arg5[%c0_53, %c0_54] : memref<1x320xf32, #tpu.memory_space<vmem>>, vector<1x320xf32>
    %73 = vector.broadcast %72 : vector<1x320xf32> to vector<9x320xf32>
    %74 = arith.addf %71, %73 : vector<9x320xf32>
    %cst_55 = arith.constant 0.000000e+00 : f32
    %75 = vector.broadcast %cst_55 : f32 to vector<9x320xf32>
    %76 = arith.maximumf %74, %75 : vector<9x320xf32>
    %c0_56 = arith.constant 0 : index
    %c0_57 = arith.constant 0 : index
    %c0_58 = arith.constant 0 : index
    %77 = vector.load %arg6[%c0_56, %c0_57, %c0_58] : memref<1x9x320xf32, #tpu.memory_space<vmem>>, vector<1x9x320xf32>
    %78 = vector.shape_cast %77 : vector<1x9x320xf32> to vector<9x320xf32>
    %79 = vector.shape_cast %76 : vector<9x320xf32> to vector<1x9x320xf32>
    tpu.vector_store %arg6[%c0_56, %c0_57, %c0_58], %79 {strides = array<i32>} : memref<1x9x320xf32, #tpu.memory_space<vmem>>, vector<1x9x320xf32>,
    return
  }
  func.func @transform_0(%arg0: i32) -> (i32, i32, i32, i32) {
    %c0_i32 = arith.constant 0 : i32
    %c0_i32_0 = arith.constant 0 : i32
    %c0_i32_1 = arith.constant 0 : i32
    %c0_i32_2 = arith.constant 0 : i32
    return %arg0, %c0_i32, %c0_i32_0, %c0_i32_1 : i32, i32, i32, i32
  }
  func.func @transform_1(%arg0: i32) -> (i32, i32) {
    %c0_i32 = arith.constant 0 : i32
    %c0_i32_0 = arith.constant 0 : i32
    %c0_i32_1 = arith.constant 0 : i32
    return %c0_i32, %c0_i32_0 : i32, i32
  }
  func.func @transform_2(%arg0: i32) -> (i32, i32) {
    %c0_i32 = arith.constant 0 : i32
    %c0_i32_0 = arith.constant 0 : i32
    %c0_i32_1 = arith.constant 0 : i32
    return %c0_i32, %c0_i32_0 : i32, i32
  }
  func.func @transform_3(%arg0: i32) -> (i32, i32) {
    %c0_i32 = arith.constant 0 : i32
    %c0_i32_0 = arith.constant 0 : i32
    %c0_i32_1 = arith.constant 0 : i32
    return %c0_i32, %c0_i32_0 : i32, i32
  }
  func.func @transform_4(%arg0: i32) -> (i32, i32) {
    %c0_i32 = arith.constant 0 : i32
    %c0_i32_0 = arith.constant 0 : i32
    %c0_i32_1 = arith.constant 0 : i32
    return %c0_i32, %c0_i32_0 : i32, i32
  }
  func.func @transform_5(%arg0: i32) -> (i32, i32, i32) {
    %c0_i32 = arith.constant 0 : i32
    %c0_i32_0 = arith.constant 0 : i32
    %c0_i32_1 = arith.constant 0 : i32
    return %arg0, %c0_i32, %c0_i32_0 : i32, i32, i32
  }
}

</mosaic_0001>

<llo_original>
// kernel: simple_cnn_forward.3
$region0: #{simple_cnn_forward.3}
  #allocation0 [shape = 'u32[]', space=smem, size = 0x4, offset = 0x4, fixed_abs, tag = 'smem constant byte address 0x4 - core index']
  #allocation1 [shape = 'u32[144,128]{1,0:T(1,128)}', space=vmem, size = 0x12000, scoped, tag = 'internal scratch']
  %s0 = inlined_call_operand.vmem [shape: f32[2,2880], index: 0, kind: input, shape index: {}]
  %s1 = inlined_call_operand.vmem [shape: f32[2880,64], index: 1, kind: input, shape index: {}]
  %s2 = inlined_call_operand.vmem [shape: f32[1,64], index: 2, kind: input, shape index: {}]
  %s3 = inlined_call_operand.vmem [shape: f32[64,10], index: 3, kind: input, shape index: {}]
  %s4 = inlined_call_operand.vmem [shape: f32[1,10], index: 4, kind: input, shape index: {}]
  %s5 = inlined_call_operand.hbm [shape: f32[2,10], index: 5, kind: output, shape index: {}]
  %s6 = sld [smem:[#allocation0]]
  $region30: #{simple_cnn_forward.3} parent=0
    _
  %s8 = ssub.s32 1, %s6
  %s9 = scalar_select 0, %s8, %s6
  $region1: #{simple_cnn_forward.3} parent=0
    #allocation2 [shape = 'u8[1024]{0}', space=vmem, size = 0x400, scoped, tag = 'output window, operand 0, single buffered']
    #allocation3 [shape = 's32[1]{0}', space=sflag, size = 0x4, scoped, tag = 'scoped memory for simple_cnn_forward.3']
    %10 = vsyncpa [#allocation3], 0
    // Predicated region
    $region2: #{simple_cnn_forward.3} parent=1 // pred_check
      _
    $region3: #{simple_cnn_forward.3} parent=1 // pred_check_branch
      %12 = sbr.rel (0) target = $region5
    $region4: #{simple_cnn_forward.3} parent=1 // pred_region
      _
    $region5: #{simple_cnn_forward.3} parent=1 // pred_fallthru
      _
    // Predicated region
    $region6: #{simple_cnn_forward.3} parent=1 // pred_check
      _
    $region7: #{simple_cnn_forward.3} parent=1 // pred_check_branch
      %14 = sbr.rel (0) target = $region9
    $region8: #{simple_cnn_forward.3} parent=1 // pred_region
      _
    $region9: #{simple_cnn_forward.3} parent=1 // pred_fallthru
      _
    // Predicated region
    $region10: #{simple_cnn_forward.3} parent=1 // pred_check
      _
    $region11: #{simple_cnn_forward.3} parent=1 // pred_check_branch
      %16 = sbr.rel (0) target = $region13
    $region12: #{simple_cnn_forward.3} parent=1 // pred_region
      _
    $region13: #{simple_cnn_forward.3} parent=1 // pred_fallthru
      _
    // Predicated region
    $region14: #{simple_cnn_forward.3} parent=1 // pred_check
      _
    $region15: #{simple_cnn_forward.3} parent=1 // pred_check_branch
      %18 = sbr.rel (0) target = $region17
    $region16: #{simple_cnn_forward.3} parent=1 // pred_region
      _
    $region17: #{simple_cnn_forward.3} parent=1 // pred_fallthru
      _
    // Predicated region
    $region18: #{simple_cnn_forward.3} parent=1 // pred_check
      _
    $region19: #{simple_cnn_forward.3} parent=1 // pred_check_branch
      %20 = sbr.rel (0) target = $region21
    $region20: #{simple_cnn_forward.3} parent=1 // pred_region
      _
    $region21: #{simple_cnn_forward.3} parent=1 // pred_fallthru
      _
    %v21 = vld [vmem:[%s0] sm:$0xff]
    %v22 = vld [vmem:[%s0 + $0x8] sm:$0xff]
    %v23 = vld [vmem:[%s0 + $0x10] sm:$0xff]
    %v24 = vld [vmem:[%s0 + $0x18] sm:$0xff]
    %v25 = vld [vmem:[%s0 + $0x20] sm:$0xff]
    %v26 = vld [vmem:[%s0 + $0x28] sm:$0x3f]
    %v27 = vld [vmem:[%s1] sm:$0xff]
    %v28 = vld [vmem:[%s1 + $0x8] sm:$0xff]
    %v29 = vld [vmem:[%s1 + $0x10] sm:$0xff]
    %v30 = vld [vmem:[%s1 + $0x18] sm:$0xff]
    %v31 = vld [vmem:[%s1 + $0x20] sm:$0xff]
    %v32 = vld [vmem:[%s1 + $0x28] sm:$0xff]
    %v33 = vld [vmem:[%s1 + $0x30] sm:$0xff]
    %v34 = vld [vmem:[%s1 + $0x38] sm:$0xff]
    %v35 = vld [vmem:[%s1 + $0x40] sm:$0xff]
    %v36 = vld [vmem:[%s1 + $0x48] sm:$0xff]
    %v37 = vld [vmem:[%s1 + $0x50] sm:$0xff]
    %v38 = vld [vmem:[%s1 + $0x58] sm:$0xff]
    %v39 = vld [vmem:[%s1 + $0x60] sm:$0xff]
    %v40 = vld [vmem:[%s1 + $0x68] sm:$0xff]
    %v41 = vld [vmem:[%s1 + $0x70] sm:$0xff]
    %v42 = vld [vmem:[%s1 + $0x78] sm:$0xff]
    %v43 = vld [vmem:[%s1 + $0x80] sm:$0xff]
    %v44 = vld [vmem:[%s1 + $0x88] sm:$0xff]
    %v45 = vld [vmem:[%s1 + $0x90] sm:$0xff]
    %v46 = vld [vmem:[%s1 + $0x98] sm:$0xff]
    %v47 = vld [vmem:[%s1 + $0xa0] sm:$0xff]
    %v48 = vld [vmem:[%s1 + $0xa8] sm:$0xff]
    %v49 = vld [vmem:[%s1 + $0xb0] sm:$0xff]
    %v50 = vld [vmem:[%s1 + $0xb8] sm:$0xff]
    %v51 = vld [vmem:[%s1 + $0xc0] sm:$0xff]
    %v52 = vld [vmem:[%s1 + $0xc8] sm:$0xff]
    %v53 = vld [vmem:[%s1 + $0xd0] sm:$0xff]
    %v54 = vld [vmem:[%s1 + $0xd8] sm:$0xff]
    %v55 = vld [vmem:[%s1 + $0xe0] sm:$0xff]
    %v56 = vld [vmem:[%s1 + $0xe8] sm:$0xff]
    %v57 = vld [vmem:[%s1 + $0xf0] sm:$0xff]
    %v58 = vld [vmem:[%s1 + $0xf8] sm:$0xff]
    %v59 = vld [vmem:[%s1 + $0x100] sm:$0xff]
    %v60 = vld [vmem:[%s1 + $0x108] sm:$0xff]
    %v61 = vld [vmem:[%s1 + $0x110] sm:$0xff]
    %v62 = vld [vmem:[%s1 + $0x118] sm:$0xff]
    %v63 = vld [vmem:[%s1 + $0x120] sm:$0xff]
    %v64 = vld [vmem:[%s1 + $0x128] sm:$0xff]
    %v65 = vld [vmem:[%s1 + $0x130] sm:$0xff]
    %v66 = vld [vmem:[%s1 + $0x138] sm:$0xff]
    %v67 = vld [vmem:[%s1 + $0x140] sm:$0xff]
    %v68 = vld [vmem:[%s1 + $0x148] sm:$0xff]
    %v69 = vld [vmem:[%s1 + $0x150] sm:$0xff]
    %v70 = vld [vmem:[%s1 + $0x158] sm:$0xff]
    %v71 = vld [vmem:[%s1 + $0x160] sm:$0xff]
    %v72 = vld [vmem:[%s1 + $0x168] sm:$0xff]
    %v73 = vld [vmem:[%s1 + $0x170] sm:$0xff]
    %v74 = vld [vmem:[%s1 + $0x178] sm:$0xff]
    %v75 = vld [vmem:[%s1 + $0x180] sm:$0xff]
    %v76 = vld [vmem:[%s1 + $0x188] sm:$0xff]
    %v77 = vld [vmem:[%s1 + $0x190] sm:$0xff]
    %v78 = vld [vmem:[%s1 + $0x198] sm:$0xff]
    %v79 = vld [vmem:[%s1 + $0x1a0] sm:$0xff]
    %v80 = vld [vmem:[%s1 + $0x1a8] sm:$0xff]
    %v81 = vld [vmem:[%s1 + $0x1b0] sm:$0xff]
    %v82 = vld [vmem:[%s1 + $0x1b8] sm:$0xff]
    %v83 = vld [vmem:[%s1 + $0x1c0] sm:$0xff]
    %v84 = vld [vmem:[%s1 + $0x1c8] sm:$0xff]
    %v85 = vld [vmem:[%s1 + $0x1d0] sm:$0xff]
    %v86 = vld [vmem:[%s1 + $0x1d8] sm:$0xff]
    %v87 = vld [vmem:[%s1 + $0x1e0] sm:$0xff]
    %v88 = vld [vmem:[%s1 + $0x1e8] sm:$0xff]
    %v89 = vld [vmem:[%s1 + $0x1f0] sm:$0xff]
    %v90 = vld [vmem:[%s1 + $0x1f8] sm:$0xff]
    %v91 = vld [vmem:[%s1 + $0x200] sm:$0xff]
    %v92 = vld [vmem:[%s1 + $0x208] sm:$0xff]
    %v93 = vld [vmem:[%s1 + $0x210] sm:$0xff]
    %v94 = vld [vmem:[%s1 + $0x218] sm:$0xff]
    %v95 = vld [vmem:[%s1 + $0x220] sm:$0xff]
    %v96 = vld [vmem:[%s1 + $0x228] sm:$0xff]
    %v97 = vld [vmem:[%s1 + $0x230] sm:$0xff]
    %v98 = vld [vmem:[%s1 + $0x238] sm:$0xff]
    %v99 = vld [vmem:[%s1 + $0x240] sm:$0xff]
    %v100 = vld [vmem:[%s1 + $0x248] sm:$0xff]
    %v101 = vld [vmem:[%s1 + $0x250] sm:$0xff]
    %v102 = vld [vmem:[%s1 + $0x258] sm:$0xff]
    %v103 = vld [vmem:[%s1 + $0x260] sm:$0xff]
    %v104 = vld [vmem:[%s1 + $0x268] sm:$0xff]
    %v105 = vld [vmem:[%s1 + $0x270] sm:$0xff]
    %v106 = vld [vmem:[%s1 + $0x278] sm:$0xff]
    %v107 = vld [vmem:[%s1 + $0x280] sm:$0xff]
    %v108 = vld [vmem:[%s1 + $0x288] sm:$0xff]
    %v109 = vld [vmem:[%s1 + $0x290] sm:$0xff]
    %v110 = vld [vmem:[%s1 + $0x298] sm:$0xff]
    %v111 = vld [vmem:[%s1 + $0x2a0] sm:$0xff]
    %v112 = vld [vmem:[%s1 + $0x2a8] sm:$0xff]
    %v113 = vld [vmem:[%s1 + $0x2b0] sm:$0xff]
    %v114 = vld [vmem:[%s1 + $0x2b8] sm:$0xff]
    %v115 = vld [vmem:[%s1 + $0x2c0] sm:$0xff]
    %v116 = vld [vmem:[%s1 + $0x2c8] sm:$0xff]
    %v117 = vld [vmem:[%s1 + $0x2d0] sm:$0xff]
    %v118 = vld [vmem:[%s1 + $0x2d8] sm:$0xff]
    %v119 = vld [vmem:[%s1 + $0x2e0] sm:$0xff]
    %v120 = vld [vmem:[%s1 + $0x2e8] sm:$0xff]
    %v121 = vld [vmem:[%s1 + $0x2f0] sm:$0xff]
    %v122 = vld [vmem:[%s1 + $0x2f8] sm:$0xff]
    %v123 = vld [vmem:[%s1 + $0x300] sm:$0xff]
    %v124 = vld [vmem:[%s1 + $0x308] sm:$0xff]
    %v125 = vld [vmem:[%s1 + $0x310] sm:$0xff]
    %v126 = vld [vmem:[%s1 + $0x318] sm:$0xff]
    %v127 = vld [vmem:[%s1 + $0x320] sm:$0xff]
    %v128 = vld [vmem:[%s1 + $0x328] sm:$0xff]
    %v129 = vld [vmem:[%s1 + $0x330] sm:$0xff]
    %v130 = vld [vmem:[%s1 + $0x338] sm:$0xff]
    %v131 = vld [vmem:[%s1 + $0x340] sm:$0xff]
    %v132 = vld [vmem:[%s1 + $0x348] sm:$0xff]
    %v133 = vld [vmem:[%s1 + $0x350] sm:$0xff]
    %v134 = vld [vmem:[%s1 + $0x358] sm:$0xff]
    %v135 = vld [vmem:[%s1 + $0x360] sm:$0xff]
    %v136 = vld [vmem:[%s1 + $0x368] sm:$0xff]
    %v137 = vld [vmem:[%s1 + $0x370] sm:$0xff]
    %v138 = vld [vmem:[%s1 + $0x378] sm:$0xff]
    %v139 = vld [vmem:[%s1 + $0x380] sm:$0xff]
    %v140 = vld [vmem:[%s1 + $0x388] sm:$0xff]
    %v141 = vld [vmem:[%s1 + $0x390] sm:$0xff]
    %v142 = vld [vmem:[%s1 + $0x398] sm:$0xff]
    %v143 = vld [vmem:[%s1 + $0x3a0] sm:$0xff]
    %v144 = vld [vmem:[%s1 + $0x3a8] sm:$0xff]
    %v145 = vld [vmem:[%s1 + $0x3b0] sm:$0xff]
    %v146 = vld [vmem:[%s1 + $0x3b8] sm:$0xff]
    %v147 = vld [vmem:[%s1 + $0x3c0] sm:$0xff]
    %v148 = vld [vmem:[%s1 + $0x3c8] sm:$0xff]
    %v149 = vld [vmem:[%s1 + $0x3d0] sm:$0xff]
    %v150 = vld [vmem:[%s1 + $0x3d8] sm:$0xff]
    %v151 = vld [vmem:[%s1 + $0x3e0] sm:$0xff]
    %v152 = vld [vmem:[%s1 + $0x3e8] sm:$0xff]
    %v153 = vld [vmem:[%s1 + $0x3f0] sm:$0xff]
    %v154 = vld [vmem:[%s1 + $0x3f8] sm:$0xff]
    %v155 = vld [vmem:[%s1 + $0x400] sm:$0xff]
    %v156 = vld [vmem:[%s1 + $0x408] sm:$0xff]
    %v157 = vld [vmem:[%s1 + $0x410] sm:$0xff]
    %v158 = vld [vmem:[%s1 + $0x418] sm:$0xff]
    %v159 = vld [vmem:[%s1 + $0x420] sm:$0xff]
    %v160 = vld [vmem:[%s1 + $0x428] sm:$0xff]
    %v161 = vld [vmem:[%s1 + $0x430] sm:$0xff]
    %v162 = vld [vmem:[%s1 + $0x438] sm:$0xff]
    %v163 = vld [vmem:[%s1 + $0x440] sm:$0xff]
    %v164 = vld [vmem:[%s1 + $0x448] sm:$0xff]
    %v165 = vld [vmem:[%s1 + $0x450] sm:$0xff]
    %v166 = vld [vmem:[%s1 + $0x458] sm:$0xff]
    %v167 = vld [vmem:[%s1 + $0x460] sm:$0xff]
    %v168 = vld [vmem:[%s1 + $0x468] sm:$0xff]
    %v169 = vld [vmem:[%s1 + $0x470] sm:$0xff]
    %v170 = vld [vmem:[%s1 + $0x478] sm:$0xff]
    %v171 = vld [vmem:[%s1 + $0x480] sm:$0xff]
    %v172 = vld [vmem:[%s1 + $0x488] sm:$0xff]
    %v173 = vld [vmem:[%s1 + $0x490] sm:$0xff]
    %v174 = vld [vmem:[%s1 + $0x498] sm:$0xff]
    %v175 = vld [vmem:[%s1 + $0x4a0] sm:$0xff]
    %v176 = vld [vmem:[%s1 + $0x4a8] sm:$0xff]
    %v177 = vld [vmem:[%s1 + $0x4b0] sm:$0xff]
    %v178 = vld [vmem:[%s1 + $0x4b8] sm:$0xff]
    %v179 = vld [vmem:[%s1 + $0x4c0] sm:$0xff]
    %v180 = vld [vmem:[%s1 + $0x4c8] sm:$0xff]
    %v181 = vld [vmem:[%s1 + $0x4d0] sm:$0xff]
    %v182 = vld [vmem:[%s1 + $0x4d8] sm:$0xff]
    %v183 = vld [vmem:[%s1 + $0x4e0] sm:$0xff]
    %v184 = vld [vmem:[%s1 + $0x4e8] sm:$0xff]
    %v185 = vld [vmem:[%s1 + $0x4f0] sm:$0xff]
    %v186 = vld [vmem:[%s1 + $0x4f8] sm:$0xff]
    %v187 = vld [vmem:[%s1 + $0x500] sm:$0xff]
    %v188 = vld [vmem:[%s1 + $0x508] sm:$0xff]
    %v189 = vld [vmem:[%s1 + $0x510] sm:$0xff]
    %v190 = vld [vmem:[%s1 + $0x518] sm:$0xff]
    %v191 = vld [vmem:[%s1 + $0x520] sm:$0xff]
    %v192 = vld [vmem:[%s1 + $0x528] sm:$0xff]
    %v193 = vld [vmem:[%s1 + $0x530] sm:$0xff]
    %v194 = vld [vmem:[%s1 + $0x538] sm:$0xff]
    %v195 = vld [vmem:[%s1 + $0x540] sm:$0xff]
    %v196 = vld [vmem:[%s1 + $0x548] sm:$0xff]
    %v197 = vld [vmem:[%s1 + $0x550] sm:$0xff]
    %v198 = vld [vmem:[%s1 + $0x558] sm:$0xff]
    %v199 = vld [vmem:[%s1 + $0x560] sm:$0xff]
    %v200 = vld [vmem:[%s1 + $0x568] sm:$0xff]
    %v201 = vld [vmem:[%s1 + $0x570] sm:$0xff]
    %v202 = vld [vmem:[%s1 + $0x578] sm:$0xff]
    %v203 = vld [vmem:[%s1 + $0x580] sm:$0xff]
    %v204 = vld [vmem:[%s1 + $0x588] sm:$0xff]
    %v205 = vld [vmem:[%s1 + $0x590] sm:$0xff]
    %v206 = vld [vmem:[%s1 + $0x598] sm:$0xff]
    %v207 = vld [vmem:[%s1 + $0x5a0] sm:$0xff]
    %v208 = vld [vmem:[%s1 + $0x5a8] sm:$0xff]
    %v209 = vld [vmem:[%s1 + $0x5b0] sm:$0xff]
    %v210 = vld [vmem:[%s1 + $0x5b8] sm:$0xff]
    %v211 = vld [vmem:[%s1 + $0x5c0] sm:$0xff]
    %v212 = vld [vmem:[%s1 + $0x5c8] sm:$0xff]
    %v213 = vld [vmem:[%s1 + $0x5d0] sm:$0xff]
    %v214 = vld [vmem:[%s1 + $0x5d8] sm:$0xff]
    %v215 = vld [vmem:[%s1 + $0x5e0] sm:$0xff]
    %v216 = vld [vmem:[%s1 + $0x5e8] sm:$0xff]
    %v217 = vld [vmem:[%s1 + $0x5f0] sm:$0xff]
    %v218 = vld [vmem:[%s1 + $0x5f8] sm:$0xff]
    %v219 = vld [vmem:[%s1 + $0x600] sm:$0xff]
    %v220 = vld [vmem:[%s1 + $0x608] sm:$0xff]
    %v221 = vld [vmem:[%s1 + $0x610] sm:$0xff]
    %v222 = vld [vmem:[%s1 + $0x618] sm:$0xff]
    %v223 = vld [vmem:[%s1 + $0x620] sm:$0xff]
    %v224 = vld [vmem:[%s1 + $0x628] sm:$0xff]
    %v225 = vld [vmem:[%s1 + $0x630] sm:$0xff]
    %v226 = vld [vmem:[%s1 + $0x638] sm:$0xff]
    %v227 = vld [vmem:[%s1 + $0x640] sm:$0xff]
    %v228 = vld [vmem:[%s1 + $0x648] sm:$0xff]
    %v229 = vld [vmem:[%s1 + $0x650] sm:$0xff]
    %v230 = vld [vmem:[%s1 + $0x658] sm:$0xff]
    %v231 = vld [vmem:[%s1 + $0x660] sm:$0xff]
    %v232 = vld [vmem:[%s1 + $0x668] sm:$0xff]
    %v233 = vld [vmem:[%s1 + $0x670] sm:$0xff]
    %v234 = vld [vmem:[%s1 + $0x678] sm:$0xff]
    %v235 = vld [vmem:[%s1 + $0x680] sm:$0xff]
    %v236 = vld [vmem:[%s1 + $0x688] sm:$0xff]
    %v237 = vld [vmem:[%s1 + $0x690] sm:$0xff]
    %v238 = vld [vmem:[%s1 + $0x698] sm:$0xff]
    %v239 = vld [vmem:[%s1 + $0x6a0] sm:$0xff]
    %v240 = vld [vmem:[%s1 + $0x6a8] sm:$0xff]
    %v241 = vld [vmem:[%s1 + $0x6b0] sm:$0xff]
    %v242 = vld [vmem:[%s1 + $0x6b8] sm:$0xff]
    %v243 = vld [vmem:[%s1 + $0x6c0] sm:$0xff]
    %v244 = vld [vmem:[%s1 + $0x6c8] sm:$0xff]
    %v245 = vld [vmem:[%s1 + $0x6d0] sm:$0xff]
    %v246 = vld [vmem:[%s1 + $0x6d8] sm:$0xff]
    %v247 = vld [vmem:[%s1 + $0x6e0] sm:$0xff]
    %v248 = vld [vmem:[%s1 + $0x6e8] sm:$0xff]
    %v249 = vld [vmem:[%s1 + $0x6f0] sm:$0xff]
    %v250 = vld [vmem:[%s1 + $0x6f8] sm:$0xff]
    %v251 = vld [vmem:[%s1 + $0x700] sm:$0xff]
    %v252 = vld [vmem:[%s1 + $0x708] sm:$0xff]
    %v253 = vld [vmem:[%s1 + $0x710] sm:$0xff]
    %v254 = vld [vmem:[%s1 + $0x718] sm:$0xff]
    %v255 = vld [vmem:[%s1 + $0x720] sm:$0xff]
    %v256 = vld [vmem:[%s1 + $0x728] sm:$0xff]
    %v257 = vld [vmem:[%s1 + $0x730] sm:$0xff]
    %v258 = vld [vmem:[%s1 + $0x738] sm:$0xff]
    %v259 = vld [vmem:[%s1 + $0x740] sm:$0xff]
    %v260 = vld [vmem:[%s1 + $0x748] sm:$0xff]
    %v261 = vld [vmem:[%s1 + $0x750] sm:$0xff]
    %v262 = vld [vmem:[%s1 + $0x758] sm:$0xff]
    %v263 = vld [vmem:[%s1 + $0x760] sm:$0xff]
    %v264 = vld [vmem:[%s1 + $0x768] sm:$0xff]
    %v265 = vld [vmem:[%s1 + $0x770] sm:$0xff]
    %v266 = vld [vmem:[%s1 + $0x778] sm:$0xff]
    %v267 = vld [vmem:[%s1 + $0x780] sm:$0xff]
    %v268 = vld [vmem:[%s1 + $0x788] sm:$0xff]
    %v269 = vld [vmem:[%s1 + $0x790] sm:$0xff]
    %v270 = vld [vmem:[%s1 + $0x798] sm:$0xff]
    %v271 = vld [vmem:[%s1 + $0x7a0] sm:$0xff]
    %v272 = vld [vmem:[%s1 + $0x7a8] sm:$0xff]
    %v273 = vld [vmem:[%s1 + $0x7b0] sm:$0xff]
    %v274 = vld [vmem:[%s1 + $0x7b8] sm:$0xff]
    %v275 = vld [vmem:[%s1 + $0x7c0] sm:$0xff]
    %v276 = vld [vmem:[%s1 + $0x7c8] sm:$0xff]
    %v277 = vld [vmem:[%s1 + $0x7d0] sm:$0xff]
    %v278 = vld [vmem:[%s1 + $0x7d8] sm:$0xff]
    %v279 = vld [vmem:[%s1 + $0x7e0] sm:$0xff]
    %v280 = vld [vmem:[%s1 + $0x7e8] sm:$0xff]
    %v281 = vld [vmem:[%s1 + $0x7f0] sm:$0xff]
    %v282 = vld [vmem:[%s1 + $0x7f8] sm:$0xff]
    %v283 = vld [vmem:[%s1 + $0x800] sm:$0xff]
    %v284 = vld [vmem:[%s1 + $0x808] sm:$0xff]
    %v285 = vld [vmem:[%s1 + $0x810] sm:$0xff]
    %v286 = vld [vmem:[%s1 + $0x818] sm:$0xff]
    %v287 = vld [vmem:[%s1 + $0x820] sm:$0xff]
    %v288 = vld [vmem:[%s1 + $0x828] sm:$0xff]
    %v289 = vld [vmem:[%s1 + $0x830] sm:$0xff]
    %v290 = vld [vmem:[%s1 + $0x838] sm:$0xff]
    %v291 = vld [vmem:[%s1 + $0x840] sm:$0xff]
    %v292 = vld [vmem:[%s1 + $0x848] sm:$0xff]
    %v293 = vld [vmem:[%s1 + $0x850] sm:$0xff]
    %v294 = vld [vmem:[%s1 + $0x858] sm:$0xff]
    %v295 = vld [vmem:[%s1 + $0x860] sm:$0xff]
    %v296 = vld [vmem:[%s1 + $0x868] sm:$0xff]
    %v297 = vld [vmem:[%s1 + $0x870] sm:$0xff]
    %v298 = vld [vmem:[%s1 + $0x878] sm:$0xff]
    %v299 = vld [vmem:[%s1 + $0x880] sm:$0xff]
    %v300 = vld [vmem:[%s1 + $0x888] sm:$0xff]
    %v301 = vld [vmem:[%s1 + $0x890] sm:$0xff]
    %v302 = vld [vmem:[%s1 + $0x898] sm:$0xff]
    %v303 = vld [vmem:[%s1 + $0x8a0] sm:$0xff]
    %v304 = vld [vmem:[%s1 + $0x8a8] sm:$0xff]
    %v305 = vld [vmem:[%s1 + $0x8b0] sm:$0xff]
    %v306 = vld [vmem:[%s1 + $0x8b8] sm:$0xff]
    %v307 = vld [vmem:[%s1 + $0x8c0] sm:$0xff]
    %v308 = vld [vmem:[%s1 + $0x8c8] sm:$0xff]
    %v309 = vld [vmem:[%s1 + $0x8d0] sm:$0xff]
    %v310 = vld [vmem:[%s1 + $0x8d8] sm:$0xff]
    %v311 = vld [vmem:[%s1 + $0x8e0] sm:$0xff]
    %v312 = vld [vmem:[%s1 + $0x8e8] sm:$0xff]
    %v313 = vld [vmem:[%s1 + $0x8f0] sm:$0xff]
    %v314 = vld [vmem:[%s1 + $0x8f8] sm:$0xff]
    %v315 = vld [vmem:[%s1 + $0x900] sm:$0xff]
    %v316 = vld [vmem:[%s1 + $0x908] sm:$0xff]
    %v317 = vld [vmem:[%s1 + $0x910] sm:$0xff]
    %v318 = vld [vmem:[%s1 + $0x918] sm:$0xff]
    %v319 = vld [vmem:[%s1 + $0x920] sm:$0xff]
    %v320 = vld [vmem:[%s1 + $0x928] sm:$0xff]
    %v321 = vld [vmem:[%s1 + $0x930] sm:$0xff]
    %v322 = vld [vmem:[%s1 + $0x938] sm:$0xff]
    %v323 = vld [vmem:[%s1 + $0x940] sm:$0xff]
    %v324 = vld [vmem:[%s1 + $0x948] sm:$0xff]
    %v325 = vld [vmem:[%s1 + $0x950] sm:$0xff]
    %v326 = vld [vmem:[%s1 + $0x958] sm:$0xff]
    %v327 = vld [vmem:[%s1 + $0x960] sm:$0xff]
    %v328 = vld [vmem:[%s1 + $0x968] sm:$0xff]
    %v329 = vld [vmem:[%s1 + $0x970] sm:$0xff]
    %v330 = vld [vmem:[%s1 + $0x978] sm:$0xff]
    %v331 = vld [vmem:[%s1 + $0x980] sm:$0xff]
    %v332 = vld [vmem:[%s1 + $0x988] sm:$0xff]
    %v333 = vld [vmem:[%s1 + $0x990] sm:$0xff]
    %v334 = vld [vmem:[%s1 + $0x998] sm:$0xff]
    %v335 = vld [vmem:[%s1 + $0x9a0] sm:$0xff]
    %v336 = vld [vmem:[%s1 + $0x9a8] sm:$0xff]
    %v337 = vld [vmem:[%s1 + $0x9b0] sm:$0xff]
    %v338 = vld [vmem:[%s1 + $0x9b8] sm:$0xff]
    %v339 = vld [vmem:[%s1 + $0x9c0] sm:$0xff]
    %v340 = vld [vmem:[%s1 + $0x9c8] sm:$0xff]
    %v341 = vld [vmem:[%s1 + $0x9d0] sm:$0xff]
    %v342 = vld [vmem:[%s1 + $0x9d8] sm:$0xff]
    %v343 = vld [vmem:[%s1 + $0x9e0] sm:$0xff]
    %v344 = vld [vmem:[%s1 + $0x9e8] sm:$0xff]
    %v345 = vld [vmem:[%s1 + $0x9f0] sm:$0xff]
    %v346 = vld [vmem:[%s1 + $0x9f8] sm:$0xff]
    %v347 = vld [vmem:[%s1 + $0xa00] sm:$0xff]
    %v348 = vld [vmem:[%s1 + $0xa08] sm:$0xff]
    %v349 = vld [vmem:[%s1 + $0xa10] sm:$0xff]
    %v350 = vld [vmem:[%s1 + $0xa18] sm:$0xff]
    %v351 = vld [vmem:[%s1 + $0xa20] sm:$0xff]
    %v352 = vld [vmem:[%s1 + $0xa28] sm:$0xff]
    %v353 = vld [vmem:[%s1 + $0xa30] sm:$0xff]
    %v354 = vld [vmem:[%s1 + $0xa38] sm:$0xff]
    %v355 = vld [vmem:[%s1 + $0xa40] sm:$0xff]
    %v356 = vld [vmem:[%s1 + $0xa48] sm:$0xff]
    %v357 = vld [vmem:[%s1 + $0xa50] sm:$0xff]
    %v358 = vld [vmem:[%s1 + $0xa58] sm:$0xff]
    %v359 = vld [vmem:[%s1 + $0xa60] sm:$0xff]
    %v360 = vld [vmem:[%s1 + $0xa68] sm:$0xff]
    %v361 = vld [vmem:[%s1 + $0xa70] sm:$0xff]
    %v362 = vld [vmem:[%s1 + $0xa78] sm:$0xff]
    %v363 = vld [vmem:[%s1 + $0xa80] sm:$0xff]
    %v364 = vld [vmem:[%s1 + $0xa88] sm:$0xff]
    %v365 = vld [vmem:[%s1 + $0xa90] sm:$0xff]
    %v366 = vld [vmem:[%s1 + $0xa98] sm:$0xff]
    %v367 = vld [vmem:[%s1 + $0xaa0] sm:$0xff]
    %v368 = vld [vmem:[%s1 + $0xaa8] sm:$0xff]
    %v369 = vld [vmem:[%s1 + $0xab0] sm:$0xff]
    %v370 = vld [vmem:[%s1 + $0xab8] sm:$0xff]
    %v371 = vld [vmem:[%s1 + $0xac0] sm:$0xff]
    %v372 = vld [vmem:[%s1 + $0xac8] sm:$0xff]
    %v373 = vld [vmem:[%s1 + $0xad0] sm:$0xff]
    %v374 = vld [vmem:[%s1 + $0xad8] sm:$0xff]
    %v375 = vld [vmem:[%s1 + $0xae0] sm:$0xff]
    %v376 = vld [vmem:[%s1 + $0xae8] sm:$0xff]
    %v377 = vld [vmem:[%s1 + $0xaf0] sm:$0xff]
    %v378 = vld [vmem:[%s1 + $0xaf8] sm:$0xff]
    %v379 = vld [vmem:[%s1 + $0xb00] sm:$0xff]
    %v380 = vld [vmem:[%s1 + $0xb08] sm:$0xff]
    %v381 = vld [vmem:[%s1 + $0xb10] sm:$0xff]
    %v382 = vld [vmem:[%s1 + $0xb18] sm:$0xff]
    %v383 = vld [vmem:[%s1 + $0xb20] sm:$0xff]
    %v384 = vld [vmem:[%s1 + $0xb28] sm:$0xff]
    %v385 = vld [vmem:[%s1 + $0xb30] sm:$0xff]
    %v386 = vld [vmem:[%s1 + $0xb38] sm:$0xff]
    %v387 = vld [vmem:[%s2] sm:$0x1]
    %v389 = vlaneseq
    %v390 = vshrl.u32 %v389, 7
    %v391 = vsub.s32 0, %v390
    %v392 = vrot.slane %v387, %v391
    %v400 = vcombine.high %v21, %v21
    %v402 = vunpack.c.l.s4 1983009808
    %v403 = vunpack.c.0.s8 %v402
    %v404 = vlaneseq
    %v405 = vshrl.u32 %v404, 7
    %v406 = vsub.s32 %v403, %v405
    %v407 = vrot.slane %v21, %v406
    %v409 = vunpack.c.l.s4 1983009808
    %v410 = vunpack.c.0.s8 %v409
    %v411 = vlaneseq
    %v412 = vshrl.u32 %v411, 7
    %v413 = vsub.s32 %v410, %v412
    %v414 = vrot.slane %v400, %v413
    %v415 = vcombine.high %v407, %v407
    %v416 = vcombine.high %v414, %v414
    %v417 = vcombine.high %v22, %v22
    %v419 = vunpack.c.l.s4 1983009808
    %v420 = vunpack.c.0.s8 %v419
    %v421 = vlaneseq
    %v422 = vshrl.u32 %v421, 7
    %v423 = vsub.s32 %v420, %v422
    %v424 = vrot.slane %v22, %v423
    %v426 = vunpack.c.l.s4 1983009808
    %v427 = vunpack.c.0.s8 %v426
    %v428 = vlaneseq
    %v429 = vshrl.u32 %v428, 7
    %v430 = vsub.s32 %v427, %v429
    %v431 = vrot.slane %v417, %v430
    %v432 = vcombine.high %v424, %v424
    %v433 = vcombine.high %v431, %v431
    %v434 = vcombine.high %v23, %v23
    %v436 = vunpack.c.l.s4 1983009808
    %v437 = vunpack.c.0.s8 %v436
    %v438 = vlaneseq
    %v439 = vshrl.u32 %v438, 7
    %v440 = vsub.s32 %v437, %v439
    %v441 = vrot.slane %v23, %v440
    %v443 = vunpack.c.l.s4 1983009808
    %v444 = vunpack.c.0.s8 %v443
    %v445 = vlaneseq
    %v446 = vshrl.u32 %v445, 7
    %v447 = vsub.s32 %v444, %v446
    %v448 = vrot.slane %v434, %v447
    %v449 = vcombine.high %v441, %v441
    %v450 = vcombine.high %v448, %v448
    %v451 = vcombine.high %v24, %v24
    %v453 = vunpack.c.l.s4 1983009808
    %v454 = vunpack.c.0.s8 %v453
    %v455 = vlaneseq
    %v456 = vshrl.u32 %v455, 7
    %v457 = vsub.s32 %v454, %v456
    %v458 = vrot.slane %v24, %v457
    %v460 = vunpack.c.l.s4 1983009808
    %v461 = vunpack.c.0.s8 %v460
    %v462 = vlaneseq
    %v463 = vshrl.u32 %v462, 7
    %v464 = vsub.s32 %v461, %v463
    %v465 = vrot.slane %v451, %v464
    %v466 = vcombine.high %v458, %v458
    %v467 = vcombine.high %v465, %v465
    %v468 = vcombine.high %v25, %v25
    %v470 = vunpack.c.l.s4 1983009808
    %v471 = vunpack.c.0.s8 %v470
    %v472 = vlaneseq
    %v473 = vshrl.u32 %v472, 7
    %v474 = vsub.s32 %v471, %v473
    %v475 = vrot.slane %v25, %v474
    %v477 = vunpack.c.l.s4 1983009808
    %v478 = vunpack.c.0.s8 %v477
    %v479 = vlaneseq
    %v480 = vshrl.u32 %v479, 7
    %v481 = vsub.s32 %v478, %v480
    %v482 = vrot.slane %v468, %v481
    %v483 = vcombine.high %v475, %v475
    %v484 = vcombine.high %v482, %v482
    %v485 = vcombine.high %v26, %v26
    %v487 = vunpack.c.l.s4 1983009808
    %v488 = vunpack.c.0.s8 %v487
    %v489 = vlaneseq
    %v490 = vshrl.u32 %v489, 7
    %v491 = vsub.s32 %v488, %v490
    %v492 = vrot.slane %v26, %v491
    %v494 = vunpack.c.l.s4 1983009808
    %v495 = vunpack.c.0.s8 %v494
    %v496 = vlaneseq
    %v497 = vshrl.u32 %v496, 7
    %v498 = vsub.s32 %v495, %v497
    %v499 = vrot.slane %v485, %v498
    %v500 = vcombine.high %v492, %v492
    %vm523 = vcmask 523264
    %v524 = vsel %vm523, %v499, 0
    %526 = vmatprep.subr.mxu0 0.0
    %527 = vmatpush1.msra.mxu0 %v27
    %528 = vmatprep.subr.mxu0 0.0
    %529 = vmatpush1.msra.mxu0 %v28
    %530 = vmatprep.subr.mxu0 0.0
    %531 = vmatpush1.msra.mxu0 %v29
    %532 = vmatprep.subr.mxu0 0.0
    %533 = vmatpush1.msra.mxu0 %v30
    %534 = vmatprep.subr.mxu0 0.0
    %535 = vmatpush1.msra.mxu0 %v31
    %536 = vmatprep.subr.mxu0 0.0
    %537 = vmatpush1.msra.mxu0 %v32
    %538 = vmatprep.subr.mxu0 0.0
    %539 = vmatpush1.msra.mxu0 %v33
    %540 = vmatprep.subr.mxu0 0.0
    %541 = vmatpush1.msra.mxu0 %v34
    %542 = vmatprep.subr.mxu0 0.0
    %543 = vmatpush1.msra.mxu0 %v35
    %544 = vmatprep.subr.mxu0 0.0
    %545 = vmatpush1.msra.mxu0 %v36
    %546 = vmatprep.subr.mxu0 0.0
    %547 = vmatpush1.msra.mxu0 %v37
    %548 = vmatprep.subr.mxu0 0.0
    %549 = vmatpush1.msra.mxu0 %v38
    %550 = vmatprep.subr.mxu0 0.0
    %551 = vmatpush1.msra.mxu0 %v39
    %552 = vmatprep.subr.mxu0 0.0
    %553 = vmatpush1.msra.mxu0 %v40
    %554 = vmatprep.subr.mxu0 0.0
    %555 = vmatpush1.msra.mxu0 %v41
    %556 = vmatprep.subr.mxu0 0.0
    %557 = vmatpush1.msra.mxu0 %v42
    %558 = vmatprep.subr.mxu0 0.0
    %559 = vmatpush1.msra.mxu0 %v43
    %560 = vmatprep.subr.mxu0 0.0
    %561 = vmatpush1.msra.mxu0 %v44
    %562 = vmatprep.subr.mxu0 0.0
    %563 = vmatpush1.msra.mxu0 %v45
    %564 = vmatprep.subr.mxu0 0.0
    %565 = vmatpush1.msra.mxu0 %v46
    %566 = vmatprep.subr.mxu0 0.0
    %567 = vmatpush1.msra.mxu0 %v47
    %568 = vmatprep.subr.mxu0 0.0
    %569 = vmatpush1.msra.mxu0 %v48
    %570 = vmatprep.subr.mxu0 0.0
    %571 = vmatpush1.msra.mxu0 %v49
    %572 = vmatprep.subr.mxu0 0.0
    %573 = vmatpush1.msra.mxu0 %v50
    %574 = vmatprep.subr.mxu0 0.0
    %575 = vmatpush1.msra.mxu0 %v51
    %576 = vmatprep.subr.mxu0 0.0
    %577 = vmatpush1.msra.mxu0 %v52
    %578 = vmatprep.subr.mxu0 0.0
    %579 = vmatpush1.msra.mxu0 %v53
    %580 = vmatprep.subr.mxu0 0.0
    %581 = vmatpush1.msra.mxu0 %v54
    %582 = vmatprep.subr.mxu0 0.0
    %583 = vmatpush1.msra.mxu0 %v55
    %584 = vmatprep.subr.mxu0 0.0
    %585 = vmatpush1.msra.mxu0 %v56
    %586 = vmatprep.subr.mxu0 0.0
    %587 = vmatpush1.msra.mxu0 %v57
    %588 = vmatprep.subr.mxu0 0.0
    %589 = vmatpush1.msra.mxu0 %v58
    %590 = vmatprep.mubr.f32.mxu0 %v415
    %591 = vmatmul.mubr.f32.gmra.mrb[0].mxu0 %v407
    %v592 = vpop.f32.mrb[0].mxu0
    %v593 = vadd.f32 %v392, %v592
    %v594 = vpop.f32.mrb[0].mxu0
    %595 = vdwg.mxu0
    %596 = vmatprep.subr.mxu0 0.0
    %597 = vmatpush1.msra.mxu0 %v59
    %598 = vmatprep.subr.mxu0 0.0
    %599 = vmatpush1.msra.mxu0 %v60
    %600 = vmatprep.subr.mxu0 0.0
    %601 = vmatpush1.msra.mxu0 %v61
    %602 = vmatprep.subr.mxu0 0.0
    %603 = vmatpush1.msra.mxu0 %v62
    %604 = vmatprep.subr.mxu0 0.0
    %605 = vmatpush1.msra.mxu0 %v63
    %606 = vmatprep.subr.mxu0 0.0
    %607 = vmatpush1.msra.mxu0 %v64
    %608 = vmatprep.subr.mxu0 0.0
    %609 = vmatpush1.msra.mxu0 %v65
    %610 = vmatprep.subr.mxu0 0.0
    %611 = vmatpush1.msra.mxu0 %v66
    %612 = vmatprep.subr.mxu0 0.0
    %613 = vmatpush1.msra.mxu0 %v67
    %614 = vmatprep.subr.mxu0 0.0
    %615 = vmatpush1.msra.mxu0 %v68
    %616 = vmatprep.subr.mxu0 0.0
    %617 = vmatpush1.msra.mxu0 %v69
    %618 = vmatprep.subr.mxu0 0.0
    %619 = vmatpush1.msra.mxu0 %v70
    %620 = vmatprep.subr.mxu0 0.0
    %621 = vmatpush1.msra.mxu0 %v71
    %622 = vmatprep.subr.mxu0 0.0
    %623 = vmatpush1.msra.mxu0 %v72
    %624 = vmatprep.subr.mxu0 0.0
    %625 = vmatpush1.msra.mxu0 %v73
    %626 = vmatprep.subr.mxu0 0.0
    %627 = vmatpush1.msra.mxu0 %v74
    %628 = vmatprep.subr.mxu0 0.0
    %629 = vmatpush1.msra.mxu0 %v75
    %630 = vmatprep.subr.mxu0 0.0
    %631 = vmatpush1.msra.mxu0 %v76
    %632 = vmatprep.subr.mxu0 0.0
    %633 = vmatpush1.msra.mxu0 %v77
    %634 = vmatprep.subr.mxu0 0.0
    %635 = vmatpush1.msra.mxu0 %v78
    %636 = vmatprep.subr.mxu0 0.0
    %637 = vmatpush1.msra.mxu0 %v79
    %638 = vmatprep.subr.mxu0 0.0
    %639 = vmatpush1.msra.mxu0 %v80
    %640 = vmatprep.subr.mxu0 0.0
    %641 = vmatpush1.msra.mxu0 %v81
    %642 = vmatprep.subr.mxu0 0.0
    %643 = vmatpush1.msra.mxu0 %v82
    %644 = vmatprep.subr.mxu0 0.0
    %645 = vmatpush1.msra.mxu0 %v83
    %646 = vmatprep.subr.mxu0 0.0
    %647 = vmatpush1.msra.mxu0 %v84
    %648 = vmatprep.subr.mxu0 0.0
    %649 = vmatpush1.msra.mxu0 %v85
    %650 = vmatprep.subr.mxu0 0.0
    %651 = vmatpush1.msra.mxu0 %v86
    %652 = vmatprep.subr.mxu0 0.0
    %653 = vmatpush1.msra.mxu0 %v87
    %654 = vmatprep.subr.mxu0 0.0
    %655 = vmatpush1.msra.mxu0 %v88
    %656 = vmatprep.subr.mxu0 0.0
    %657 = vmatpush1.msra.mxu0 %v89
    %658 = vmatprep.subr.mxu0 0.0
    %659 = vmatpush1.msra.mxu0 %v90
    %660 = vmatprep.mubr.f32.mxu0 %v416
    %661 = vmatmul.mubr.f32.gmra.mrb[0].mxu0 %v414
    %v662 = vpop.f32.mrb[0].mxu0
    %v663 = vadd.f32 %v593, %v662
    %v664 = vpop.f32.mrb[0].mxu0
    %665 = vdwg.mxu0
    %666 = vmatprep.subr.mxu0 0.0
    %667 = vmatpush1.msra.mxu0 %v91
    %668 = vmatprep.subr.mxu0 0.0
    %669 = vmatpush1.msra.mxu0 %v92
    %670 = vmatprep.subr.mxu0 0.0
    %671 = vmatpush1.msra.mxu0 %v93
    %672 = vmatprep.subr.mxu0 0.0
    %673 = vmatpush1.msra.mxu0 %v94
    %674 = vmatprep.subr.mxu0 0.0
    %675 = vmatpush1.msra.mxu0 %v95
    %676 = vmatprep.subr.mxu0 0.0
    %677 = vmatpush1.msra.mxu0 %v96
    %678 = vmatprep.subr.mxu0 0.0
    %679 = vmatpush1.msra.mxu0 %v97
    %680 = vmatprep.subr.mxu0 0.0
    %681 = vmatpush1.msra.mxu0 %v98
    %682 = vmatprep.subr.mxu0 0.0
    %683 = vmatpush1.msra.mxu0 %v99
    %684 = vmatprep.subr.mxu0 0.0
    %685 = vmatpush1.msra.mxu0 %v100
    %686 = vmatprep.subr.mxu0 0.0
    %687 = vmatpush1.msra.mxu0 %v101
    %688 = vmatprep.subr.mxu0 0.0
    %689 = vmatpush1.msra.mxu0 %v102
    %690 = vmatprep.subr.mxu0 0.0
    %691 = vmatpush1.msra.mxu0 %v103
    %692 = vmatprep.subr.mxu0 0.0
    %693 = vmatpush1.msra.mxu0 %v104
    %694 = vmatprep.subr.mxu0 0.0
    %695 = vmatpush1.msra.mxu0 %v105
    %696 = vmatprep.subr.mxu0 0.0
    %697 = vmatpush1.msra.mxu0 %v106
    %698 = vmatprep.subr.mxu0 0.0
    %699 = vmatpush1.msra.mxu0 %v107
    %700 = vmatprep.subr.mxu0 0.0
    %701 = vmatpush1.msra.mxu0 %v108
    %702 = vmatprep.subr.mxu0 0.0
    %703 = vmatpush1.msra.mxu0 %v109
    %704 = vmatprep.subr.mxu0 0.0
    %705 = vmatpush1.msra.mxu0 %v110
    %706 = vmatprep.subr.mxu0 0.0
    %707 = vmatpush1.msra.mxu0 %v111
    %708 = vmatprep.subr.mxu0 0.0
    %709 = vmatpush1.msra.mxu0 %v112
    %710 = vmatprep.subr.mxu0 0.0
    %711 = vmatpush1.msra.mxu0 %v113
    %712 = vmatprep.subr.mxu0 0.0
    %713 = vmatpush1.msra.mxu0 %v114
    %714 = vmatprep.subr.mxu0 0.0
    %715 = vmatpush1.msra.mxu0 %v115
    %716 = vmatprep.subr.mxu0 0.0
    %717 = vmatpush1.msra.mxu0 %v116
    %718 = vmatprep.subr.mxu0 0.0
    %719 = vmatpush1.msra.mxu0 %v117
    %720 = vmatprep.subr.mxu0 0.0
    %721 = vmatpush1.msra.mxu0 %v118
    %722 = vmatprep.subr.mxu0 0.0
    %723 = vmatpush1.msra.mxu0 %v119
    %724 = vmatprep.subr.mxu0 0.0
    %725 = vmatpush1.msra.mxu0 %v120
    %726 = vmatprep.subr.mxu0 0.0
    %727 = vmatpush1.msra.mxu0 %v121
    %728 = vmatprep.subr.mxu0 0.0
    %729 = vmatpush1.msra.mxu0 %v122
    %730 = vmatprep.mubr.f32.mxu0 %v432
    %731 = vmatmul.mubr.f32.gmra.mrb[0].mxu0 %v424
    %v732 = vpop.f32.mrb[0].mxu0
    %v733 = vadd.f32 %v663, %v732
    %v734 = vpop.f32.mrb[0].mxu0
    %735 = vdwg.mxu0
    %736 = vmatprep.subr.mxu0 0.0
    %737 = vmatpush1.msra.mxu0 %v123
    %738 = vmatprep.subr.mxu0 0.0
    %739 = vmatpush1.msra.mxu0 %v124
    %740 = vmatprep.subr.mxu0 0.0
    %741 = vmatpush1.msra.mxu0 %v125
    %742 = vmatprep.subr.mxu0 0.0
    %743 = vmatpush1.msra.mxu0 %v126
    %744 = vmatprep.subr.mxu0 0.0
    %745 = vmatpush1.msra.mxu0 %v127
    %746 = vmatprep.subr.mxu0 0.0
    %747 = vmatpush1.msra.mxu0 %v128
    %748 = vmatprep.subr.mxu0 0.0
    %749 = vmatpush1.msra.mxu0 %v129
    %750 = vmatprep.subr.mxu0 0.0
    %751 = vmatpush1.msra.mxu0 %v130
    %752 = vmatprep.subr.mxu0 0.0
    %753 = vmatpush1.msra.mxu0 %v131
    %754 = vmatprep.subr.mxu0 0.0
    %755 = vmatpush1.msra.mxu0 %v132
    %756 = vmatprep.subr.mxu0 0.0
    %757 = vmatpush1.msra.mxu0 %v133
    %758 = vmatprep.subr.mxu0 0.0
    %759 = vmatpush1.msra.mxu0 %v134
    %760 = vmatprep.subr.mxu0 0.0
    %761 = vmatpush1.msra.mxu0 %v135
    %762 = vmatprep.subr.mxu0 0.0
    %763 = vmatpush1.msra.mxu0 %v136
    %764 = vmatprep.subr.mxu0 0.0
    %765 = vmatpush1.msra.mxu0 %v137
    %766 = vmatprep.subr.mxu0 0.0
    %767 = vmatpush1.msra.mxu0 %v138
    %768 = vmatprep.subr.mxu0 0.0
    %769 = vmatpush1.msra.mxu0 %v139
    %770 = vmatprep.subr.mxu0 0.0
    %771 = vmatpush1.msra.mxu0 %v140
    %772 = vmatprep.subr.mxu0 0.0
    %773 = vmatpush1.msra.mxu0 %v141
    %774 = vmatprep.subr.mxu0 0.0
    %775 = vmatpush1.msra.mxu0 %v142
    %776 = vmatprep.subr.mxu0 0.0
    %777 = vmatpush1.msra.mxu0 %v143
    %778 = vmatprep.subr.mxu0 0.0
    %779 = vmatpush1.msra.mxu0 %v144
    %780 = vmatprep.subr.mxu0 0.0
    %781 = vmatpush1.msra.mxu0 %v145
    %782 = vmatprep.subr.mxu0 0.0
    %783 = vmatpush1.msra.mxu0 %v146
    %784 = vmatprep.subr.mxu0 0.0
    %785 = vmatpush1.msra.mxu0 %v147
    %786 = vmatprep.subr.mxu0 0.0
    %787 = vmatpush1.msra.mxu0 %v148
    %788 = vmatprep.subr.mxu0 0.0
    %789 = vmatpush1.msra.mxu0 %v149
    %790 = vmatprep.subr.mxu0 0.0
    %791 = vmatpush1.msra.mxu0 %v150
    %792 = vmatprep.subr.mxu0 0.0
    %793 = vmatpush1.msra.mxu0 %v151
    %794 = vmatprep.subr.mxu0 0.0
    %795 = vmatpush1.msra.mxu0 %v152
    %796 = vmatprep.subr.mxu0 0.0
    %797 = vmatpush1.msra.mxu0 %v153
    %798 = vmatprep.subr.mxu0 0.0
    %799 = vmatpush1.msra.mxu0 %v154
    %800 = vmatprep.mubr.f32.mxu0 %v433
    %801 = vmatmul.mubr.f32.gmra.mrb[0].mxu0 %v431
    %v802 = vpop.f32.mrb[0].mxu0
    %v803 = vadd.f32 %v733, %v802
    %v804 = vpop.f32.mrb[0].mxu0
    %805 = vdwg.mxu0
    %806 = vmatprep.subr.mxu0 0.0
    %807 = vmatpush1.msra.mxu0 %v155
    %808 = vmatprep.subr.mxu0 0.0
    %809 = vmatpush1.msra.mxu0 %v156
    %810 = vmatprep.subr.mxu0 0.0
    %811 = vmatpush1.msra.mxu0 %v157
    %812 = vmatprep.subr.mxu0 0.0
    %813 = vmatpush1.msra.mxu0 %v158
    %814 = vmatprep.subr.mxu0 0.0
    %815 = vmatpush1.msra.mxu0 %v159
    %816 = vmatprep.subr.mxu0 0.0
    %817 = vmatpush1.msra.mxu0 %v160
    %818 = vmatprep.subr.mxu0 0.0
    %819 = vmatpush1.msra.mxu0 %v161
    %820 = vmatprep.subr.mxu0 0.0
    %821 = vmatpush1.msra.mxu0 %v162
    %822 = vmatprep.subr.mxu0 0.0
    %823 = vmatpush1.msra.mxu0 %v163
    %824 = vmatprep.subr.mxu0 0.0
    %825 = vmatpush1.msra.mxu0 %v164
    %826 = vmatprep.subr.mxu0 0.0
    %827 = vmatpush1.msra.mxu0 %v165
    %828 = vmatprep.subr.mxu0 0.0
    %829 = vmatpush1.msra.mxu0 %v166
    %830 = vmatprep.subr.mxu0 0.0
    %831 = vmatpush1.msra.mxu0 %v167
    %832 = vmatprep.subr.mxu0 0.0
    %833 = vmatpush1.msra.mxu0 %v168
    %834 = vmatprep.subr.mxu0 0.0
    %835 = vmatpush1.msra.mxu0 %v169
    %836 = vmatprep.subr.mxu0 0.0
    %837 = vmatpush1.msra.mxu0 %v170
    %838 = vmatprep.subr.mxu0 0.0
    %839 = vmatpush1.msra.mxu0 %v171
    %840 = vmatprep.subr.mxu0 0.0
    %841 = vmatpush1.msra.mxu0 %v172
    %842 = vmatprep.subr.mxu0 0.0
    %843 = vmatpush1.msra.mxu0 %v173
    %844 = vmatprep.subr.mxu0 0.0
    %845 = vmatpush1.msra.mxu0 %v174
    %846 = vmatprep.subr.mxu0 0.0
    %847 = vmatpush1.msra.mxu0 %v175
    %848 = vmatprep.subr.mxu0 0.0
    %849 = vmatpush1.msra.mxu0 %v176
    %850 = vmatprep.subr.mxu0 0.0
    %851 = vmatpush1.msra.mxu0 %v177
    %852 = vmatprep.subr.mxu0 0.0
    %853 = vmatpush1.msra.mxu0 %v178
    %854 = vmatprep.subr.mxu0 0.0
    %855 = vmatpush1.msra.mxu0 %v179
    %856 = vmatprep.subr.mxu0 0.0
    %857 = vmatpush1.msra.mxu0 %v180
    %858 = vmatprep.subr.mxu0 0.0
    %859 = vmatpush1.msra.mxu0 %v181
    %860 = vmatprep.subr.mxu0 0.0
    %861 = vmatpush1.msra.mxu0 %v182
    %862 = vmatprep.subr.mxu0 0.0
    %863 = vmatpush1.msra.mxu0 %v183
    %864 = vmatprep.subr.mxu0 0.0
    %865 = vmatpush1.msra.mxu0 %v184
    %866 = vmatprep.subr.mxu0 0.0
    %867 = vmatpush1.msra.mxu0 %v185
    %868 = vmatprep.subr.mxu0 0.0
    %869 = vmatpush1.msra.mxu0 %v186
    %870 = vmatprep.mubr.f32.mxu0 %v449
    %871 = vmatmul.mubr.f32.gmra.mrb[0].mxu0 %v441
    %v872 = vpop.f32.mrb[0].mxu0
    %v873 = vadd.f32 %v803, %v872
    %v874 = vpop.f32.mrb[0].mxu0
    %875 = vdwg.mxu0
    %876 = vmatprep.subr.mxu0 0.0
    %877 = vmatpush1.msra.mxu0 %v187
    %878 = vmatprep.subr.mxu0 0.0
    %879 = vmatpush1.msra.mxu0 %v188
    %880 = vmatprep.subr.mxu0 0.0
    %881 = vmatpush1.msra.mxu0 %v189
    %882 = vmatprep.subr.mxu0 0.0
    %883 = vmatpush1.msra.mxu0 %v190
    %884 = vmatprep.subr.mxu0 0.0
    %885 = vmatpush1.msra.mxu0 %v191
    %886 = vmatprep.subr.mxu0 0.0
    %887 = vmatpush1.msra.mxu0 %v192
    %888 = vmatprep.subr.mxu0 0.0
    %889 = vmatpush1.msra.mxu0 %v193
    %890 = vmatprep.subr.mxu0 0.0
    %891 = vmatpush1.msra.mxu0 %v194
    %892 = vmatprep.subr.mxu0 0.0
    %893 = vmatpush1.msra.mxu0 %v195
    %894 = vmatprep.subr.mxu0 0.0
    %895 = vmatpush1.msra.mxu0 %v196
    %896 = vmatprep.subr.mxu0 0.0
    %897 = vmatpush1.msra.mxu0 %v197
    %898 = vmatprep.subr.mxu0 0.0
    %899 = vmatpush1.msra.mxu0 %v198
    %900 = vmatprep.subr.mxu0 0.0
    %901 = vmatpush1.msra.mxu0 %v199
    %902 = vmatprep.subr.mxu0 0.0
    %903 = vmatpush1.msra.mxu0 %v200
    %904 = vmatprep.subr.mxu0 0.0
    %905 = vmatpush1.msra.mxu0 %v201
    %906 = vmatprep.subr.mxu0 0.0
    %907 = vmatpush1.msra.mxu0 %v202
    %908 = vmatprep.subr.mxu0 0.0
    %909 = vmatpush1.msra.mxu0 %v203
    %910 = vmatprep.subr.mxu0 0.0
    %911 = vmatpush1.msra.mxu0 %v204
    %912 = vmatprep.subr.mxu0 0.0
    %913 = vmatpush1.msra.mxu0 %v205
    %914 = vmatprep.subr.mxu0 0.0
    %915 = vmatpush1.msra.mxu0 %v206
    %916 = vmatprep.subr.mxu0 0.0
    %917 = vmatpush1.msra.mxu0 %v207
    %918 = vmatprep.subr.mxu0 0.0
    %919 = vmatpush1.msra.mxu0 %v208
    %920 = vmatprep.subr.mxu0 0.0
    %921 = vmatpush1.msra.mxu0 %v209
    %922 = vmatprep.subr.mxu0 0.0
    %923 = vmatpush1.msra.mxu0 %v210
    %924 = vmatprep.subr.mxu0 0.0
    %925 = vmatpush1.msra.mxu0 %v211
    %926 = vmatprep.subr.mxu0 0.0
    %927 = vmatpush1.msra.mxu0 %v212
    %928 = vmatprep.subr.mxu0 0.0
    %929 = vmatpush1.msra.mxu0 %v213
    %930 = vmatprep.subr.mxu0 0.0
    %931 = vmatpush1.msra.mxu0 %v214
    %932 = vmatprep.subr.mxu0 0.0
    %933 = vmatpush1.msra.mxu0 %v215
    %934 = vmatprep.subr.mxu0 0.0
    %935 = vmatpush1.msra.mxu0 %v216
    %936 = vmatprep.subr.mxu0 0.0
    %937 = vmatpush1.msra.mxu0 %v217
    %938 = vmatprep.subr.mxu0 0.0
    %939 = vmatpush1.msra.mxu0 %v218
    %940 = vmatprep.mubr.f32.mxu0 %v450
    %941 = vmatmul.mubr.f32.gmra.mrb[0].mxu0 %v448
    %v942 = vpop.f32.mrb[0].mxu0
    %v943 = vadd.f32 %v873, %v942
    %v944 = vpop.f32.mrb[0].mxu0
    %945 = vdwg.mxu0
    %946 = vmatprep.subr.mxu0 0.0
    %947 = vmatpush1.msra.mxu0 %v219
    %948 = vmatprep.subr.mxu0 0.0
    %949 = vmatpush1.msra.mxu0 %v220
    %950 = vmatprep.subr.mxu0 0.0
    %951 = vmatpush1.msra.mxu0 %v221
    %952 = vmatprep.subr.mxu0 0.0
    %953 = vmatpush1.msra.mxu0 %v222
    %954 = vmatprep.subr.mxu0 0.0
    %955 = vmatpush1.msra.mxu0 %v223
    %956 = vmatprep.subr.mxu0 0.0
    %957 = vmatpush1.msra.mxu0 %v224
    %958 = vmatprep.subr.mxu0 0.0
    %959 = vmatpush1.msra.mxu0 %v225
    %960 = vmatprep.subr.mxu0 0.0
    %961 = vmatpush1.msra.mxu0 %v226
    %962 = vmatprep.subr.mxu0 0.0
    %963 = vmatpush1.msra.mxu0 %v227
    %964 = vmatprep.subr.mxu0 0.0
    %965 = vmatpush1.msra.mxu0 %v228
    %966 = vmatprep.subr.mxu0 0.0
    %967 = vmatpush1.msra.mxu0 %v229
    %968 = vmatprep.subr.mxu0 0.0
    %969 = vmatpush1.msra.mxu0 %v230
    %970 = vmatprep.subr.mxu0 0.0
    %971 = vmatpush1.msra.mxu0 %v231
    %972 = vmatprep.subr.mxu0 0.0
    %973 = vmatpush1.msra.mxu0 %v232
    %974 = vmatprep.subr.mxu0 0.0
    %975 = vmatpush1.msra.mxu0 %v233
    %976 = vmatprep.subr.mxu0 0.0
    %977 = vmatpush1.msra.mxu0 %v234
    %978 = vmatprep.subr.mxu0 0.0
    %979 = vmatpush1.msra.mxu0 %v235
    %980 = vmatprep.subr.mxu0 0.0
    %981 = vmatpush1.msra.mxu0 %v236
    %982 = vmatprep.subr.mxu0 0.0
    %983 = vmatpush1.msra.mxu0 %v237
    %984 = vmatprep.subr.mxu0 0.0
    %985 = vmatpush1.msra.mxu0 %v238
    %986 = vmatprep.subr.mxu0 0.0
    %987 = vmatpush1.msra.mxu0 %v239
    %988 = vmatprep.subr.mxu0 0.0
    %989 = vmatpush1.msra.mxu0 %v240
    %990 = vmatprep.subr.mxu0 0.0
    %991 = vmatpush1.msra.mxu0 %v241
    %992 = vmatprep.subr.mxu0 0.0
    %993 = vmatpush1.msra.mxu0 %v242
    %994 = vmatprep.subr.mxu0 0.0
    %995 = vmatpush1.msra.mxu0 %v243
    %996 = vmatprep.subr.mxu0 0.0
    %997 = vmatpush1.msra.mxu0 %v244
    %998 = vmatprep.subr.mxu0 0.0
    %999 = vmatpush1.msra.mxu0 %v245
    %1000 = vmatprep.subr.mxu0 0.0
    %1001 = vmatpush1.msra.mxu0 %v246
    %1002 = vmatprep.subr.mxu0 0.0
    %1003 = vmatpush1.msra.mxu0 %v247
    %1004 = vmatprep.subr.mxu0 0.0
    %1005 = vmatpush1.msra.mxu0 %v248
    %1006 = vmatprep.subr.mxu0 0.0
    %1007 = vmatpush1.msra.mxu0 %v249
    %1008 = vmatprep.subr.mxu0 0.0
    %1009 = vmatpush1.msra.mxu0 %v250
    %1010 = vmatprep.mubr.f32.mxu0 %v466
    %1011 = vmatmul.mubr.f32.gmra.mrb[0].mxu0 %v458
    %v1012 = vpop.f32.mrb[0].mxu0
    %v1013 = vadd.f32 %v943, %v1012
    %v1014 = vpop.f32.mrb[0].mxu0
    %1015 = vdwg.mxu0
    %1016 = vmatprep.subr.mxu0 0.0
    %1017 = vmatpush1.msra.mxu0 %v251
    %1018 = vmatprep.subr.mxu0 0.0
    %1019 = vmatpush1.msra.mxu0 %v252
    %1020 = vmatprep.subr.mxu0 0.0
    %1021 = vmatpush1.msra.mxu0 %v253
    %1022 = vmatprep.subr.mxu0 0.0
    %1023 = vmatpush1.msra.mxu0 %v254
    %1024 = vmatprep.subr.mxu0 0.0
    %1025 = vmatpush1.msra.mxu0 %v255
    %1026 = vmatprep.subr.mxu0 0.0
    %1027 = vmatpush1.msra.mxu0 %v256
    %1028 = vmatprep.subr.mxu0 0.0
    %1029 = vmatpush1.msra.mxu0 %v257
    %1030 = vmatprep.subr.mxu0 0.0
    %1031 = vmatpush1.msra.mxu0 %v258
    %1032 = vmatprep.subr.mxu0 0.0
    %1033 = vmatpush1.msra.mxu0 %v259
    %1034 = vmatprep.subr.mxu0 0.0
    %1035 = vmatpush1.msra.mxu0 %v260
    %1036 = vmatprep.subr.mxu0 0.0
    %1037 = vmatpush1.msra.mxu0 %v261
    %1038 = vmatprep.subr.mxu0 0.0
    %1039 = vmatpush1.msra.mxu0 %v262
    %1040 = vmatprep.subr.mxu0 0.0
    %1041 = vmatpush1.msra.mxu0 %v263
    %1042 = vmatprep.subr.mxu0 0.0
    %1043 = vmatpush1.msra.mxu0 %v264
    %1044 = vmatprep.subr.mxu0 0.0
    %1045 = vmatpush1.msra.mxu0 %v265
    %1046 = vmatprep.subr.mxu0 0.0
    %1047 = vmatpush1.msra.mxu0 %v266
    %1048 = vmatprep.subr.mxu0 0.0
    %1049 = vmatpush1.msra.mxu0 %v267
    %1050 = vmatprep.subr.mxu0 0.0
    %1051 = vmatpush1.msra.mxu0 %v268
    %1052 = vmatprep.subr.mxu0 0.0
    %1053 = vmatpush1.msra.mxu0 %v269
    %1054 = vmatprep.subr.mxu0 0.0
    %1055 = vmatpush1.msra.mxu0 %v270
    %1056 = vmatprep.subr.mxu0 0.0
    %1057 = vmatpush1.msra.mxu0 %v271
    %1058 = vmatprep.subr.mxu0 0.0
    %1059 = vmatpush1.msra.mxu0 %v272
    %1060 = vmatprep.subr.mxu0 0.0
    %1061 = vmatpush1.msra.mxu0 %v273
    %1062 = vmatprep.subr.mxu0 0.0
    %1063 = vmatpush1.msra.mxu0 %v274
    %1064 = vmatprep.subr.mxu0 0.0
    %1065 = vmatpush1.msra.mxu0 %v275
    %1066 = vmatprep.subr.mxu0 0.0
    %1067 = vmatpush1.msra.mxu0 %v276
    %1068 = vmatprep.subr.mxu0 0.0
    %1069 = vmatpush1.msra.mxu0 %v277
    %1070 = vmatprep.subr.mxu0 0.0
    %1071 = vmatpush1.msra.mxu0 %v278
    %1072 = vmatprep.subr.mxu0 0.0
    %1073 = vmatpush1.msra.mxu0 %v279
    %1074 = vmatprep.subr.mxu0 0.0
    %1075 = vmatpush1.msra.mxu0 %v280
    %1076 = vmatprep.subr.mxu0 0.0
    %1077 = vmatpush1.msra.mxu0 %v281
    %1078 = vmatprep.subr.mxu0 0.0
    %1079 = vmatpush1.msra.mxu0 %v282
    %1080 = vmatprep.mubr.f32.mxu0 %v467
    %1081 = vmatmul.mubr.f32.gmra.mrb[0].mxu0 %v465
    %v1082 = vpop.f32.mrb[0].mxu0
    %v1083 = vadd.f32 %v1013, %v1082
    %v1084 = vpop.f32.mrb[0].mxu0
    %1085 = vdwg.mxu0
    %1086 = vmatprep.subr.mxu0 0.0
    %1087 = vmatpush1.msra.mxu0 %v283
    %1088 = vmatprep.subr.mxu0 0.0
    %1089 = vmatpush1.msra.mxu0 %v284
    %1090 = vmatprep.subr.mxu0 0.0
    %1091 = vmatpush1.msra.mxu0 %v285
    %1092 = vmatprep.subr.mxu0 0.0
    %1093 = vmatpush1.msra.mxu0 %v286
    %1094 = vmatprep.subr.mxu0 0.0
    %1095 = vmatpush1.msra.mxu0 %v287
    %1096 = vmatprep.subr.mxu0 0.0
    %1097 = vmatpush1.msra.mxu0 %v288
    %1098 = vmatprep.subr.mxu0 0.0
    %1099 = vmatpush1.msra.mxu0 %v289
    %1100 = vmatprep.subr.mxu0 0.0
    %1101 = vmatpush1.msra.mxu0 %v290
    %1102 = vmatprep.subr.mxu0 0.0
    %1103 = vmatpush1.msra.mxu0 %v291
    %1104 = vmatprep.subr.mxu0 0.0
    %1105 = vmatpush1.msra.mxu0 %v292
    %1106 = vmatprep.subr.mxu0 0.0
    %1107 = vmatpush1.msra.mxu0 %v293
    %1108 = vmatprep.subr.mxu0 0.0
    %1109 = vmatpush1.msra.mxu0 %v294
    %1110 = vmatprep.subr.mxu0 0.0
    %1111 = vmatpush1.msra.mxu0 %v295
    %1112 = vmatprep.subr.mxu0 0.0
    %1113 = vmatpush1.msra.mxu0 %v296
    %1114 = vmatprep.subr.mxu0 0.0
    %1115 = vmatpush1.msra.mxu0 %v297
    %1116 = vmatprep.subr.mxu0 0.0
    %1117 = vmatpush1.msra.mxu0 %v298
    %1118 = vmatprep.subr.mxu0 0.0
    %1119 = vmatpush1.msra.mxu0 %v299
    %1120 = vmatprep.subr.mxu0 0.0
    %1121 = vmatpush1.msra.mxu0 %v300
    %1122 = vmatprep.subr.mxu0 0.0
    %1123 = vmatpush1.msra.mxu0 %v301
    %1124 = vmatprep.subr.mxu0 0.0
    %1125 = vmatpush1.msra.mxu0 %v302
    %1126 = vmatprep.subr.mxu0 0.0
    %1127 = vmatpush1.msra.mxu0 %v303
    %1128 = vmatprep.subr.mxu0 0.0
    %1129 = vmatpush1.msra.mxu0 %v304
    %1130 = vmatprep.subr.mxu0 0.0
    %1131 = vmatpush1.msra.mxu0 %v305
    %1132 = vmatprep.subr.mxu0 0.0
    %1133 = vmatpush1.msra.mxu0 %v306
    %1134 = vmatprep.subr.mxu0 0.0
    %1135 = vmatpush1.msra.mxu0 %v307
    %1136 = vmatprep.subr.mxu0 0.0
    %1137 = vmatpush1.msra.mxu0 %v308
    %1138 = vmatprep.subr.mxu0 0.0
    %1139 = vmatpush1.msra.mxu0 %v309
    %1140 = vmatprep.subr.mxu0 0.0
    %1141 = vmatpush1.msra.mxu0 %v310
    %1142 = vmatprep.subr.mxu0 0.0
    %1143 = vmatpush1.msra.mxu0 %v311
    %1144 = vmatprep.subr.mxu0 0.0
    %1145 = vmatpush1.msra.mxu0 %v312
    %1146 = vmatprep.subr.mxu0 0.0
    %1147 = vmatpush1.msra.mxu0 %v313
    %1148 = vmatprep.subr.mxu0 0.0
    %1149 = vmatpush1.msra.mxu0 %v314
    %1150 = vmatprep.mubr.f32.mxu0 %v483
    %1151 = vmatmul.mubr.f32.gmra.mrb[0].mxu0 %v475
    %v1152 = vpop.f32.mrb[0].mxu0
    %v1153 = vadd.f32 %v1083, %v1152
    %v1154 = vpop.f32.mrb[0].mxu0
    %1155 = vdwg.mxu0
    %1156 = vmatprep.subr.mxu0 0.0
    %1157 = vmatpush1.msra.mxu0 %v315
    %1158 = vmatprep.subr.mxu0 0.0
    %1159 = vmatpush1.msra.mxu0 %v316
    %1160 = vmatprep.subr.mxu0 0.0
    %1161 = vmatpush1.msra.mxu0 %v317
    %1162 = vmatprep.subr.mxu0 0.0
    %1163 = vmatpush1.msra.mxu0 %v318
    %1164 = vmatprep.subr.mxu0 0.0
    %1165 = vmatpush1.msra.mxu0 %v319
    %1166 = vmatprep.subr.mxu0 0.0
    %1167 = vmatpush1.msra.mxu0 %v320
    %1168 = vmatprep.subr.mxu0 0.0
    %1169 = vmatpush1.msra.mxu0 %v321
    %1170 = vmatprep.subr.mxu0 0.0
    %1171 = vmatpush1.msra.mxu0 %v322
    %1172 = vmatprep.subr.mxu0 0.0
    %1173 = vmatpush1.msra.mxu0 %v323
    %1174 = vmatprep.subr.mxu0 0.0
    %1175 = vmatpush1.msra.mxu0 %v324
    %1176 = vmatprep.subr.mxu0 0.0
    %1177 = vmatpush1.msra.mxu0 %v325
    %1178 = vmatprep.subr.mxu0 0.0
    %1179 = vmatpush1.msra.mxu0 %v326
    %1180 = vmatprep.subr.mxu0 0.0
    %1181 = vmatpush1.msra.mxu0 %v327
    %1182 = vmatprep.subr.mxu0 0.0
    %1183 = vmatpush1.msra.mxu0 %v328
    %1184 = vmatprep.subr.mxu0 0.0
    %1185 = vmatpush1.msra.mxu0 %v329
    %1186 = vmatprep.subr.mxu0 0.0
    %1187 = vmatpush1.msra.mxu0 %v330
    %1188 = vmatprep.subr.mxu0 0.0
    %1189 = vmatpush1.msra.mxu0 %v331
    %1190 = vmatprep.subr.mxu0 0.0
    %1191 = vmatpush1.msra.mxu0 %v332
    %1192 = vmatprep.subr.mxu0 0.0
    %1193 = vmatpush1.msra.mxu0 %v333
    %1194 = vmatprep.subr.mxu0 0.0
    %1195 = vmatpush1.msra.mxu0 %v334
    %1196 = vmatprep.subr.mxu0 0.0
    %1197 = vmatpush1.msra.mxu0 %v335
    %1198 = vmatprep.subr.mxu0 0.0
    %1199 = vmatpush1.msra.mxu0 %v336
    %1200 = vmatprep.subr.mxu0 0.0
    %1201 = vmatpush1.msra.mxu0 %v337
    %1202 = vmatprep.subr.mxu0 0.0
    %1203 = vmatpush1.msra.mxu0 %v338
    %1204 = vmatprep.subr.mxu0 0.0
    %1205 = vmatpush1.msra.mxu0 %v339
    %1206 = vmatprep.subr.mxu0 0.0
    %1207 = vmatpush1.msra.mxu0 %v340
    %1208 = vmatprep.subr.mxu0 0.0
    %1209 = vmatpush1.msra.mxu0 %v341
    %1210 = vmatprep.subr.mxu0 0.0
    %1211 = vmatpush1.msra.mxu0 %v342
    %1212 = vmatprep.subr.mxu0 0.0
    %1213 = vmatpush1.msra.mxu0 %v343
    %1214 = vmatprep.subr.mxu0 0.0
    %1215 = vmatpush1.msra.mxu0 %v344
    %1216 = vmatprep.subr.mxu0 0.0
    %1217 = vmatpush1.msra.mxu0 %v345
    %1218 = vmatprep.subr.mxu0 0.0
    %1219 = vmatpush1.msra.mxu0 %v346
    %1220 = vmatprep.mubr.f32.mxu0 %v484
    %1221 = vmatmul.mubr.f32.gmra.mrb[0].mxu0 %v482
    %v1222 = vpop.f32.mrb[0].mxu0
    %v1223 = vadd.f32 %v1153, %v1222
    %v1224 = vpop.f32.mrb[0].mxu0
    %1225 = vdwg.mxu0
    %1226 = vmatprep.subr.mxu0 0.0
    %1227 = vmatpush1.msra.mxu0 %v347
    %1228 = vmatprep.subr.mxu0 0.0
    %1229 = vmatpush1.msra.mxu0 %v348
    %1230 = vmatprep.subr.mxu0 0.0
    %1231 = vmatpush1.msra.mxu0 %v349
    %1232 = vmatprep.subr.mxu0 0.0
    %1233 = vmatpush1.msra.mxu0 %v350
    %1234 = vmatprep.subr.mxu0 0.0
    %1235 = vmatpush1.msra.mxu0 %v351
    %1236 = vmatprep.subr.mxu0 0.0
    %1237 = vmatpush1.msra.mxu0 %v352
    %1238 = vmatprep.subr.mxu0 0.0
    %1239 = vmatpush1.msra.mxu0 %v353
    %1240 = vmatprep.subr.mxu0 0.0
    %1241 = vmatpush1.msra.mxu0 %v354
    %1242 = vmatprep.subr.mxu0 0.0
    %1243 = vmatpush1.msra.mxu0 %v355
    %1244 = vmatprep.subr.mxu0 0.0
    %1245 = vmatpush1.msra.mxu0 %v356
    %1246 = vmatprep.subr.mxu0 0.0
    %1247 = vmatpush1.msra.mxu0 %v357
    %1248 = vmatprep.subr.mxu0 0.0
    %1249 = vmatpush1.msra.mxu0 %v358
    %1250 = vmatprep.subr.mxu0 0.0
    %1251 = vmatpush1.msra.mxu0 %v359
    %1252 = vmatprep.subr.mxu0 0.0
    %1253 = vmatpush1.msra.mxu0 %v360
    %1254 = vmatprep.subr.mxu0 0.0
    %1255 = vmatpush1.msra.mxu0 %v361
    %1256 = vmatprep.subr.mxu0 0.0
    %1257 = vmatpush1.msra.mxu0 %v362
    %1258 = vmatprep.subr.mxu0 0.0
    %1259 = vmatpush1.msra.mxu0 %v363
    %1260 = vmatprep.subr.mxu0 0.0
    %1261 = vmatpush1.msra.mxu0 %v364
    %1262 = vmatprep.subr.mxu0 0.0
    %1263 = vmatpush1.msra.mxu0 %v365
    %1264 = vmatprep.subr.mxu0 0.0
    %1265 = vmatpush1.msra.mxu0 %v366
    %1266 = vmatprep.subr.mxu0 0.0
    %1267 = vmatpush1.msra.mxu0 %v367
    %1268 = vmatprep.subr.mxu0 0.0
    %1269 = vmatpush1.msra.mxu0 %v368
    %1270 = vmatprep.subr.mxu0 0.0
    %1271 = vmatpush1.msra.mxu0 %v369
    %1272 = vmatprep.subr.mxu0 0.0
    %1273 = vmatpush1.msra.mxu0 %v370
    %1274 = vmatprep.subr.mxu0 0.0
    %1275 = vmatpush1.msra.mxu0 %v371
    %1276 = vmatprep.subr.mxu0 0.0
    %1277 = vmatpush1.msra.mxu0 %v372
    %1278 = vmatprep.subr.mxu0 0.0
    %1279 = vmatpush1.msra.mxu0 %v373
    %1280 = vmatprep.subr.mxu0 0.0
    %1281 = vmatpush1.msra.mxu0 %v374
    %1282 = vmatprep.subr.mxu0 0.0
    %1283 = vmatpush1.msra.mxu0 %v375
    %1284 = vmatprep.subr.mxu0 0.0
    %1285 = vmatpush1.msra.mxu0 %v376
    %1286 = vmatprep.subr.mxu0 0.0
    %1287 = vmatpush1.msra.mxu0 %v377
    %1288 = vmatprep.subr.mxu0 0.0
    %1289 = vmatpush1.msra.mxu0 %v378
    %1290 = vmatprep.mubr.f32.mxu0 %v500
    %1291 = vmatmul.mubr.f32.gmra.mrb[0].mxu0 %v492
    %v1292 = vpop.f32.mrb[0].mxu0
    %v1293 = vadd.f32 %v1223, %v1292
    %v1294 = vpop.f32.mrb[0].mxu0
    %1295 = vdwg.mxu0
    %1296 = vmatprep.subr.mxu0 0.0
    %1297 = vmatpush1.msra.mxu0 %v379
    %1298 = vmatprep.subr.mxu0 0.0
    %1299 = vmatpush1.msra.mxu0 %v380
    %1300 = vmatprep.subr.mxu0 0.0
    %1301 = vmatpush1.msra.mxu0 %v381
    %1302 = vmatprep.subr.mxu0 0.0
    %1303 = vmatpush1.msra.mxu0 %v382
    %1304 = vmatprep.subr.mxu0 0.0
    %1305 = vmatpush1.msra.mxu0 %v383
    %1306 = vmatprep.subr.mxu0 0.0
    %1307 = vmatpush1.msra.mxu0 %v384
    %1308 = vmatprep.subr.mxu0 0.0
    %1309 = vmatpush1.msra.mxu0 %v385
    %1310 = vmatprep.subr.mxu0 0.0
    %1311 = vmatpush1.msra.mxu0 %v386
    %1312 = vmatprep.subr.mxu0 0.0
    %1313 = vmatpush1.msra.mxu0 0.0
    %1314 = vmatprep.subr.mxu0 0.0
    %1315 = vmatpush1.msra.mxu0 0.0
    %1316 = vmatprep.subr.mxu0 0.0
    %1317 = vmatpush1.msra.mxu0 0.0
    %1318 = vmatprep.subr.mxu0 0.0
    %1319 = vmatpush1.msra.mxu0 0.0
    %1320 = vmatprep.subr.mxu0 0.0
    %1321 = vmatpush1.msra.mxu0 0.0
    %1322 = vmatprep.subr.mxu0 0.0
    %1323 = vmatpush1.msra.mxu0 0.0
    %1324 = vmatprep.subr.mxu0 0.0
    %1325 = vmatpush1.msra.mxu0 0.0
    %1326 = vmatprep.subr.mxu0 0.0
    %1327 = vmatpush1.msra.mxu0 0.0
    %1328 = vmatprep.subr.mxu0 0.0
    %1329 = vmatpush1.msra.mxu0 0.0
    %1330 = vmatprep.subr.mxu0 0.0
    %1331 = vmatpush1.msra.mxu0 0.0
    %1332 = vmatprep.subr.mxu0 0.0
    %1333 = vmatpush1.msra.mxu0 0.0
    %1334 = vmatprep.subr.mxu0 0.0
    %1335 = vmatpush1.msra.mxu0 0.0
    %1336 = vmatprep.subr.mxu0 0.0
    %1337 = vmatpush1.msra.mxu0 0.0
    %1338 = vmatprep.subr.mxu0 0.0
    %1339 = vmatpush1.msra.mxu0 0.0
    %1340 = vmatprep.subr.mxu0 0.0
    %1341 = vmatpush1.msra.mxu0 0.0
    %1342 = vmatprep.subr.mxu0 0.0
    %1343 = vmatpush1.msra.mxu0 0.0
    %1344 = vmatprep.subr.mxu0 0.0
    %1345 = vmatpush1.msra.mxu0 0.0
    %1346 = vmatprep.subr.mxu0 0.0
    %1347 = vmatpush1.msra.mxu0 0.0
    %1348 = vmatprep.subr.mxu0 0.0
    %1349 = vmatpush1.msra.mxu0 0.0
    %1350 = vmatprep.subr.mxu0 0.0
    %1351 = vmatpush1.msra.mxu0 0.0
    %1352 = vmatprep.subr.mxu0 0.0
    %1353 = vmatpush1.msra.mxu0 0.0
    %1354 = vmatprep.subr.mxu0 0.0
    %1355 = vmatpush1.msra.mxu0 0.0
    %1356 = vmatprep.subr.mxu0 0.0
    %1357 = vmatpush1.msra.mxu0 0.0
    %1358 = vmatprep.subr.mxu0 0.0
    %1359 = vmatpush1.msra.mxu0 0.0
    %1360 = vmatprep.mubr.f32.mxu0 0.0
    %1361 = vmatmul.mubr.f32.gmra.mrb[0].mxu0 %v524
    %v1362 = vpop.f32.mrb[0].mxu0
    %v1363 = vadd.f32 %v1293, %v1362
    %v1364 = vpop.f32.mrb[0].mxu0
    %1365 = vdwg.mxu0
    %v1366 = vmax.f32 %v1363, 0.0
    %v1367 = vld [vmem:[%s3] sm:$0xff]
    %v1368 = vld [vmem:[%s3 + $0x8] sm:$0xff]
    %v1369 = vld [vmem:[%s3 + $0x10] sm:$0xff]
    %v1370 = vld [vmem:[%s3 + $0x18] sm:$0xff]
    %v1371 = vld [vmem:[%s3 + $0x20] sm:$0xff]
    %v1372 = vld [vmem:[%s3 + $0x28] sm:$0xff]
    %v1373 = vld [vmem:[%s3 + $0x30] sm:$0xff]
    %v1374 = vld [vmem:[%s3 + $0x38] sm:$0xff]
    %v1375 = vld [vmem:[%s4] sm:$0x1]
    %v1377 = vlaneseq
    %v1378 = vshrl.u32 %v1377, 7
    %v1379 = vsub.s32 0, %v1378
    %v1380 = vrot.slane %v1375, %v1379
    %v1383 = vsel %vm523, %v1366, 0
    %1385 = vmatprep.subr.mxu0 0.0
    %1386 = vmatpush1.msra.mxu0 %v1367
    %1387 = vmatprep.subr.mxu0 0.0
    %1388 = vmatpush1.msra.mxu0 %v1368
    %1389 = vmatprep.subr.mxu0 0.0
    %1390 = vmatpush1.msra.mxu0 %v1369
    %1391 = vmatprep.subr.mxu0 0.0
    %1392 = vmatpush1.msra.mxu0 %v1370
    %1393 = vmatprep.subr.mxu0 0.0
    %1394 = vmatpush1.msra.mxu0 %v1371
    %1395 = vmatprep.subr.mxu0 0.0
    %1396 = vmatpush1.msra.mxu0 %v1372
    %1397 = vmatprep.subr.mxu0 0.0
    %1398 = vmatpush1.msra.mxu0 %v1373
    %1399 = vmatprep.subr.mxu0 0.0
    %1400 = vmatpush1.msra.mxu0 %v1374
    %1401 = vmatprep.subr.mxu0 0.0
    %1402 = vmatpush1.msra.mxu0 0.0
    %1403 = vmatprep.subr.mxu0 0.0
    %1404 = vmatpush1.msra.mxu0 0.0
    %1405 = vmatprep.subr.mxu0 0.0
    %1406 = vmatpush1.msra.mxu0 0.0
    %1407 = vmatprep.subr.mxu0 0.0
    %1408 = vmatpush1.msra.mxu0 0.0
    %1409 = vmatprep.subr.mxu0 0.0
    %1410 = vmatpush1.msra.mxu0 0.0
    %1411 = vmatprep.subr.mxu0 0.0
    %1412 = vmatpush1.msra.mxu0 0.0
    %1413 = vmatprep.subr.mxu0 0.0
    %1414 = vmatpush1.msra.mxu0 0.0
    %1415 = vmatprep.subr.mxu0 0.0
    %1416 = vmatpush1.msra.mxu0 0.0
    %1417 = vmatprep.subr.mxu0 0.0
    %1418 = vmatpush1.msra.mxu0 0.0
    %1419 = vmatprep.subr.mxu0 0.0
    %1420 = vmatpush1.msra.mxu0 0.0
    %1421 = vmatprep.subr.mxu0 0.0
    %1422 = vmatpush1.msra.mxu0 0.0
    %1423 = vmatprep.subr.mxu0 0.0
    %1424 = vmatpush1.msra.mxu0 0.0
    %1425 = vmatprep.subr.mxu0 0.0
    %1426 = vmatpush1.msra.mxu0 0.0
    %1427 = vmatprep.subr.mxu0 0.0
    %1428 = vmatpush1.msra.mxu0 0.0
    %1429 = vmatprep.subr.mxu0 0.0
    %1430 = vmatpush1.msra.mxu0 0.0
    %1431 = vmatprep.subr.mxu0 0.0
    %1432 = vmatpush1.msra.mxu0 0.0
    %1433 = vmatprep.subr.mxu0 0.0
    %1434 = vmatpush1.msra.mxu0 0.0
    %1435 = vmatprep.subr.mxu0 0.0
    %1436 = vmatpush1.msra.mxu0 0.0
    %1437 = vmatprep.subr.mxu0 0.0
    %1438 = vmatpush1.msra.mxu0 0.0
    %1439 = vmatprep.subr.mxu0 0.0
    %1440 = vmatpush1.msra.mxu0 0.0
    %1441 = vmatprep.subr.mxu0 0.0
    %1442 = vmatpush1.msra.mxu0 0.0
    %1443 = vmatprep.subr.mxu0 0.0
    %1444 = vmatpush1.msra.mxu0 0.0
    %1445 = vmatprep.subr.mxu0 0.0
    %1446 = vmatpush1.msra.mxu0 0.0
    %1447 = vmatprep.subr.mxu0 0.0
    %1448 = vmatpush1.msra.mxu0 0.0
    %1449 = vmatprep.mubr.f32.mxu0 0.0
    %1450 = vmatmul.mubr.f32.gmra.mrb[0].mxu0 %v1383
    %v1451 = vpop.f32.mrb[0].mxu0
    %v1452 = vadd.f32 %v1380, %v1451
    %v1453 = vpop.f32.mrb[0].mxu0
    %1454 = vdwg.mxu0
    %vm1455 = vcmask 74752
    %1456 = vst.msk [vmem:[#allocation2] sm:$0x3] %vm1455, %v1452
    // Predicated region
    $region22: #{simple_cnn_forward.3} parent=1 // pred_check
      _
    $region23: #{simple_cnn_forward.3} parent=1 // pred_check_branch
      %1458 = sbr.rel (0) target = $region25
    $region24: #{simple_cnn_forward.3} parent=1 // pred_region
      %s1460 = ssub.s32 32, 32
      %1461 = vsyncadd [#allocation3], %s1460
      %s1463 = sshll.u32 [#allocation2], 4
      %s1464 = int_to_ptr.vmem [resolvable:$true] %s1463
      %1466 = dma.vmem_to_hbm [thread:$0]  %s1464, 32, %s5, [#allocation3]
    $region25: #{simple_cnn_forward.3} parent=1 // pred_fallthru
      _
    // Predicated region
    $region26: #{simple_cnn_forward.3} parent=1 // pred_check
      _
    $region27: #{simple_cnn_forward.3} parent=1 // pred_check_branch
      %1468 = sbr.rel (0) target = $region29
    $region28: #{simple_cnn_forward.3} parent=1 // pred_region
      %1469 = dma.done [#allocation3], 32
    $region29: #{simple_cnn_forward.3} parent=1 // pred_fallthru
      _
    %1470 = vsyncpa [#allocation3], 1

// kernel: simple_cnn_forward.2
$region0: #{simple_cnn_forward.2}
  #allocation0 [shape = 'u32[]', space=smem, size = 0x4, offset = 0x4, fixed_abs, tag = 'smem constant byte address 0x4 - core index']
  #allocation1 [shape = 'u32[144,128]{1,0:T(1,128)}', space=vmem, size = 0x12000, scoped, tag = 'internal scratch']
  %s0 = inlined_call_operand.vmem [shape: f32[2,4,11,46], index: 0, kind: input, shape index: {}]
  %s1 = inlined_call_operand.hbm [shape: f32[138,704], index: 1, kind: input, shape index: {}]
  %s2 = inlined_call_operand.hbm [shape: f32[1,352], index: 2, kind: input, shape index: {}]
  %s3 = inlined_call_operand.hbm [shape: f32[1056,640], index: 3, kind: input, shape index: {}]
  %s4 = inlined_call_operand.hbm [shape: f32[1,320], index: 4, kind: input, shape index: {}]
  %s5 = inlined_call_operand.vmem [shape: f32[2,9,320], index: 5, kind: output, shape index: {}]
  %s6 = sld [smem:[#allocation0]]
  $region69: #{simple_cnn_forward.2} parent=0
    _
  %s8 = ssub.s32 1, %s6
  %s9 = scalar_select 0, %s8, %s6
  $region1: #{simple_cnn_forward.2} parent=0
    #allocation2 [shape = 'u8[442368]{0}', space=vmem, size = 0x6c000, scoped, tag = 'input window, operand 1, single buffered']
    #allocation3 [shape = 's32[2]{0}', space=sflag, size = 0x8, scoped, tag = 'scoped memory for simple_cnn_forward.2']
    #allocation4 [shape = 'u8[1536]{0}', space=vmem, size = 0x800, scoped, tag = 'input window, operand 2, single buffered']
    #allocation5 [shape = 's32[1]{0}', space=sflag, size = 0x4, scoped, tag = 'scoped memory for simple_cnn_forward.2']
    #allocation6 [shape = 'u8[2703360]{0}', space=vmem, size = 0x294000, scoped, tag = 'input window, operand 3, single buffered']
    #allocation7 [shape = 'u8[1536]{0}', space=vmem, size = 0x800, scoped, tag = 'input window, operand 4, single buffered']
    #allocation8 [shape = 's32[1]{0}', space=sflag, size = 0x4, scoped, tag = 'scoped memory for simple_cnn_forward.2']
    %10 = vsyncpa [#allocation3], 0
    %11 = vsyncpa [#allocation5], 0
    %12 = vsyncpa [#allocation8], 0
    loop: start=0, step=1, limit=4
    $region2: #{simple_cnn_forward.2} parent=1 // loop_pre_header
      _
    $region3: #{simple_cnn_forward.2} parent=1 // loop_header
      %s14 = sphi 0, %s18
      %p15 = scmp.ge.s32.totalorder %s14, 4
      %s24 = sphi 0, %s26
      %s27 = sphi 0, %s24
      %s28 = sphi 0, %s27
      %s44 = sphi 0, %s28
      %s48 = sphi 0, %s48
      %s50 = sphi 0, %s48
      %s51 = sphi 0, %s50
      %s65 = sphi 0, %s51
      %s69 = sphi 0, %s69
      %s71 = sphi 0, %s69
      %s72 = sphi 0, %s71
      %s86 = sphi 0, %s72
      %s90 = sphi 0, %s90
      %s92 = sphi 0, %s90
      %s93 = sphi 0, %s92
      %s107 = sphi 0, %s93
      %s111 = sphi 0, %s111
      %s113 = sphi 0, %s111
      %s114 = sphi 0, %s113
      %s128 = sphi 0, %s114
      %s134 = sphi 0, %s136
      %s137 = sphi 0, %s134
      %s138 = sphi 0, %s137
      %s154 = sphi 0, %s138
    $region4: #{simple_cnn_forward.2} parent=1 // loop_header_branch
      %17 = sbr.rel (%p15) target = $region8
    $region5: #{simple_cnn_forward.2} parent=1 // loop_body
      %s19 = ssub.s32 %s14, 1
      %s20 = ssub.s32 %s14, 2
      %s21 = sadd.s32 %s14, 1
      %s22 = ssub.s32 %s14, %s21
      %p23 = scmp.eq.s32.totalorder %s22, 0
      %s25 = sadd.s32 %s24, 1
      %s26 = scalar_select %p23, %s24, %s25
      %p29 = pneg %p23
      %p30 = scmp.eq.s32.totalorder %s14, 1
      %p31 = por %p29, %p30
      %p32 = scmp.ne.s32.totalorder %s24, %s27
      %p33 = scmp.eq.s32.totalorder %s14, 0
      %p34 = por %p32, %p33
      %p35 = scmp.ne.s32.totalorder %s24, %s27
      %p36 = scmp.eq.s32.totalorder %s19, 1
      %p37 = por %p35, %p36
      %p38 = scmp.ne.s32.totalorder %s27, %s28
      %p39 = scmp.eq.s32.totalorder %s19, 0
      %p40 = por %p38, %p39
      %p41 = scmp.ne.s32.totalorder %s27, %s28
      %p42 = scmp.eq.s32.totalorder %s20, 1
      %p43 = por %p41, %p42
      %p45 = scmp.ne.s32.totalorder %s28, %s44
      %p46 = scmp.eq.s32.totalorder %s20, 0
      %p47 = por %p45, %p46
      %s49 = sadd.s32 %s48, 1
      %p52 = scmp.eq.s32.totalorder %s14, 1
      %p53 = scmp.ne.s32.totalorder %s48, %s50
      %p54 = scmp.eq.s32.totalorder %s14, 0
      %p55 = por %p53, %p54
      %p56 = scmp.ne.s32.totalorder %s48, %s50
      %p57 = scmp.eq.s32.totalorder %s19, 1
      %p58 = por %p56, %p57
      %p59 = scmp.ne.s32.totalorder %s50, %s51
      %p60 = scmp.eq.s32.totalorder %s19, 0
      %p61 = por %p59, %p60
      %p62 = scmp.ne.s32.totalorder %s50, %s51
      %p63 = scmp.eq.s32.totalorder %s20, 1
      %p64 = por %p62, %p63
      %p66 = scmp.ne.s32.totalorder %s51, %s65
      %p67 = scmp.eq.s32.totalorder %s20, 0
      %p68 = por %p66, %p67
      %s70 = sadd.s32 %s69, 1
      %p73 = scmp.eq.s32.totalorder %s14, 1
      %p74 = scmp.ne.s32.totalorder %s69, %s71
      %p75 = scmp.eq.s32.totalorder %s14, 0
      %p76 = por %p74, %p75
      %p77 = scmp.ne.s32.totalorder %s69, %s71
      %p78 = scmp.eq.s32.totalorder %s19, 1
      %p79 = por %p77, %p78
      %p80 = scmp.ne.s32.totalorder %s71, %s72
      %p81 = scmp.eq.s32.totalorder %s19, 0
      %p82 = por %p80, %p81
      %p83 = scmp.ne.s32.totalorder %s71, %s72
      %p84 = scmp.eq.s32.totalorder %s20, 1
      %p85 = por %p83, %p84
      %p87 = scmp.ne.s32.totalorder %s72, %s86
      %p88 = scmp.eq.s32.totalorder %s20, 0
      %p89 = por %p87, %p88
      %s91 = sadd.s32 %s90, 1
      %p94 = scmp.eq.s32.totalorder %s14, 1
      %p95 = scmp.ne.s32.totalorder %s90, %s92
      %p96 = scmp.eq.s32.totalorder %s14, 0
      %p97 = por %p95, %p96
      %p98 = scmp.ne.s32.totalorder %s90, %s92
      %p99 = scmp.eq.s32.totalorder %s19, 1
      %p100 = por %p98, %p99
      %p101 = scmp.ne.s32.totalorder %s92, %s93
      %p102 = scmp.eq.s32.totalorder %s19, 0
      %p103 = por %p101, %p102
      %p104 = scmp.ne.s32.totalorder %s92, %s93
      %p105 = scmp.eq.s32.totalorder %s20, 1
      %p106 = por %p104, %p105
      %p108 = scmp.ne.s32.totalorder %s93, %s107
      %p109 = scmp.eq.s32.totalorder %s20, 0
      %p110 = por %p108, %p109
      %s112 = sadd.s32 %s111, 1
      %p115 = scmp.eq.s32.totalorder %s14, 1
      %p116 = scmp.ne.s32.totalorder %s111, %s113
      %p117 = scmp.eq.s32.totalorder %s14, 0
      %p118 = por %p116, %p117
      %p119 = scmp.ne.s32.totalorder %s111, %s113
      %p120 = scmp.eq.s32.totalorder %s19, 1
      %p121 = por %p119, %p120
      %p122 = scmp.ne.s32.totalorder %s113, %s114
      %p123 = scmp.eq.s32.totalorder %s19, 0
      %p124 = por %p122, %p123
      %p125 = scmp.ne.s32.totalorder %s113, %s114
      %p126 = scmp.eq.s32.totalorder %s20, 1
      %p127 = por %p125, %p126
      %p129 = scmp.ne.s32.totalorder %s114, %s128
      %p130 = scmp.eq.s32.totalorder %s20, 0
      %p131 = por %p129, %p130
      %s132 = ssub.s32 %s14, %s21
      %p133 = scmp.eq.s32.totalorder %s132, 0
      %s135 = sadd.s32 %s134, 1
      %s136 = scalar_select %p133, %s134, %s135
      %p139 = pneg %p133
      %p140 = scmp.eq.s32.totalorder %s14, 1
      %p141 = por %p139, %p140
      %p142 = scmp.ne.s32.totalorder %s134, %s137
      %p143 = scmp.eq.s32.totalorder %s14, 0
      %p144 = por %p142, %p143
      %p145 = scmp.ne.s32.totalorder %s134, %s137
      %p146 = scmp.eq.s32.totalorder %s19, 1
      %p147 = por %p145, %p146
      %p148 = scmp.ne.s32.totalorder %s137, %s138
      %p149 = scmp.eq.s32.totalorder %s19, 0
      %p150 = por %p148, %p149
      %p151 = scmp.ne.s32.totalorder %s137, %s138
      %p152 = scmp.eq.s32.totalorder %s20, 1
      %p153 = por %p151, %p152
      %p155 = scmp.ne.s32.totalorder %s138, %s154
      %p156 = scmp.eq.s32.totalorder %s20, 0
      %p157 = por %p155, %p156
      %p158 = scmp.le.s32.totalorder 1, %s14
      %p159 = scmp.lt.s32.totalorder %s14, 3
      %p160 = pnand %p158, %p159
      %p161 = pneg %p160
      // Predicated region
      $region9: #{simple_cnn_forward.2} parent=5 // pred_check
        _
      $region10: #{simple_cnn_forward.2} parent=5 // pred_check_branch
        %163 = sbr.rel (%p160) target = $region12
      $region11: #{simple_cnn_forward.2} parent=5 // pred_region
        %s164 = ssub.s32 %s14, 1
        // Predicated region
        $region13: #{simple_cnn_forward.2} parent=11 // pred_check
          %p165 = pneg %p61
        $region14: #{simple_cnn_forward.2} parent=11 // pred_check_branch
          %167 = sbr.rel (%p165) target = $region16
        $region15: #{simple_cnn_forward.2} parent=11 // pred_region
          %s169 = ssub.s32 13824, 13824
          %170 = vsyncadd [#allocation3], %s169
          %s171 = sshll.u32 [#allocation2], 4
          %s172 = int_to_ptr.vmem [resolvable:$true] %s171
          %177 = dma.hbm_to_vmem [thread:$0]  %s1, 13824, %s172, [#allocation3], 768, 768, 48
        $region16: #{simple_cnn_forward.2} parent=11 // pred_fallthru
          _
        // Predicated region
        $region17: #{simple_cnn_forward.2} parent=11 // pred_check
          %p178 = pneg %p82
        $region18: #{simple_cnn_forward.2} parent=11 // pred_check_branch
          %180 = sbr.rel (%p178) target = $region20
        $region19: #{simple_cnn_forward.2} parent=11 // pred_region
          %s182 = ssub.s32 48, 48
          %183 = vsyncadd [#allocation5], %s182
          %s185 = sshll.u32 [#allocation4], 4
          %s186 = int_to_ptr.vmem [resolvable:$true] %s185
          %188 = dma.hbm_to_vmem [thread:$0]  %s2, 48, %s186, [#allocation5]
        $region20: #{simple_cnn_forward.2} parent=11 // pred_fallthru
          _
        // Predicated region
        $region21: #{simple_cnn_forward.2} parent=11 // pred_check
          %p189 = pneg %p103
        $region22: #{simple_cnn_forward.2} parent=11 // pred_check_branch
          %191 = sbr.rel (%p189) target = $region24
        $region23: #{simple_cnn_forward.2} parent=11 // pred_region
          %s193 = ssub.s32 84480, 84480
          %194 = vsyncadd [#allocation5], %s193
          %s195 = sshll.u32 [#allocation6], 4
          %s196 = int_to_ptr.vmem [resolvable:$true] %s195
          %201 = dma.hbm_to_vmem [thread:$0]  %s3, 84480, %s196, [#allocation5], 640, 640, 40
        $region24: #{simple_cnn_forward.2} parent=11 // pred_fallthru
          _
        // Predicated region
        $region25: #{simple_cnn_forward.2} parent=11 // pred_check
          %p202 = pneg %p124
        $region26: #{simple_cnn_forward.2} parent=11 // pred_check_branch
          %204 = sbr.rel (%p202) target = $region28
        $region27: #{simple_cnn_forward.2} parent=11 // pred_region
          %s206 = ssub.s32 48, 48
          %207 = vsyncadd [#allocation8], %s206
          %s209 = sshll.u32 [#allocation7], 4
          %s210 = int_to_ptr.vmem [resolvable:$true] %s209
          %212 = dma.hbm_to_vmem [thread:$0]  %s4, 48, %s210, [#allocation8]
        $region28: #{simple_cnn_forward.2} parent=11 // pred_fallthru
          _
      $region12: #{simple_cnn_forward.2} parent=5 // pred_fallthru
        _
      %p213 = scmp.lt.s32.totalorder %s14, 2
      // Predicated region
      $region29: #{simple_cnn_forward.2} parent=5 // pred_check
        %p214 = pneg %p213
      $region30: #{simple_cnn_forward.2} parent=5 // pred_check_branch
        %216 = sbr.rel (%p214) target = $region32
      $region31: #{simple_cnn_forward.2} parent=5 // pred_region
        // Predicated region
        $region33: #{simple_cnn_forward.2} parent=31 // pred_check
          %p217 = pneg %p34
        $region34: #{simple_cnn_forward.2} parent=31 // pred_check_branch
          %219 = sbr.rel (%p217) target = $region36
        $region35: #{simple_cnn_forward.2} parent=31 // pred_region
          %p220 = scmp.lt.s32.totalorder %s14, 1
          %s221 = scalar_select %p220, %s14, 1
          %s222 = smul.addr %s221, 8
          %s223 = smul.addr %s222, 8
          %s224 = scalar_lea.vmem %s0, %s223
        $region36: #{simple_cnn_forward.2} parent=31 // pred_fallthru
          _
      $region32: #{simple_cnn_forward.2} parent=5 // pred_fallthru
        _
      %p225 = scmp.le.s32.totalorder 1, %s14
      %p226 = scmp.lt.s32.totalorder %s14, 3
      %p227 = pnand %p225, %p226
      %p228 = pneg %p227
      // Predicated region
      $region37: #{simple_cnn_forward.2} parent=5 // pred_check
        _
      $region38: #{simple_cnn_forward.2} parent=5 // pred_check_branch
        %230 = sbr.rel (%p227) target = $region40
      $region39: #{simple_cnn_forward.2} parent=5 // pred_region
        %s231 = ssub.s32 %s14, 1
        // Predicated region
        $region41: #{simple_cnn_forward.2} parent=39 // pred_check
          %p232 = pneg %p61
        $region42: #{simple_cnn_forward.2} parent=39 // pred_check_branch
          %234 = sbr.rel (%p232) target = $region44
        $region43: #{simple_cnn_forward.2} parent=39 // pred_region
          %235 = dma.done [#allocation3], 13824
        $region44: #{simple_cnn_forward.2} parent=39 // pred_fallthru
          _
        // Predicated region
        $region45: #{simple_cnn_forward.2} parent=39 // pred_check
          %p236 = pneg %p82
        $region46: #{simple_cnn_forward.2} parent=39 // pred_check_branch
          %238 = sbr.rel (%p236) target = $region48
        $region47: #{simple_cnn_forward.2} parent=39 // pred_region
          %239 = dma.done [#allocation5], 48
        $region48: #{simple_cnn_forward.2} parent=39 // pred_fallthru
          _
        // Predicated region
        $region49: #{simple_cnn_forward.2} parent=39 // pred_check
          %p240 = pneg %p103
        $region50: #{simple_cnn_forward.2} parent=39 // pred_check_branch
          %242 = sbr.rel (%p240) target = $region52
        $region51: #{simple_cnn_forward.2} parent=39 // pred_region
          %243 = dma.done [#allocation5], 84480
        $region52: #{simple_cnn_forward.2} parent=39 // pred_fallthru
          _
        // Predicated region
        $region53: #{simple_cnn_forward.2} parent=39 // pred_check
          %p244 = pneg %p124
        $region54: #{simple_cnn_forward.2} parent=39 // pred_check_branch
          %246 = sbr.rel (%p244) target = $region56
        $region55: #{simple_cnn_forward.2} parent=39 // pred_region
          %247 = dma.done [#allocation8], 48
        $region56: #{simple_cnn_forward.2} parent=39 // pred_fallthru
          _
        %p248 = scmp.lt.s32.totalorder %s19, 1
        %s249 = scalar_select %p248, %s19, 1
        %s250 = smul.addr %s249, 8
        %s251 = smul.addr %s250, 8
        %s252 = scalar_lea.vmem %s0, %s251
        %p253 = pneg %p40
        %p254 = pneg %p37
        %p255 = pneg %p61
        %p256 = pneg %p58
        %p257 = pneg %p82
        %p258 = pneg %p79
        %p259 = pneg %p103
        %p260 = pneg %p100
        %p261 = pneg %p124
        %p262 = pneg %p121
        %p263 = pneg %p150
        %p264 = pneg %p147
        %p265 = scmp.lt.s32.totalorder %s19, 1
        %s266 = scalar_select %p265, %s19, 1
        %s267 = smul.addr %s266, 6
        %s268 = smul.addr %s267, 8
        %s269 = scalar_lea.vmem %s5, %s268
        %p270 = scmp.lt.s32.totalorder %s19, 1
        %s271 = scalar_select %p270, %s19, 1
        %s272 = smul.addr %s271, 8
        %s273 = smul.addr %s272, 8
        %s274 = scalar_lea.vmem %s0, %s273
        %p275 = scmp.lt.s32.totalorder %s19, 1
        %s276 = scalar_select %p275, %s19, 1
        %s277 = smul.addr %s276, 6
        %s278 = smul.addr %s277, 8
        %s279 = scalar_lea.vmem %s5, %s278
        %v280 = vld [vmem:[%s274] sm:$0xff]
        %v281 = vld [vmem:[%s274 + $0x8] sm:$0x3]
        %s282 = scalar_lea.vmem %s274, 16
        %v283 = vld [vmem:[%s282] sm:$0xff]
        %v284 = vld [vmem:[%s282 + $0x8] sm:$0x3]
        %s285 = scalar_lea.vmem %s274, 32
        %v286 = vld [vmem:[%s285] sm:$0xff]
        %v287 = vld [vmem:[%s285 + $0x8] sm:$0x3]
        %290 = vrot.lane.b32.xlu0 %v283, 46
        %v291 = vpop.permute.xlu0 %290
        %292 = vrot.lane.b32.xlu0 %v284, 46
        %v293 = vpop.permute.xlu0 %292
        %298 = vrot.lane.b32.xlu0 %v286, 92
        %v299 = vpop.permute.xlu0 %298
        %300 = vrot.lane.b32.xlu0 %v287, 92
        %v301 = vpop.permute.xlu0 %300
        %vm304 = vcmask 375808
        %v305 = vsel %vm304, %v280, %v291
        %v306 = vsel %vm304, %v281, %v293
        %vm307 = vcmask 752640
        %v308 = vsel %vm307, %v305, %v299
        %v309 = vsel %vm307, %v306, %v301
        %s310 = scalar_lea.vmem %s274, 48
        %v311 = vld [vmem:[%s310] sm:$0xff]
        %v312 = vld [vmem:[%s310 + $0x8] sm:$0x3]
        %313 = vrot.lane.b32.xlu0 %v286, 46
        %v314 = vpop.permute.xlu0 %313
        %315 = vrot.lane.b32.xlu0 %v287, 46
        %v316 = vpop.permute.xlu0 %315
        %321 = vrot.lane.b32.xlu0 %v311, 92
        %v322 = vpop.permute.xlu0 %321
        %323 = vrot.lane.b32.xlu0 %v312, 92
        %v324 = vpop.permute.xlu0 %323
        %v327 = vsel %vm304, %v283, %v314
        %v328 = vsel %vm304, %v284, %v316
        %v329 = vsel %vm307, %v327, %v322
        %v330 = vsel %vm307, %v328, %v324
        %v331 = vld [vmem:[%s274 + $0x1] sm:$0xff]
        %v332 = vld [vmem:[%s274 + $0x9] sm:$0x3]
        %333 = vrot.lane.b32.xlu0 %v311, 46
        %v334 = vpop.permute.xlu0 %333
        %335 = vrot.lane.b32.xlu0 %v312, 46
        %v336 = vpop.permute.xlu0 %335
        %341 = vrot.lane.b32.xlu0 %v331, 92
        %v342 = vpop.permute.xlu0 %341
        %343 = vrot.lane.b32.xlu0 %v332, 92
        %v344 = vpop.permute.xlu0 %343
        %v347 = vsel %vm304, %v286, %v334
        %v348 = vsel %vm304, %v287, %v336
        %v349 = vsel %vm307, %v347, %v342
        %v350 = vsel %vm307, %v348, %v344
        %v351 = vld [vmem:[%s282 + $0x1] sm:$0xff]
        %v352 = vld [vmem:[%s282 + $0x9] sm:$0x3]
        %353 = vrot.lane.b32.xlu0 %v331, 46
        %v354 = vpop.permute.xlu0 %353
        %355 = vrot.lane.b32.xlu0 %v332, 46
        %v356 = vpop.permute.xlu0 %355
        %361 = vrot.lane.b32.xlu0 %v351, 92
        %v362 = vpop.permute.xlu0 %361
        %363 = vrot.lane.b32.xlu0 %v352, 92
        %v364 = vpop.permute.xlu0 %363
        %v367 = vsel %vm304, %v311, %v354
        %v368 = vsel %vm304, %v312, %v356
        %v369 = vsel %vm307, %v367, %v362
        %v370 = vsel %vm307, %v368, %v364
        %vm373 = vcmask 1041408
        %v374 = vrot.slane %v329, 6
        %v375 = vrot.slane %v322, 6
        %v376 = vrot.slane %v330, 6
        %v377 = vsel %vm373, %v374, %v376
        %v378 = vrot.slane %v324, 6
        %v379 = vsel %vm373, %v375, %v378
        %vm386 = vcmask 1043456
        %v387 = vrot.slane %v349, 4
        %v388 = vrot.slane %v342, 4
        %v389 = vrot.slane %v350, 4
        %v390 = vsel %vm386, %v387, %v389
        %v391 = vrot.slane %v344, 4
        %v392 = vsel %vm386, %v388, %v391
        %vm399 = vcmask 1045504
        %v400 = vrot.slane %v369, 2
        %v401 = vrot.slane %v362, 2
        %v402 = vrot.slane %v370, 2
        %v403 = vsel %vm399, %v400, %v402
        %v404 = vrot.slane %v364, 2
        %v405 = vsel %vm399, %v401, %v404
        %v409 = vsel %vm373, %v309, %v374
        %v410 = vsel %vm373, %v301, %v375
        %v411 = vsel %vm386, %v377, %v387
        %v412 = vsel %vm386, %v379, %v388
        %v413 = vsel %vm399, %v390, %v400
        %v414 = vsel %vm399, %v392, %v401
        %v415 = vld [vmem:[#allocation2] sm:$0xff]
        %v416 = vld [vmem:[#allocation2 + $0x8] sm:$0xff]
        %v417 = vld [vmem:[#allocation2 + $0x10] sm:$0xff]
        %v418 = vld [vmem:[#allocation2 + $0x18] sm:$0xff]
        %v419 = vld [vmem:[#allocation2 + $0x20] sm:$0xff]
        %v420 = vld [vmem:[#allocation2 + $0x28] sm:$0xff]
        %v421 = vld [vmem:[#allocation2 + $0x30] sm:$0xff]
        %v422 = vld [vmem:[#allocation2 + $0x38] sm:$0xff]
        %v423 = vld [vmem:[#allocation2 + $0x40] sm:$0xff]
        %v424 = vld [vmem:[#allocation2 + $0x48] sm:$0xff]
        %v425 = vld [vmem:[#allocation2 + $0x50] sm:$0xff]
        %v426 = vld [vmem:[#allocation2 + $0x58] sm:$0xff]
        %v427 = vld [vmem:[#allocation2 + $0x60] sm:$0xff]
        %v428 = vld [vmem:[#allocation2 + $0x68] sm:$0xff]
        %v429 = vld [vmem:[#allocation2 + $0x70] sm:$0xff]
        %v430 = vld [vmem:[#allocation2 + $0x78] sm:$0xff]
        %v431 = vld [vmem:[#allocation2 + $0x80] sm:$0xff]
        %v432 = vld [vmem:[#allocation2 + $0x88] sm:$0xff]
        %v433 = vld [vmem:[#allocation2 + $0x90] sm:$0xff]
        %v434 = vld [vmem:[#allocation2 + $0x98] sm:$0xff]
        %v435 = vld [vmem:[#allocation2 + $0xa0] sm:$0xff]
        %v436 = vld [vmem:[#allocation2 + $0xa8] sm:$0xff]
        %v437 = vld [vmem:[#allocation2 + $0xb0] sm:$0xff]
        %v438 = vld [vmem:[#allocation2 + $0xb8] sm:$0xff]
        %v439 = vld [vmem:[#allocation2 + $0xc0] sm:$0xff]
        %v440 = vld [vmem:[#allocation2 + $0xc8] sm:$0xff]
        %v441 = vld [vmem:[#allocation2 + $0xd0] sm:$0xff]
        %v442 = vld [vmem:[#allocation2 + $0xd8] sm:$0xff]
        %v443 = vld [vmem:[#allocation2 + $0xe0] sm:$0xff]
        %v444 = vld [vmem:[#allocation2 + $0xe8] sm:$0xff]
        %v445 = vld [vmem:[#allocation2 + $0xf0] sm:$0xff]
        %v446 = vld [vmem:[#allocation2 + $0xf8] sm:$0xff]
        %v447 = vld [vmem:[#allocation2 + $0x100] sm:$0xff]
        %v448 = vld [vmem:[#allocation2 + $0x108] sm:$0xff]
        %v449 = vld [vmem:[#allocation2 + $0x110] sm:$0xff]
        %v450 = vld [vmem:[#allocation2 + $0x118] sm:$0xff]
        %v451 = vld [vmem:[#allocation2 + $0x120] sm:$0xff]
        %v452 = vld [vmem:[#allocation2 + $0x128] sm:$0xff]
        %v453 = vld [vmem:[#allocation2 + $0x130] sm:$0xff]
        %v454 = vld [vmem:[#allocation2 + $0x138] sm:$0xff]
        %v455 = vld [vmem:[#allocation2 + $0x140] sm:$0xff]
        %v456 = vld [vmem:[#allocation2 + $0x148] sm:$0xff]
        %v457 = vld [vmem:[#allocation2 + $0x150] sm:$0xff]
        %v458 = vld [vmem:[#allocation2 + $0x158] sm:$0xff]
        %v459 = vld [vmem:[#allocation2 + $0x160] sm:$0xff]
        %v460 = vld [vmem:[#allocation2 + $0x168] sm:$0xff]
        %v461 = vld [vmem:[#allocation2 + $0x170] sm:$0xff]
        %v462 = vld [vmem:[#allocation2 + $0x178] sm:$0xff]
        %v463 = vld [vmem:[#allocation2 + $0x180] sm:$0xff]
        %v464 = vld [vmem:[#allocation2 + $0x188] sm:$0xff]
        %v465 = vld [vmem:[#allocation2 + $0x190] sm:$0xff]
        %v466 = vld [vmem:[#allocation2 + $0x198] sm:$0xff]
        %v467 = vld [vmem:[#allocation2 + $0x1a0] sm:$0xff]
        %v468 = vld [vmem:[#allocation2 + $0x1a8] sm:$0xff]
        %v469 = vld [vmem:[#allocation2 + $0x1b0] sm:$0xff]
        %v470 = vld [vmem:[#allocation2 + $0x1b8] sm:$0xff]
        %v471 = vld [vmem:[#allocation2 + $0x1c0] sm:$0xff]
        %v472 = vld [vmem:[#allocation2 + $0x1c8] sm:$0xff]
        %v473 = vld [vmem:[#allocation2 + $0x1d0] sm:$0xff]
        %v474 = vld [vmem:[#allocation2 + $0x1d8] sm:$0xff]
        %v475 = vld [vmem:[#allocation2 + $0x1e0] sm:$0xff]
        %v476 = vld [vmem:[#allocation2 + $0x1e8] sm:$0xff]
        %v477 = vld [vmem:[#allocation2 + $0x1f0] sm:$0xff]
        %v478 = vld [vmem:[#allocation2 + $0x1f8] sm:$0xff]
        %v479 = vld [vmem:[#allocation2 + $0x200] sm:$0xff]
        %v480 = vld [vmem:[#allocation2 + $0x208] sm:$0xff]
        %v481 = vld [vmem:[#allocation2 + $0x210] sm:$0xff]
        %v482 = vld [vmem:[#allocation2 + $0x218] sm:$0xff]
        %v483 = vld [vmem:[#allocation2 + $0x220] sm:$0xff]
        %v484 = vld [vmem:[#allocation2 + $0x228] sm:$0xff]
        %v485 = vld [vmem:[#allocation2 + $0x230] sm:$0xff]
        %v486 = vld [vmem:[#allocation2 + $0x238] sm:$0xff]
        %v487 = vld [vmem:[#allocation2 + $0x240] sm:$0xff]
        %v488 = vld [vmem:[#allocation2 + $0x248] sm:$0xff]
        %v489 = vld [vmem:[#allocation2 + $0x250] sm:$0xff]
        %v490 = vld [vmem:[#allocation2 + $0x258] sm:$0xff]
        %v491 = vld [vmem:[#allocation2 + $0x260] sm:$0xff]
        %v492 = vld [vmem:[#allocation2 + $0x268] sm:$0xff]
        %v493 = vld [vmem:[#allocation2 + $0x270] sm:$0xff]
        %v494 = vld [vmem:[#allocation2 + $0x278] sm:$0xff]
        %v495 = vld [vmem:[#allocation2 + $0x280] sm:$0xff]
        %v496 = vld [vmem:[#allocation2 + $0x288] sm:$0xff]
        %v497 = vld [vmem:[#allocation2 + $0x290] sm:$0xff]
        %v498 = vld [vmem:[#allocation2 + $0x298] sm:$0xff]
        %v499 = vld [vmem:[#allocation2 + $0x2a0] sm:$0xff]
        %v500 = vld [vmem:[#allocation2 + $0x2a8] sm:$0xff]
        %v501 = vld [vmem:[#allocation2 + $0x2b0] sm:$0xff]
        %v502 = vld [vmem:[#allocation2 + $0x2b8] sm:$0xff]
        %v503 = vld [vmem:[#allocation2 + $0x2c0] sm:$0xff]
        %v504 = vld [vmem:[#allocation2 + $0x2c8] sm:$0xff]
        %v505 = vld [vmem:[#allocation2 + $0x2d0] sm:$0xff]
        %v506 = vld [vmem:[#allocation2 + $0x2d8] sm:$0xff]
        %v507 = vld [vmem:[#allocation2 + $0x2e0] sm:$0xff]
        %v508 = vld [vmem:[#allocation2 + $0x2e8] sm:$0xff]
        %v509 = vld [vmem:[#allocation2 + $0x2f0] sm:$0xff]
        %v510 = vld [vmem:[#allocation2 + $0x2f8] sm:$0xff]
        %v511 = vld [vmem:[#allocation2 + $0x300] sm:$0xff]
        %v512 = vld [vmem:[#allocation2 + $0x308] sm:$0xff]
        %v513 = vld [vmem:[#allocation2 + $0x310] sm:$0xff]
        %v514 = vld [vmem:[#allocation2 + $0x318] sm:$0xff]
        %v515 = vld [vmem:[#allocation2 + $0x320] sm:$0xff]
        %v516 = vld [vmem:[#allocation2 + $0x328] sm:$0xff]
        %v517 = vld [vmem:[#allocation2 + $0x330] sm:$0x3]
        %v518 = vld [vmem:[#allocation2 + $0x338] sm:$0x3]
        %v519 = vld [vmem:[#allocation2 + $0x340] sm:$0x3]
        %v520 = vld [vmem:[#allocation2 + $0x348] sm:$0x3]
        %v521 = vld [vmem:[#allocation2 + $0x350] sm:$0x3]
        %v522 = vld [vmem:[#allocation2 + $0x358] sm:$0x3]
        %vm523 = vcmask 80896
        %v524 = vsel %vm523, %v299, 0
        %v527 = vsel %vm523, %v410, 0
        %v530 = vsel %vm523, %v412, 0
        %v533 = vsel %vm523, %v414, 0
        %v535 = vsel %vm523, %v405, 0
        %v538 = vsel %vm373, %v517, 0
        %v541 = vsel %vm373, %v518, 0
        %v544 = vsel %vm373, %v519, 0
        %v547 = vsel %vm373, %v520, 0
        %v550 = vsel %vm373, %v521, 0
        %v553 = vsel %vm373, %v522, 0
        %555 = vmatprep.subr.mxu0 %v416
        %556 = vmatpush1.msra.mxu0 %v415
        %557 = vmatprep.subr.mxu0 %v422
        %558 = vmatpush1.msra.mxu0 %v421
        %559 = vmatprep.subr.mxu0 %v428
        %560 = vmatpush1.msra.mxu0 %v427
        %561 = vmatprep.subr.mxu0 %v434
        %562 = vmatpush1.msra.mxu0 %v433
        %563 = vmatprep.subr.mxu0 %v440
        %564 = vmatpush1.msra.mxu0 %v439
        %565 = vmatprep.subr.mxu0 %v446
        %566 = vmatpush1.msra.mxu0 %v445
        %567 = vmatprep.subr.mxu0 %v452
        %568 = vmatpush1.msra.mxu0 %v451
        %569 = vmatprep.subr.mxu0 %v458
        %570 = vmatpush1.msra.mxu0 %v457
        %571 = vmatprep.subr.mxu0 %v464
        %572 = vmatpush1.msra.mxu0 %v463
        %573 = vmatprep.subr.mxu0 %v470
        %574 = vmatpush1.msra.mxu0 %v469
        %575 = vmatprep.subr.mxu0 %v476
        %576 = vmatpush1.msra.mxu0 %v475
        %577 = vmatprep.subr.mxu0 %v482
        %578 = vmatpush1.msra.mxu0 %v481
        %579 = vmatprep.subr.mxu0 %v488
        %580 = vmatpush1.msra.mxu0 %v487
        %581 = vmatprep.subr.mxu0 %v494
        %582 = vmatpush1.msra.mxu0 %v493
        %583 = vmatprep.subr.mxu0 %v500
        %584 = vmatpush1.msra.mxu0 %v499
        %585 = vmatprep.subr.mxu0 %v506
        %586 = vmatpush1.msra.mxu0 %v505
        %587 = vmatprep.subr.mxu0 %v512
        %588 = vmatpush1.msra.mxu0 %v511
        %589 = vmatprep.subr.mxu0 %v541
        %590 = vmatpush1.msra.mxu0 %v538
        %591 = vmatprep.subr.mxu0 0.0
        %592 = vmatpush1.msra.mxu0 0.0
        %593 = vmatprep.subr.mxu0 0.0
        %594 = vmatpush1.msra.mxu0 0.0
        %595 = vmatprep.subr.mxu0 0.0
        %596 = vmatpush1.msra.mxu0 0.0
        %597 = vmatprep.subr.mxu0 0.0
        %598 = vmatpush1.msra.mxu0 0.0
        %599 = vmatprep.subr.mxu0 0.0
        %600 = vmatpush1.msra.mxu0 0.0
        %601 = vmatprep.subr.mxu0 0.0
        %602 = vmatpush1.msra.mxu0 0.0
        %603 = vmatprep.subr.mxu0 0.0
        %604 = vmatpush1.msra.mxu0 0.0
        %605 = vmatprep.subr.mxu0 0.0
        %606 = vmatpush1.msra.mxu0 0.0
        %607 = vmatprep.subr.mxu0 0.0
        %608 = vmatpush1.msra.mxu0 0.0
        %609 = vmatprep.subr.mxu0 0.0
        %610 = vmatpush1.msra.mxu0 0.0
        %611 = vmatprep.subr.mxu0 0.0
        %612 = vmatpush1.msra.mxu0 0.0
        %613 = vmatprep.subr.mxu0 0.0
        %614 = vmatpush1.msra.mxu0 0.0
        %615 = vmatprep.subr.mxu0 0.0
        %616 = vmatpush1.msra.mxu0 0.0
        %617 = vmatprep.subr.mxu0 0.0
        %618 = vmatpush1.msra.mxu0 0.0
        %619 = vmatprep.mubr.f32.mxu0 %v524
        %620 = vmatmul.mubr.f32.gmra.mrb[0].mxu0 %v308
        %v621 = vpop.f32.mrb[0].mxu0
        %v622 = vadd.f32 0.0, %v621
        %v623 = vpop.f32.mrb[0].mxu0
        %v624 = vadd.f32 0.0, %v623
        %625 = vmatprep.mubr.f32.mxu0 %v527
        %626 = vmatmul.mubr.f32.gmra.mrb[0].mxu0 %v409
        %v627 = vpop.f32.mrb[0].mxu0
        %v628 = vadd.f32 0.0, %v627
        %v629 = vpop.f32.mrb[0].mxu0
        %v630 = vadd.f32 0.0, %v629
        %631 = vmatprep.mubr.f32.mxu0 %v530
        %632 = vmatmul.mubr.f32.gmra.mrb[0].mxu0 %v411
        %v633 = vpop.f32.mrb[0].mxu0
        %v634 = vadd.f32 0.0, %v633
        %v635 = vpop.f32.mrb[0].mxu0
        %v636 = vadd.f32 0.0, %v635
        %637 = vmatprep.mubr.f32.mxu0 %v533
        %638 = vmatmul.mubr.f32.gmra.mrb[0].mxu0 %v413
        %v639 = vpop.f32.mrb[0].mxu0
        %v640 = vadd.f32 0.0, %v639
        %v641 = vpop.f32.mrb[0].mxu0
        %v642 = vadd.f32 0.0, %v641
        %643 = vmatprep.mubr.f32.mxu0 %v535
        %644 = vmatmul.mubr.f32.gmra.mrb[0].mxu0 %v403
        %v645 = vpop.f32.mrb[0].mxu0
        %v646 = vadd.f32 0.0, %v645
        %v647 = vpop.f32.mrb[0].mxu0
        %v648 = vadd.f32 0.0, %v647
        %649 = vdwg.mxu0
        %650 = vmatprep.subr.mxu0 %v418
        %651 = vmatpush1.msra.mxu0 %v417
        %652 = vmatprep.subr.mxu0 %v424
        %653 = vmatpush1.msra.mxu0 %v423
        %654 = vmatprep.subr.mxu0 %v430
        %655 = vmatpush1.msra.mxu0 %v429
        %656 = vmatprep.subr.mxu0 %v436
        %657 = vmatpush1.msra.mxu0 %v435
        %658 = vmatprep.subr.mxu0 %v442
        %659 = vmatpush1.msra.mxu0 %v441
        %660 = vmatprep.subr.mxu0 %v448
        %661 = vmatpush1.msra.mxu0 %v447
        %662 = vmatprep.subr.mxu0 %v454
        %663 = vmatpush1.msra.mxu0 %v453
        %664 = vmatprep.subr.mxu0 %v460
        %665 = vmatpush1.msra.mxu0 %v459
        %666 = vmatprep.subr.mxu0 %v466
        %667 = vmatpush1.msra.mxu0 %v465
        %668 = vmatprep.subr.mxu0 %v472
        %669 = vmatpush1.msra.mxu0 %v471
        %670 = vmatprep.subr.mxu0 %v478
        %671 = vmatpush1.msra.mxu0 %v477
        %672 = vmatprep.subr.mxu0 %v484
        %673 = vmatpush1.msra.mxu0 %v483
        %674 = vmatprep.subr.mxu0 %v490
        %675 = vmatpush1.msra.mxu0 %v489
        %676 = vmatprep.subr.mxu0 %v496
        %677 = vmatpush1.msra.mxu0 %v495
        %678 = vmatprep.subr.mxu0 %v502
        %679 = vmatpush1.msra.mxu0 %v501
        %680 = vmatprep.subr.mxu0 %v508
        %681 = vmatpush1.msra.mxu0 %v507
        %682 = vmatprep.subr.mxu0 %v514
        %683 = vmatpush1.msra.mxu0 %v513
        %684 = vmatprep.subr.mxu0 %v547
        %685 = vmatpush1.msra.mxu0 %v544
        %686 = vmatprep.subr.mxu0 0.0
        %687 = vmatpush1.msra.mxu0 0.0
        %688 = vmatprep.subr.mxu0 0.0
        %689 = vmatpush1.msra.mxu0 0.0
        %690 = vmatprep.subr.mxu0 0.0
        %691 = vmatpush1.msra.mxu0 0.0
        %692 = vmatprep.subr.mxu0 0.0
        %693 = vmatpush1.msra.mxu0 0.0
        %694 = vmatprep.subr.mxu0 0.0
        %695 = vmatpush1.msra.mxu0 0.0
        %696 = vmatprep.subr.mxu0 0.0
        %697 = vmatpush1.msra.mxu0 0.0
        %698 = vmatprep.subr.mxu0 0.0
        %699 = vmatpush1.msra.mxu0 0.0
        %700 = vmatprep.subr.mxu0 0.0
        %701 = vmatpush1.msra.mxu0 0.0
        %702 = vmatprep.subr.mxu0 0.0
        %703 = vmatpush1.msra.mxu0 0.0
        %704 = vmatprep.subr.mxu0 0.0
        %705 = vmatpush1.msra.mxu0 0.0
        %706 = vmatprep.subr.mxu0 0.0
        %707 = vmatpush1.msra.mxu0 0.0
        %708 = vmatprep.subr.mxu0 0.0
        %709 = vmatpush1.msra.mxu0 0.0
        %710 = vmatprep.subr.mxu0 0.0
        %711 = vmatpush1.msra.mxu0 0.0
        %712 = vmatprep.subr.mxu0 0.0
        %713 = vmatpush1.msra.mxu0 0.0
        %714 = vmatprep.mubr.f32.mxu0 %v524
        %715 = vmatmul.mubr.f32.gmra.mrb[0].mxu0 %v308
        %v716 = vpop.f32.mrb[0].mxu0
        %v717 = vadd.f32 0.0, %v716
        %v718 = vpop.f32.mrb[0].mxu0
        %v719 = vadd.f32 0.0, %v718
        %720 = vmatprep.mubr.f32.mxu0 %v527
        %721 = vmatmul.mubr.f32.gmra.mrb[0].mxu0 %v409
        %v722 = vpop.f32.mrb[0].mxu0
        %v723 = vadd.f32 0.0, %v722
        %v724 = vpop.f32.mrb[0].mxu0
        %v725 = vadd.f32 0.0, %v724
        %726 = vmatprep.mubr.f32.mxu0 %v530
        %727 = vmatmul.mubr.f32.gmra.mrb[0].mxu0 %v411
        %v728 = vpop.f32.mrb[0].mxu0
        %v729 = vadd.f32 0.0, %v728
        %v730 = vpop.f32.mrb[0].mxu0
        %v731 = vadd.f32 0.0, %v730
        %732 = vmatprep.mubr.f32.mxu0 %v533
        %733 = vmatmul.mubr.f32.gmra.mrb[0].mxu0 %v413
        %v734 = vpop.f32.mrb[0].mxu0
        %v735 = vadd.f32 0.0, %v734
        %v736 = vpop.f32.mrb[0].mxu0
        %v737 = vadd.f32 0.0, %v736
        %738 = vmatprep.mubr.f32.mxu0 %v535
        %739 = vmatmul.mubr.f32.gmra.mrb[0].mxu0 %v403
        %v740 = vpop.f32.mrb[0].mxu0
        %v741 = vadd.f32 0.0, %v740
        %v742 = vpop.f32.mrb[0].mxu0
        %v743 = vadd.f32 0.0, %v742
        %744 = vdwg.mxu0
        %745 = vmatprep.subr.mxu0 %v420
        %746 = vmatpush1.msra.mxu0 %v419
        %747 = vmatprep.subr.mxu0 %v426
        %748 = vmatpush1.msra.mxu0 %v425
        %749 = vmatprep.subr.mxu0 %v432
        %750 = vmatpush1.msra.mxu0 %v431
        %751 = vmatprep.subr.mxu0 %v438
        %752 = vmatpush1.msra.mxu0 %v437
        %753 = vmatprep.subr.mxu0 %v444
        %754 = vmatpush1.msra.mxu0 %v443
        %755 = vmatprep.subr.mxu0 %v450
        %756 = vmatpush1.msra.mxu0 %v449
        %757 = vmatprep.subr.mxu0 %v456
        %758 = vmatpush1.msra.mxu0 %v455
        %759 = vmatprep.subr.mxu0 %v462
        %760 = vmatpush1.msra.mxu0 %v461
        %761 = vmatprep.subr.mxu0 %v468
        %762 = vmatpush1.msra.mxu0 %v467
        %763 = vmatprep.subr.mxu0 %v474
        %764 = vmatpush1.msra.mxu0 %v473
        %765 = vmatprep.subr.mxu0 %v480
        %766 = vmatpush1.msra.mxu0 %v479
        %767 = vmatprep.subr.mxu0 %v486
        %768 = vmatpush1.msra.mxu0 %v485
        %769 = vmatprep.subr.mxu0 %v492
        %770 = vmatpush1.msra.mxu0 %v491
        %771 = vmatprep.subr.mxu0 %v498
        %772 = vmatpush1.msra.mxu0 %v497
        %773 = vmatprep.subr.mxu0 %v504
        %774 = vmatpush1.msra.mxu0 %v503
        %775 = vmatprep.subr.mxu0 %v510
        %776 = vmatpush1.msra.mxu0 %v509
        %777 = vmatprep.subr.mxu0 %v516
        %778 = vmatpush1.msra.mxu0 %v515
        %779 = vmatprep.subr.mxu0 %v553
        %780 = vmatpush1.msra.mxu0 %v550
        %781 = vmatprep.subr.mxu0 0.0
        %782 = vmatpush1.msra.mxu0 0.0
        %783 = vmatprep.subr.mxu0 0.0
        %784 = vmatpush1.msra.mxu0 0.0
        %785 = vmatprep.subr.mxu0 0.0
        %786 = vmatpush1.msra.mxu0 0.0
        %787 = vmatprep.subr.mxu0 0.0
        %788 = vmatpush1.msra.mxu0 0.0
        %789 = vmatprep.subr.mxu0 0.0
        %790 = vmatpush1.msra.mxu0 0.0
        %791 = vmatprep.subr.mxu0 0.0
        %792 = vmatpush1.msra.mxu0 0.0
        %793 = vmatprep.subr.mxu0 0.0
        %794 = vmatpush1.msra.mxu0 0.0
        %795 = vmatprep.subr.mxu0 0.0
        %796 = vmatpush1.msra.mxu0 0.0
        %797 = vmatprep.subr.mxu0 0.0
        %798 = vmatpush1.msra.mxu0 0.0
        %799 = vmatprep.subr.mxu0 0.0
        %800 = vmatpush1.msra.mxu0 0.0
        %801 = vmatprep.subr.mxu0 0.0
        %802 = vmatpush1.msra.mxu0 0.0
        %803 = vmatprep.subr.mxu0 0.0
        %804 = vmatpush1.msra.mxu0 0.0
        %805 = vmatprep.subr.mxu0 0.0
        %806 = vmatpush1.msra.mxu0 0.0
        %807 = vmatprep.subr.mxu0 0.0
        %808 = vmatpush1.msra.mxu0 0.0
        %809 = vmatprep.mubr.f32.mxu0 %v524
        %810 = vmatmul.mubr.f32.gmra.mrb[0].mxu0 %v308
        %v811 = vpop.f32.mrb[0].mxu0
        %v812 = vadd.f32 0.0, %v811
        %v813 = vpop.f32.mrb[0].mxu0
        %v814 = vadd.f32 0.0, %v813
        %815 = vmatprep.mubr.f32.mxu0 %v527
        %816 = vmatmul.mubr.f32.gmra.mrb[0].mxu0 %v409
        %v817 = vpop.f32.mrb[0].mxu0
        %v818 = vadd.f32 0.0, %v817
        %v819 = vpop.f32.mrb[0].mxu0
        %v820 = vadd.f32 0.0, %v819
        %821 = vmatprep.mubr.f32.mxu0 %v530
        %822 = vmatmul.mubr.f32.gmra.mrb[0].mxu0 %v411
        %v823 = vpop.f32.mrb[0].mxu0
        %v824 = vadd.f32 0.0, %v823
        %v825 = vpop.f32.mrb[0].mxu0
        %v826 = vadd.f32 0.0, %v825
        %827 = vmatprep.mubr.f32.mxu0 %v533
        %828 = vmatmul.mubr.f32.gmra.mrb[0].mxu0 %v413
        %v829 = vpop.f32.mrb[0].mxu0
        %v830 = vadd.f32 0.0, %v829
        %v831 = vpop.f32.mrb[0].mxu0
        %v832 = vadd.f32 0.0, %v831
        %833 = vmatprep.mubr.f32.mxu0 %v535
        %834 = vmatmul.mubr.f32.gmra.mrb[0].mxu0 %v403
        %v835 = vpop.f32.mrb[0].mxu0
        %v836 = vadd.f32 0.0, %v835
        %v837 = vpop.f32.mrb[0].mxu0
        %v838 = vadd.f32 0.0, %v837
        %839 = vdwg.mxu0
        %v840 = vld [vmem:[#allocation4] sm:$0x7]
        %849 = vrot.lane.b32.xlu0 %v717, 32
        %v850 = vpop.permute.xlu0 %849
        %851 = vrot.lane.b32.xlu0 %v719, 32
        %v852 = vpop.permute.xlu0 %851
        %853 = vrot.lane.b32.xlu0 %v812, 32
        %v854 = vpop.permute.xlu0 %853
        %855 = vrot.lane.b32.xlu0 %v814, 32
        %v856 = vpop.permute.xlu0 %855
        %857 = vrot.lane.b32.xlu0 %v723, 32
        %v858 = vpop.permute.xlu0 %857
        %859 = vrot.lane.b32.xlu0 %v725, 32
        %v860 = vpop.permute.xlu0 %859
        %861 = vrot.lane.b32.xlu0 %v818, 32
        %v862 = vpop.permute.xlu0 %861
        %863 = vrot.lane.b32.xlu0 %v820, 32
        %v864 = vpop.permute.xlu0 %863
        %vm865 = vcmask 261120
        %v866 = vsel %vm865, %v850, %v852
        %v867 = vsel %vm865, %v852, %v854
        %v868 = vsel %vm865, %v854, %v856
        %v869 = vsel %vm865, %v858, %v860
        %v870 = vsel %vm865, %v860, %v862
        %v871 = vsel %vm865, %v862, %v864
        %v878 = vmax.f32 %v622, %v866
        %v879 = vmax.f32 %v624, %v867
        %v880 = vmax.f32 %v717, %v868
        %v881 = vmax.f32 %v628, %v869
        %v882 = vmax.f32 %v630, %v870
        %v883 = vmax.f32 %v723, %v871
        %888 = vrot.lane.b32.xlu0 %v729, 32
        %v889 = vpop.permute.xlu0 %888
        %890 = vrot.lane.b32.xlu0 %v731, 32
        %v891 = vpop.permute.xlu0 %890
        %892 = vrot.lane.b32.xlu0 %v824, 32
        %v893 = vpop.permute.xlu0 %892
        %894 = vrot.lane.b32.xlu0 %v826, 32
        %v895 = vpop.permute.xlu0 %894
        %v896 = vsel %vm865, %v889, %v891
        %v897 = vsel %vm865, %v891, %v893
        %v898 = vsel %vm865, %v893, %v895
        %v902 = vmax.f32 %v634, %v896
        %v903 = vmax.f32 %v636, %v897
        %v904 = vmax.f32 %v729, %v898
        %v911 = vrot.slane %v881, 2
        %v912 = vrot.slane %v902, 2
        %v913 = vsel %vm399, %v911, %v912
        %v914 = vrot.slane %v882, 2
        %v915 = vrot.slane %v903, 2
        %v916 = vsel %vm399, %v914, %v915
        %v917 = vrot.slane %v883, 2
        %v918 = vrot.slane %v904, 2
        %v919 = vsel %vm399, %v917, %v918
        %v926 = vmax.f32 %v878, %v913
        %v927 = vmax.f32 %v879, %v916
        %v928 = vmax.f32 %v880, %v919
        %v929 = vmax.f32 %v881, %v912
        %v930 = vmax.f32 %v882, %v915
        %v931 = vmax.f32 %v883, %v918
        %v933 = vlaneseq
        %v934 = vshrl.u32 %v933, 7
        %v935 = vsub.s32 0, %v934
        %v936 = vrot.slane %v840, %v935
        %v937 = vlaneseq
        %v938 = vshrl.u32 %v937, 7
        %v939 = vsub.s32 1, %v938
        %v940 = vrot.slane %v840, %v939
        %v941 = vlaneseq
        %v942 = vshrl.u32 %v941, 7
        %v943 = vsub.s32 2, %v942
        %v944 = vrot.slane %v840, %v943
        %v948 = vadd.f32 %v926, %v936
        %v949 = vadd.f32 %v927, %v940
        %v950 = vadd.f32 %v928, %v944
        %v951 = vadd.f32 %v929, %v936
        %v952 = vadd.f32 %v930, %v940
        %v953 = vadd.f32 %v931, %v944
        %v954 = vmax.f32 %v948, 0.0
        %v955 = vmax.f32 %v949, 0.0
        %v956 = vmax.f32 %v950, 0.0
        %v957 = vmax.f32 %v951, 0.0
        %v958 = vmax.f32 %v952, 0.0
        %v959 = vmax.f32 %v953, 0.0
        %964 = vrot.lane.b32.xlu0 %v735, 32
        %v965 = vpop.permute.xlu0 %964
        %966 = vrot.lane.b32.xlu0 %v737, 32
        %v967 = vpop.permute.xlu0 %966
        %968 = vrot.lane.b32.xlu0 %v830, 32
        %v969 = vpop.permute.xlu0 %968
        %970 = vrot.lane.b32.xlu0 %v832, 32
        %v971 = vpop.permute.xlu0 %970
        %v972 = vsel %vm865, %v965, %v967
        %v973 = vsel %vm865, %v967, %v969
        %v974 = vsel %vm865, %v969, %v971
        %v978 = vmax.f32 %v640, %v972
        %v979 = vmax.f32 %v642, %v973
        %v980 = vmax.f32 %v735, %v974
        %985 = vrot.lane.b32.xlu0 %v741, 32
        %v986 = vpop.permute.xlu0 %985
        %987 = vrot.lane.b32.xlu0 %v743, 32
        %v988 = vpop.permute.xlu0 %987
        %989 = vrot.lane.b32.xlu0 %v836, 32
        %v990 = vpop.permute.xlu0 %989
        %991 = vrot.lane.b32.xlu0 %v838, 32
        %v992 = vpop.permute.xlu0 %991
        %v993 = vsel %vm865, %v986, %v988
        %v994 = vsel %vm865, %v988, %v990
        %v995 = vsel %vm865, %v990, %v992
        %v999 = vmax.f32 %v646, %v993
        %v1000 = vmax.f32 %v648, %v994
        %v1001 = vmax.f32 %v741, %v995
        %v1008 = vrot.slane %v978, 2
        %v1009 = vrot.slane %v999, 2
        %v1010 = vsel %vm399, %v1008, %v1009
        %v1011 = vrot.slane %v979, 2
        %v1012 = vrot.slane %v1000, 2
        %v1013 = vsel %vm399, %v1011, %v1012
        %v1014 = vrot.slane %v980, 2
        %v1015 = vrot.slane %v1001, 2
        %v1016 = vsel %vm399, %v1014, %v1015
        %v1023 = vmax.f32 %v902, %v1010
        %v1024 = vmax.f32 %v903, %v1013
        %v1025 = vmax.f32 %v904, %v1016
        %v1026 = vmax.f32 %v978, %v1009
        %v1027 = vmax.f32 %v979, %v1012
        %v1028 = vmax.f32 %v980, %v1015
        %v1029 = vadd.f32 %v1023, %v936
        %v1030 = vadd.f32 %v1024, %v940
        %v1031 = vadd.f32 %v1025, %v944
        %v1032 = vadd.f32 %v1026, %v936
        %v1033 = vadd.f32 %v1027, %v940
        %v1034 = vadd.f32 %v1028, %v944
        %v1035 = vmax.f32 %v1029, 0.0
        %v1036 = vmax.f32 %v1030, 0.0
        %v1037 = vmax.f32 %v1031, 0.0
        %v1038 = vmax.f32 %v1032, 0.0
        %v1039 = vmax.f32 %v1033, 0.0
        %v1040 = vmax.f32 %v1034, 0.0
        %v1047 = vrot.slane %v1035, 4
        %v1048 = vrot.slane %v1038, 4
        %v1049 = vsel %vm386, %v1047, %v1048
        %v1050 = vrot.slane %v1036, 4
        %v1051 = vrot.slane %v1039, 4
        %v1052 = vsel %vm386, %v1050, %v1051
        %v1053 = vrot.slane %v1037, 4
        %v1054 = vrot.slane %v1040, 4
        %v1055 = vsel %vm386, %v1053, %v1054
        %1056 = vrot.lane.b32.xlu0 %v1049, 96
        %v1057 = vpop.permute.xlu0 %1056
        %1058 = vrot.lane.b32.xlu0 %v1052, 96
        %v1059 = vpop.permute.xlu0 %1058
        %1060 = vrot.lane.b32.xlu0 %v1055, 96
        %v1061 = vpop.permute.xlu0 %1060
        %1062 = vrot.lane.b32.xlu0 %v1048, 96
        %v1063 = vpop.permute.xlu0 %1062
        %1064 = vrot.lane.b32.xlu0 %v1051, 96
        %v1065 = vpop.permute.xlu0 %1064
        %1066 = vrot.lane.b32.xlu0 %v1054, 96
        %v1067 = vpop.permute.xlu0 %1066
        %vm1068 = vcmask 785408
        %v1069 = vsel %vm1068, %v1057, %v1059
        %v1070 = vsel %vm1068, %v1059, %v1061
        %v1071 = vsel %vm1068, %v1063, %v1065
        %v1072 = vsel %vm1068, %v1065, %v1067
        %vm1087 = vcmask 1046528
        %v1088 = vrot.slane %v954, 1
        %v1089 = vrot.slane %v957, 1
        %v1090 = vsel %vm1087, %v1088, %v1089
        %v1091 = vrot.slane %v955, 1
        %v1092 = vrot.slane %v958, 1
        %v1093 = vsel %vm1087, %v1091, %v1092
        %v1094 = vrot.slane %v956, 1
        %v1095 = vrot.slane %v959, 1
        %v1096 = vsel %vm1087, %v1094, %v1095
        %1097 = vrot.lane.b32.xlu0 %v1090, 64
        %v1098 = vpop.permute.xlu0 %1097
        %1099 = vrot.lane.b32.xlu0 %v1093, 64
        %v1100 = vpop.permute.xlu0 %1099
        %1101 = vrot.lane.b32.xlu0 %v1096, 64
        %v1102 = vpop.permute.xlu0 %1101
        %1103 = vrot.lane.b32.xlu0 %v1089, 64
        %v1104 = vpop.permute.xlu0 %1103
        %1105 = vrot.lane.b32.xlu0 %v1092, 64
        %v1106 = vpop.permute.xlu0 %1105
        %1107 = vrot.lane.b32.xlu0 %v1095, 64
        %v1108 = vpop.permute.xlu0 %1107
        %vm1109 = vcmask 523264
        %v1110 = vsel %vm1109, %v1098, %v1100
        %v1111 = vsel %vm1109, %v1100, %v1102
        %v1112 = vsel %vm1109, %v1104, %v1106
        %v1113 = vsel %vm1109, %v1106, %v1108
        %v1121 = vsel %vm1068, %v956, %v1057
        %v1122 = vsel %vm1068, %v959, %v1063
        %v1123 = vsel %vm1109, %v1061, %v1098
        %v1124 = vsel %vm1109, %v1067, %v1104
        %vm1125 = vcmask 1042432
        %v1126 = vrot.slane %v954, 5
        %v1127 = vrot.slane %v955, 5
        %v1128 = vrot.slane %v956, 5
        %v1129 = vrot.slane %v957, 5
        %v1130 = vsel %vm1125, %v1126, %v1129
        %v1131 = vrot.slane %v958, 5
        %v1132 = vsel %vm1125, %v1127, %v1131
        %v1133 = vrot.slane %v959, 5
        %v1134 = vsel %vm1125, %v1128, %v1133
        %1135 = vrot.lane.b32.xlu0 %v1126, 96
        %v1136 = vpop.permute.xlu0 %1135
        %1137 = vrot.lane.b32.xlu0 %v1127, 96
        %v1138 = vpop.permute.xlu0 %1137
        %1139 = vrot.lane.b32.xlu0 %v1128, 96
        %v1140 = vpop.permute.xlu0 %1139
        %1141 = vrot.lane.b32.xlu0 %v1130, 96
        %v1142 = vpop.permute.xlu0 %1141
        %1143 = vrot.lane.b32.xlu0 %v1132, 96
        %v1144 = vpop.permute.xlu0 %1143
        %1145 = vrot.lane.b32.xlu0 %v1134, 96
        %v1146 = vpop.permute.xlu0 %1145
        %v1147 = vsel %vm1068, %v1136, %v1138
        %v1148 = vsel %vm1068, %v1138, %v1140
        %v1149 = vsel %vm1068, %v1142, %v1144
        %v1150 = vsel %vm1068, %v1144, %v1146
        %v1155 = vrot.slane %v1035, 1
        %v1156 = vrot.slane %v1038, 1
        %v1157 = vsel %vm1087, %v1155, %v1156
        %v1158 = vrot.slane %v1036, 1
        %v1159 = vrot.slane %v1039, 1
        %v1160 = vsel %vm1087, %v1158, %v1159
        %v1161 = vrot.slane %v1037, 1
        %v1162 = vrot.slane %v1040, 1
        %v1163 = vsel %vm1087, %v1161, %v1162
        %1164 = vrot.lane.b32.xlu0 %v1157, 64
        %v1165 = vpop.permute.xlu0 %1164
        %1166 = vrot.lane.b32.xlu0 %v1160, 64
        %v1167 = vpop.permute.xlu0 %1166
        %1168 = vrot.lane.b32.xlu0 %v1163, 64
        %v1169 = vpop.permute.xlu0 %1168
        %1170 = vrot.lane.b32.xlu0 %v1156, 64
        %v1171 = vpop.permute.xlu0 %1170
        %1172 = vrot.lane.b32.xlu0 %v1159, 64
        %v1173 = vpop.permute.xlu0 %1172
        %1174 = vrot.lane.b32.xlu0 %v1162, 64
        %v1175 = vpop.permute.xlu0 %1174
        %v1176 = vsel %vm1109, %v1165, %v1167
        %v1177 = vsel %vm1109, %v1167, %v1169
        %v1178 = vsel %vm1109, %v1171, %v1173
        %v1179 = vsel %vm1109, %v1173, %v1175
        %v1182 = vsel %vm1068, %v1037, %v1136
        %v1183 = vsel %vm1068, %v1040, %v1142
        %v1184 = vsel %vm1109, %v1140, %v1165
        %v1185 = vsel %vm1109, %v1146, %v1171
        %vm1190 = vcmask 1044480
        %v1191 = vrot.slane %v1035, 3
        %v1192 = vrot.slane %v1038, 3
        %v1193 = vsel %vm1190, %v1191, %v1192
        %v1194 = vrot.slane %v1036, 3
        %v1195 = vrot.slane %v1039, 3
        %v1196 = vsel %vm1190, %v1194, %v1195
        %v1197 = vrot.slane %v1182, 3
        %v1198 = vrot.slane %v1183, 3
        %v1199 = vsel %vm1190, %v1197, %v1198
        %v1200 = vrot.slane %v1147, 3
        %v1201 = vrot.slane %v1149, 3
        %v1202 = vsel %vm1190, %v1200, %v1201
        %v1203 = vrot.slane %v1148, 3
        %v1204 = vrot.slane %v1150, 3
        %v1205 = vsel %vm1190, %v1203, %v1204
        %v1206 = vrot.slane %v1184, 3
        %v1207 = vrot.slane %v1185, 3
        %v1208 = vsel %vm1190, %v1206, %v1207
        %v1209 = vrot.slane %v1176, 3
        %v1210 = vrot.slane %v1178, 3
        %v1211 = vsel %vm1190, %v1209, %v1210
        %v1212 = vrot.slane %v1177, 3
        %v1213 = vrot.slane %v1179, 3
        %v1214 = vsel %vm1190, %v1212, %v1213
        %v1215 = vrot.slane %v1169, 3
        %v1216 = vrot.slane %v1175, 3
        %v1217 = vsel %vm1190, %v1215, %v1216
        %vm1235 = vcmask 1040384
        %v1236 = vsel %vm1235, %v957, %v1193
        %v1237 = vsel %vm1235, %v958, %v1196
        %v1238 = vsel %vm1235, %v1122, %v1199
        %v1239 = vsel %vm1235, %v1071, %v1202
        %v1240 = vsel %vm1235, %v1072, %v1205
        %v1241 = vsel %vm1235, %v1124, %v1208
        %v1242 = vsel %vm1235, %v1112, %v1211
        %v1243 = vsel %vm1235, %v1113, %v1214
        %v1244 = vsel %vm1235, %v1108, %v1217
        %v1245 = vld [vmem:[#allocation6] sm:$0xff]
        %v1246 = vld [vmem:[#allocation6 + $0x8] sm:$0xff]
        %v1247 = vld [vmem:[#allocation6 + $0x10] sm:$0xff]
        %v1248 = vld [vmem:[#allocation6 + $0x18] sm:$0xff]
        %v1249 = vld [vmem:[#allocation6 + $0x20] sm:$0xff]
        %v1250 = vld [vmem:[#allocation6 + $0x28] sm:$0xff]
        %v1251 = vld [vmem:[#allocation6 + $0x30] sm:$0xff]
        %v1252 = vld [vmem:[#allocation6 + $0x38] sm:$0xff]
        %v1253 = vld [vmem:[#allocation6 + $0x40] sm:$0xff]
        %v1254 = vld [vmem:[#allocation6 + $0x48] sm:$0xff]
        %v1255 = vld [vmem:[#allocation6 + $0x50] sm:$0xff]
        %v1256 = vld [vmem:[#allocation6 + $0x58] sm:$0xff]
        %v1257 = vld [vmem:[#allocation6 + $0x60] sm:$0xff]
        %v1258 = vld [vmem:[#allocation6 + $0x68] sm:$0xff]
        %v1259 = vld [vmem:[#allocation6 + $0x70] sm:$0xff]
        %v1260 = vld [vmem:[#allocation6 + $0x78] sm:$0xff]
        %v1261 = vld [vmem:[#allocation6 + $0x80] sm:$0xff]
        %v1262 = vld [vmem:[#allocation6 + $0x88] sm:$0xff]
        %v1263 = vld [vmem:[#allocation6 + $0x90] sm:$0xff]
        %v1264 = vld [vmem:[#allocation6 + $0x98] sm:$0xff]
        %v1265 = vld [vmem:[#allocation6 + $0xa0] sm:$0xff]
        %v1266 = vld [vmem:[#allocation6 + $0xa8] sm:$0xff]
        %v1267 = vld [vmem:[#allocation6 + $0xb0] sm:$0xff]
        %v1268 = vld [vmem:[#allocation6 + $0xb8] sm:$0xff]
        %v1269 = vld [vmem:[#allocation6 + $0xc0] sm:$0xff]
        %v1270 = vld [vmem:[#allocation6 + $0xc8] sm:$0xff]
        %v1271 = vld [vmem:[#allocation6 + $0xd0] sm:$0xff]
        %v1272 = vld [vmem:[#allocation6 + $0xd8] sm:$0xff]
        %v1273 = vld [vmem:[#allocation6 + $0xe0] sm:$0xff]
        %v1274 = vld [vmem:[#allocation6 + $0xe8] sm:$0xff]
        %v1275 = vld [vmem:[#allocation6 + $0xf0] sm:$0xff]
        %v1276 = vld [vmem:[#allocation6 + $0xf8] sm:$0xff]
        %v1277 = vld [vmem:[#allocation6 + $0x100] sm:$0xff]
        %v1278 = vld [vmem:[#allocation6 + $0x108] sm:$0xff]
        %v1279 = vld [vmem:[#allocation6 + $0x110] sm:$0xff]
        %v1280 = vld [vmem:[#allocation6 + $0x118] sm:$0xff]
        %v1281 = vld [vmem:[#allocation6 + $0x120] sm:$0xff]
        %v1282 = vld [vmem:[#allocation6 + $0x128] sm:$0xff]
        %v1283 = vld [vmem:[#allocation6 + $0x130] sm:$0xff]
        %v1284 = vld [vmem:[#allocation6 + $0x138] sm:$0xff]
        %v1285 = vld [vmem:[#allocation6 + $0x140] sm:$0xff]
        %v1286 = vld [vmem:[#allocation6 + $0x148] sm:$0xff]
        %v1287 = vld [vmem:[#allocation6 + $0x150] sm:$0xff]
        %v1288 = vld [vmem:[#allocation6 + $0x158] sm:$0xff]
        %v1289 = vld [vmem:[#allocation6 + $0x160] sm:$0xff]
        %v1290 = vld [vmem:[#allocation6 + $0x168] sm:$0xff]
        %v1291 = vld [vmem:[#allocation6 + $0x170] sm:$0xff]
        %v1292 = vld [vmem:[#allocation6 + $0x178] sm:$0xff]
        %v1293 = vld [vmem:[#allocation6 + $0x180] sm:$0xff]
        %v1294 = vld [vmem:[#allocation6 + $0x188] sm:$0xff]
        %v1295 = vld [vmem:[#allocation6 + $0x190] sm:$0xff]
        %v1296 = vld [vmem:[#allocation6 + $0x198] sm:$0xff]
        %v1297 = vld [vmem:[#allocation6 + $0x1a0] sm:$0xff]
        %v1298 = vld [vmem:[#allocation6 + $0x1a8] sm:$0xff]
        %v1299 = vld [vmem:[#allocation6 + $0x1b0] sm:$0xff]
        %v1300 = vld [vmem:[#allocation6 + $0x1b8] sm:$0xff]
        %v1301 = vld [vmem:[#allocation6 + $0x1c0] sm:$0xff]
        %v1302 = vld [vmem:[#allocation6 + $0x1c8] sm:$0xff]
        %v1303 = vld [vmem:[#allocation6 + $0x1d0] sm:$0xff]
        %v1304 = vld [vmem:[#allocation6 + $0x1d8] sm:$0xff]
        %v1305 = vld [vmem:[#allocation6 + $0x1e0] sm:$0xff]
        %v1306 = vld [vmem:[#allocation6 + $0x1e8] sm:$0xff]
        %v1307 = vld [vmem:[#allocation6 + $0x1f0] sm:$0xff]
        %v1308 = vld [vmem:[#allocation6 + $0x1f8] sm:$0xff]
        %v1309 = vld [vmem:[#allocation6 + $0x200] sm:$0xff]
        %v1310 = vld [vmem:[#allocation6 + $0x208] sm:$0xff]
        %v1311 = vld [vmem:[#allocation6 + $0x210] sm:$0xff]
        %v1312 = vld [vmem:[#allocation6 + $0x218] sm:$0xff]
        %v1313 = vld [vmem:[#allocation6 + $0x220] sm:$0xff]
        %v1314 = vld [vmem:[#allocation6 + $0x228] sm:$0xff]
        %v1315 = vld [vmem:[#allocation6 + $0x230] sm:$0xff]
        %v1316 = vld [vmem:[#allocation6 + $0x238] sm:$0xff]
        %v1317 = vld [vmem:[#allocation6 + $0x240] sm:$0xff]
        %v1318 = vld [vmem:[#allocation6 + $0x248] sm:$0xff]
        %v1319 = vld [vmem:[#allocation6 + $0x250] sm:$0xff]
        %v1320 = vld [vmem:[#allocation6 + $0x258] sm:$0xff]
        %v1321 = vld [vmem:[#allocation6 + $0x260] sm:$0xff]
        %v1322 = vld [vmem:[#allocation6 + $0x268] sm:$0xff]
        %v1323 = vld [vmem:[#allocation6 + $0x270] sm:$0xff]
        %v1324 = vld [vmem:[#allocation6 + $0x278] sm:$0xff]
        %v1325 = vld [vmem:[#allocation6 + $0x280] sm:$0xff]
        %v1326 = vld [vmem:[#allocation6 + $0x288] sm:$0xff]
        %v1327 = vld [vmem:[#allocation6 + $0x290] sm:$0xff]
        %v1328 = vld [vmem:[#allocation6 + $0x298] sm:$0xff]
        %v1329 = vld [vmem:[#allocation6 + $0x2a0] sm:$0xff]
        %v1330 = vld [vmem:[#allocation6 + $0x2a8] sm:$0xff]
        %v1331 = vld [vmem:[#allocation6 + $0x2b0] sm:$0xff]
        %v1332 = vld [vmem:[#allocation6 + $0x2b8] sm:$0xff]
        %v1333 = vld [vmem:[#allocation6 + $0x2c0] sm:$0xff]
        %v1334 = vld [vmem:[#allocation6 + $0x2c8] sm:$0xff]
        %v1335 = vld [vmem:[#allocation6 + $0x2d0] sm:$0xff]
        %v1336 = vld [vmem:[#allocation6 + $0x2d8] sm:$0xff]
        %v1337 = vld [vmem:[#allocation6 + $0x2e0] sm:$0xff]
        %v1338 = vld [vmem:[#allocation6 + $0x2e8] sm:$0xff]
        %v1339 = vld [vmem:[#allocation6 + $0x2f0] sm:$0xff]
        %v1340 = vld [vmem:[#allocation6 + $0x2f8] sm:$0xff]
        %v1341 = vld [vmem:[#allocation6 + $0x300] sm:$0xff]
        %v1342 = vld [vmem:[#allocation6 + $0x308] sm:$0xff]
        %v1343 = vld [vmem:[#allocation6 + $0x310] sm:$0xff]
        %v1344 = vld [vmem:[#allocation6 + $0x318] sm:$0xff]
        %v1345 = vld [vmem:[#allocation6 + $0x320] sm:$0xff]
        %v1346 = vld [vmem:[#allocation6 + $0x328] sm:$0xff]
        %v1347 = vld [vmem:[#allocation6 + $0x330] sm:$0xff]
        %v1348 = vld [vmem:[#allocation6 + $0x338] sm:$0xff]
        %v1349 = vld [vmem:[#allocation6 + $0x340] sm:$0xff]
        %v1350 = vld [vmem:[#allocation6 + $0x348] sm:$0xff]
        %v1351 = vld [vmem:[#allocation6 + $0x350] sm:$0xff]
        %v1352 = vld [vmem:[#allocation6 + $0x358] sm:$0xff]
        %v1353 = vld [vmem:[#allocation6 + $0x360] sm:$0xff]
        %v1354 = vld [vmem:[#allocation6 + $0x368] sm:$0xff]
        %v1355 = vld [vmem:[#allocation6 + $0x370] sm:$0xff]
        %v1356 = vld [vmem:[#allocation6 + $0x378] sm:$0xff]
        %v1357 = vld [vmem:[#allocation6 + $0x380] sm:$0xff]
        %v1358 = vld [vmem:[#allocation6 + $0x388] sm:$0xff]
        %v1359 = vld [vmem:[#allocation6 + $0x390] sm:$0xff]
        %v1360 = vld [vmem:[#allocation6 + $0x398] sm:$0xff]
        %v1361 = vld [vmem:[#allocation6 + $0x3a0] sm:$0xff]
        %v1362 = vld [vmem:[#allocation6 + $0x3a8] sm:$0xff]
        %v1363 = vld [vmem:[#allocation6 + $0x3b0] sm:$0xff]
        %v1364 = vld [vmem:[#allocation6 + $0x3b8] sm:$0xff]
        %v1365 = vld [vmem:[#allocation6 + $0x3c0] sm:$0xff]
        %v1366 = vld [vmem:[#allocation6 + $0x3c8] sm:$0xff]
        %v1367 = vld [vmem:[#allocation6 + $0x3d0] sm:$0xff]
        %v1368 = vld [vmem:[#allocation6 + $0x3d8] sm:$0xff]
        %v1369 = vld [vmem:[#allocation6 + $0x3e0] sm:$0xff]
        %v1370 = vld [vmem:[#allocation6 + $0x3e8] sm:$0xff]
        %v1371 = vld [vmem:[#allocation6 + $0x3f0] sm:$0xff]
        %v1372 = vld [vmem:[#allocation6 + $0x3f8] sm:$0xff]
        %v1373 = vld [vmem:[#allocation6 + $0x400] sm:$0xff]
        %v1374 = vld [vmem:[#allocation6 + $0x408] sm:$0xff]
        %v1375 = vld [vmem:[#allocation6 + $0x410] sm:$0xff]
        %v1376 = vld [vmem:[#allocation6 + $0x418] sm:$0xff]
        %v1377 = vld [vmem:[#allocation6 + $0x420] sm:$0xff]
        %v1378 = vld [vmem:[#allocation6 + $0x428] sm:$0xff]
        %v1379 = vld [vmem:[#allocation6 + $0x430] sm:$0xff]
        %v1380 = vld [vmem:[#allocation6 + $0x438] sm:$0xff]
        %v1381 = vld [vmem:[#allocation6 + $0x440] sm:$0xff]
        %v1382 = vld [vmem:[#allocation6 + $0x448] sm:$0xff]
        %v1383 = vld [vmem:[#allocation6 + $0x450] sm:$0xff]
        %v1384 = vld [vmem:[#allocation6 + $0x458] sm:$0xff]
        %v1385 = vld [vmem:[#allocation6 + $0x460] sm:$0xff]
        %v1386 = vld [vmem:[#allocation6 + $0x468] sm:$0xff]
        %v1387 = vld [vmem:[#allocation6 + $0x470] sm:$0xff]
        %v1388 = vld [vmem:[#allocation6 + $0x478] sm:$0xff]
        %v1389 = vld [vmem:[#allocation6 + $0x480] sm:$0xff]
        %v1390 = vld [vmem:[#allocation6 + $0x488] sm:$0xff]
        %v1391 = vld [vmem:[#allocation6 + $0x490] sm:$0xff]
        %v1392 = vld [vmem:[#allocation6 + $0x498] sm:$0xff]
        %v1393 = vld [vmem:[#allocation6 + $0x4a0] sm:$0xff]
        %v1394 = vld [vmem:[#allocation6 + $0x4a8] sm:$0xff]
        %v1395 = vld [vmem:[#allocation6 + $0x4b0] sm:$0xff]
        %v1396 = vld [vmem:[#allocation6 + $0x4b8] sm:$0xff]
        %v1397 = vld [vmem:[#allocation6 + $0x4c0] sm:$0xff]
        %v1398 = vld [vmem:[#allocation6 + $0x4c8] sm:$0xff]
        %v1399 = vld [vmem:[#allocation6 + $0x4d0] sm:$0xff]
        %v1400 = vld [vmem:[#allocation6 + $0x4d8] sm:$0xff]
        %v1401 = vld [vmem:[#allocation6 + $0x4e0] sm:$0xff]
        %v1402 = vld [vmem:[#allocation6 + $0x4e8] sm:$0xff]
        %v1403 = vld [vmem:[#allocation6 + $0x4f0] sm:$0xff]
        %v1404 = vld [vmem:[#allocation6 + $0x4f8] sm:$0xff]
        %v1405 = vld [vmem:[#allocation6 + $0x500] sm:$0xff]
        %v1406 = vld [vmem:[#allocation6 + $0x508] sm:$0xff]
        %v1407 = vld [vmem:[#allocation6 + $0x510] sm:$0xff]
        %v1408 = vld [vmem:[#allocation6 + $0x518] sm:$0xff]
        %v1409 = vld [vmem:[#allocation6 + $0x520] sm:$0xff]
        %v1410 = vld [vmem:[#allocation6 + $0x528] sm:$0xff]
        %v1411 = vld [vmem:[#allocation6 + $0x530] sm:$0xff]
        %v1412 = vld [vmem:[#allocation6 + $0x538] sm:$0xff]
        %v1413 = vld [vmem:[#allocation6 + $0x540] sm:$0xff]
        %v1414 = vld [vmem:[#allocation6 + $0x548] sm:$0xff]
        %v1415 = vld [vmem:[#allocation6 + $0x550] sm:$0xff]
        %v1416 = vld [vmem:[#allocation6 + $0x558] sm:$0xff]
        %v1417 = vld [vmem:[#allocation6 + $0x560] sm:$0xff]
        %v1418 = vld [vmem:[#allocation6 + $0x568] sm:$0xff]
        %v1419 = vld [vmem:[#allocation6 + $0x570] sm:$0xff]
        %v1420 = vld [vmem:[#allocation6 + $0x578] sm:$0xff]
        %v1421 = vld [vmem:[#allocation6 + $0x580] sm:$0xff]
        %v1422 = vld [vmem:[#allocation6 + $0x588] sm:$0xff]
        %v1423 = vld [vmem:[#allocation6 + $0x590] sm:$0xff]
        %v1424 = vld [vmem:[#allocation6 + $0x598] sm:$0xff]
        %v1425 = vld [vmem:[#allocation6 + $0x5a0] sm:$0xff]
        %v1426 = vld [vmem:[#allocation6 + $0x5a8] sm:$0xff]
        %v1427 = vld [vmem:[#allocation6 + $0x5b0] sm:$0xff]
        %v1428 = vld [vmem:[#allocation6 + $0x5b8] sm:$0xff]
        %v1429 = vld [vmem:[#allocation6 + $0x5c0] sm:$0xff]
        %v1430 = vld [vmem:[#allocation6 + $0x5c8] sm:$0xff]
        %v1431 = vld [vmem:[#allocation6 + $0x5d0] sm:$0xff]
        %v1432 = vld [vmem:[#allocation6 + $0x5d8] sm:$0xff]
        %v1433 = vld [vmem:[#allocation6 + $0x5e0] sm:$0xff]
        %v1434 = vld [vmem:[#allocation6 + $0x5e8] sm:$0xff]
        %v1435 = vld [vmem:[#allocation6 + $0x5f0] sm:$0xff]
        %v1436 = vld [vmem:[#allocation6 + $0x5f8] sm:$0xff]
        %v1437 = vld [vmem:[#allocation6 + $0x600] sm:$0xff]
        %v1438 = vld [vmem:[#allocation6 + $0x608] sm:$0xff]
        %v1439 = vld [vmem:[#allocation6 + $0x610] sm:$0xff]
        %v1440 = vld [vmem:[#allocation6 + $0x618] sm:$0xff]
        %v1441 = vld [vmem:[#allocation6 + $0x620] sm:$0xff]
        %v1442 = vld [vmem:[#allocation6 + $0x628] sm:$0xff]
        %v1443 = vld [vmem:[#allocation6 + $0x630] sm:$0xff]
        %v1444 = vld [vmem:[#allocation6 + $0x638] sm:$0xff]
        %v1445 = vld [vmem:[#allocation6 + $0x640] sm:$0xff]
        %v1446 = vld [vmem:[#allocation6 + $0x648] sm:$0xff]
        %v1447 = vld [vmem:[#allocation6 + $0x650] sm:$0xff]
        %v1448 = vld [vmem:[#allocation6 + $0x658] sm:$0xff]
        %v1449 = vld [vmem:[#allocation6 + $0x660] sm:$0xff]
        %v1450 = vld [vmem:[#allocation6 + $0x668] sm:$0xff]
        %v1451 = vld [vmem:[#allocation6 + $0x670] sm:$0xff]
        %v1452 = vld [vmem:[#allocation6 + $0x678] sm:$0xff]
        %v1453 = vld [vmem:[#allocation6 + $0x680] sm:$0xff]
        %v1454 = vld [vmem:[#allocation6 + $0x688] sm:$0xff]
        %v1455 = vld [vmem:[#allocation6 + $0x690] sm:$0xff]
        %v1456 = vld [vmem:[#allocation6 + $0x698] sm:$0xff]
        %v1457 = vld [vmem:[#allocation6 + $0x6a0] sm:$0xff]
        %v1458 = vld [vmem:[#allocation6 + $0x6a8] sm:$0xff]
        %v1459 = vld [vmem:[#allocation6 + $0x6b0] sm:$0xff]
        %v1460 = vld [vmem:[#allocation6 + $0x6b8] sm:$0xff]
        %v1461 = vld [vmem:[#allocation6 + $0x6c0] sm:$0xff]
        %v1462 = vld [vmem:[#allocation6 + $0x6c8] sm:$0xff]
        %v1463 = vld [vmem:[#allocation6 + $0x6d0] sm:$0xff]
        %v1464 = vld [vmem:[#allocation6 + $0x6d8] sm:$0xff]
        %v1465 = vld [vmem:[#allocation6 + $0x6e0] sm:$0xff]
        %v1466 = vld [vmem:[#allocation6 + $0x6e8] sm:$0xff]
        %v1467 = vld [vmem:[#allocation6 + $0x6f0] sm:$0xff]
        %v1468 = vld [vmem:[#allocation6 + $0x6f8] sm:$0xff]
        %v1469 = vld [vmem:[#allocation6 + $0x700] sm:$0xff]
        %v1470 = vld [vmem:[#allocation6 + $0x708] sm:$0xff]
        %v1471 = vld [vmem:[#allocation6 + $0x710] sm:$0xff]
        %v1472 = vld [vmem:[#allocation6 + $0x718] sm:$0xff]
        %v1473 = vld [vmem:[#allocation6 + $0x720] sm:$0xff]
        %v1474 = vld [vmem:[#allocation6 + $0x728] sm:$0xff]
        %v1475 = vld [vmem:[#allocation6 + $0x730] sm:$0xff]
        %v1476 = vld [vmem:[#allocation6 + $0x738] sm:$0xff]
        %v1477 = vld [vmem:[#allocation6 + $0x740] sm:$0xff]
        %v1478 = vld [vmem:[#allocation6 + $0x748] sm:$0xff]
        %v1479 = vld [vmem:[#allocation6 + $0x750] sm:$0xff]
        %v1480 = vld [vmem:[#allocation6 + $0x758] sm:$0xff]
        %v1481 = vld [vmem:[#allocation6 + $0x760] sm:$0xff]
        %v1482 = vld [vmem:[#allocation6 + $0x768] sm:$0xff]
        %v1483 = vld [vmem:[#allocation6 + $0x770] sm:$0xff]
        %v1484 = vld [vmem:[#allocation6 + $0x778] sm:$0xff]
        %v1485 = vld [vmem:[#allocation6 + $0x780] sm:$0xff]
        %v1486 = vld [vmem:[#allocation6 + $0x788] sm:$0xff]
        %v1487 = vld [vmem:[#allocation6 + $0x790] sm:$0xff]
        %v1488 = vld [vmem:[#allocation6 + $0x798] sm:$0xff]
        %v1489 = vld [vmem:[#allocation6 + $0x7a0] sm:$0xff]
        %v1490 = vld [vmem:[#allocation6 + $0x7a8] sm:$0xff]
        %v1491 = vld [vmem:[#allocation6 + $0x7b0] sm:$0xff]
        %v1492 = vld [vmem:[#allocation6 + $0x7b8] sm:$0xff]
        %v1493 = vld [vmem:[#allocation6 + $0x7c0] sm:$0xff]
        %v1494 = vld [vmem:[#allocation6 + $0x7c8] sm:$0xff]
        %v1495 = vld [vmem:[#allocation6 + $0x7d0] sm:$0xff]
        %v1496 = vld [vmem:[#allocation6 + $0x7d8] sm:$0xff]
        %v1497 = vld [vmem:[#allocation6 + $0x7e0] sm:$0xff]
        %v1498 = vld [vmem:[#allocation6 + $0x7e8] sm:$0xff]
        %v1499 = vld [vmem:[#allocation6 + $0x7f0] sm:$0xff]
        %v1500 = vld [vmem:[#allocation6 + $0x7f8] sm:$0xff]
        %v1501 = vld [vmem:[#allocation6 + $0x800] sm:$0xff]
        %v1502 = vld [vmem:[#allocation6 + $0x808] sm:$0xff]
        %v1503 = vld [vmem:[#allocation6 + $0x810] sm:$0xff]
        %v1504 = vld [vmem:[#allocation6 + $0x818] sm:$0xff]
        %v1505 = vld [vmem:[#allocation6 + $0x820] sm:$0xff]
        %v1506 = vld [vmem:[#allocation6 + $0x828] sm:$0xff]
        %v1507 = vld [vmem:[#allocation6 + $0x830] sm:$0xff]
        %v1508 = vld [vmem:[#allocation6 + $0x838] sm:$0xff]
        %v1509 = vld [vmem:[#allocation6 + $0x840] sm:$0xff]
        %v1510 = vld [vmem:[#allocation6 + $0x848] sm:$0xff]
        %v1511 = vld [vmem:[#allocation6 + $0x850] sm:$0xff]
        %v1512 = vld [vmem:[#allocation6 + $0x858] sm:$0xff]
        %v1513 = vld [vmem:[#allocation6 + $0x860] sm:$0xff]
        %v1514 = vld [vmem:[#allocation6 + $0x868] sm:$0xff]
        %v1515 = vld [vmem:[#allocation6 + $0x870] sm:$0xff]
        %v1516 = vld [vmem:[#allocation6 + $0x878] sm:$0xff]
        %v1517 = vld [vmem:[#allocation6 + $0x880] sm:$0xff]
        %v1518 = vld [vmem:[#allocation6 + $0x888] sm:$0xff]
        %v1519 = vld [vmem:[#allocation6 + $0x890] sm:$0xff]
        %v1520 = vld [vmem:[#allocation6 + $0x898] sm:$0xff]
        %v1521 = vld [vmem:[#allocation6 + $0x8a0] sm:$0xff]
        %v1522 = vld [vmem:[#allocation6 + $0x8a8] sm:$0xff]
        %v1523 = vld [vmem:[#allocation6 + $0x8b0] sm:$0xff]
        %v1524 = vld [vmem:[#allocation6 + $0x8b8] sm:$0xff]
        %v1525 = vld [vmem:[#allocation6 + $0x8c0] sm:$0xff]
        %v1526 = vld [vmem:[#allocation6 + $0x8c8] sm:$0xff]
        %v1527 = vld [vmem:[#allocation6 + $0x8d0] sm:$0xff]
        %v1528 = vld [vmem:[#allocation6 + $0x8d8] sm:$0xff]
        %v1529 = vld [vmem:[#allocation6 + $0x8e0] sm:$0xff]
        %v1530 = vld [vmem:[#allocation6 + $0x8e8] sm:$0xff]
        %v1531 = vld [vmem:[#allocation6 + $0x8f0] sm:$0xff]
        %v1532 = vld [vmem:[#allocation6 + $0x8f8] sm:$0xff]
        %v1533 = vld [vmem:[#allocation6 + $0x900] sm:$0xff]
        %v1534 = vld [vmem:[#allocation6 + $0x908] sm:$0xff]
        %v1535 = vld [vmem:[#allocation6 + $0x910] sm:$0xff]
        %v1536 = vld [vmem:[#allocation6 + $0x918] sm:$0xff]
        %v1537 = vld [vmem:[#allocation6 + $0x920] sm:$0xff]
        %v1538 = vld [vmem:[#allocation6 + $0x928] sm:$0xff]
        %v1539 = vld [vmem:[#allocation6 + $0x930] sm:$0xff]
        %v1540 = vld [vmem:[#allocation6 + $0x938] sm:$0xff]
        %v1541 = vld [vmem:[#allocation6 + $0x940] sm:$0xff]
        %v1542 = vld [vmem:[#allocation6 + $0x948] sm:$0xff]
        %v1543 = vld [vmem:[#allocation6 + $0x950] sm:$0xff]
        %v1544 = vld [vmem:[#allocation6 + $0x958] sm:$0xff]
        %v1545 = vld [vmem:[#allocation6 + $0x960] sm:$0xff]
        %v1546 = vld [vmem:[#allocation6 + $0x968] sm:$0xff]
        %v1547 = vld [vmem:[#allocation6 + $0x970] sm:$0xff]
        %v1548 = vld [vmem:[#allocation6 + $0x978] sm:$0xff]
        %v1549 = vld [vmem:[#allocation6 + $0x980] sm:$0xff]
        %v1550 = vld [vmem:[#allocation6 + $0x988] sm:$0xff]
        %v1551 = vld [vmem:[#allocation6 + $0x990] sm:$0xff]
        %v1552 = vld [vmem:[#allocation6 + $0x998] sm:$0xff]
        %v1553 = vld [vmem:[#allocation6 + $0x9a0] sm:$0xff]
        %v1554 = vld [vmem:[#allocation6 + $0x9a8] sm:$0xff]
        %v1555 = vld [vmem:[#allocation6 + $0x9b0] sm:$0xff]
        %v1556 = vld [vmem:[#allocation6 + $0x9b8] sm:$0xff]
        %v1557 = vld [vmem:[#allocation6 + $0x9c0] sm:$0xff]
        %v1558 = vld [vmem:[#allocation6 + $0x9c8] sm:$0xff]
        %v1559 = vld [vmem:[#allocation6 + $0x9d0] sm:$0xff]
        %v1560 = vld [vmem:[#allocation6 + $0x9d8] sm:$0xff]
        %v1561 = vld [vmem:[#allocation6 + $0x9e0] sm:$0xff]
        %v1562 = vld [vmem:[#allocation6 + $0x9e8] sm:$0xff]
        %v1563 = vld [vmem:[#allocation6 + $0x9f0] sm:$0xff]
        %v1564 = vld [vmem:[#allocation6 + $0x9f8] sm:$0xff]
        %v1565 = vld [vmem:[#allocation6 + $0xa00] sm:$0xff]
        %v1566 = vld [vmem:[#allocation6 + $0xa08] sm:$0xff]
        %v1567 = vld [vmem:[#allocation6 + $0xa10] sm:$0xff]
        %v1568 = vld [vmem:[#allocation6 + $0xa18] sm:$0xff]
        %v1569 = vld [vmem:[#allocation6 + $0xa20] sm:$0xff]
        %v1570 = vld [vmem:[#allocation6 + $0xa28] sm:$0xff]
        %v1571 = vld [vmem:[#allocation6 + $0xa30] sm:$0xff]
        %v1572 = vld [vmem:[#allocation6 + $0xa38] sm:$0xff]
        %v1573 = vld [vmem:[#allocation6 + $0xa40] sm:$0xff]
        %v1574 = vld [vmem:[#allocation6 + $0xa48] sm:$0xff]
        %v1575 = vld [vmem:[#allocation6 + $0xa50] sm:$0xff]
        %v1576 = vld [vmem:[#allocation6 + $0xa58] sm:$0xff]
        %v1577 = vld [vmem:[#allocation6 + $0xa60] sm:$0xff]
        %v1578 = vld [vmem:[#allocation6 + $0xa68] sm:$0xff]
        %v1579 = vld [vmem:[#allocation6 + $0xa70] sm:$0xff]
        %v1580 = vld [vmem:[#allocation6 + $0xa78] sm:$0xff]
        %v1581 = vld [vmem:[#allocation6 + $0xa80] sm:$0xff]
        %v1582 = vld [vmem:[#allocation6 + $0xa88] sm:$0xff]
        %v1583 = vld [vmem:[#allocation6 + $0xa90] sm:$0xff]
        %v1584 = vld [vmem:[#allocation6 + $0xa98] sm:$0xff]
        %v1585 = vld [vmem:[#allocation6 + $0xaa0] sm:$0xff]
        %v1586 = vld [vmem:[#allocation6 + $0xaa8] sm:$0xff]
        %v1587 = vld [vmem:[#allocation6 + $0xab0] sm:$0xff]
        %v1588 = vld [vmem:[#allocation6 + $0xab8] sm:$0xff]
        %v1589 = vld [vmem:[#allocation6 + $0xac0] sm:$0xff]
        %v1590 = vld [vmem:[#allocation6 + $0xac8] sm:$0xff]
        %v1591 = vld [vmem:[#allocation6 + $0xad0] sm:$0xff]
        %v1592 = vld [vmem:[#allocation6 + $0xad8] sm:$0xff]
        %v1593 = vld [vmem:[#allocation6 + $0xae0] sm:$0xff]
        %v1594 = vld [vmem:[#allocation6 + $0xae8] sm:$0xff]
        %v1595 = vld [vmem:[#allocation6 + $0xaf0] sm:$0xff]
        %v1596 = vld [vmem:[#allocation6 + $0xaf8] sm:$0xff]
        %v1597 = vld [vmem:[#allocation6 + $0xb00] sm:$0xff]
        %v1598 = vld [vmem:[#allocation6 + $0xb08] sm:$0xff]
        %v1599 = vld [vmem:[#allocation6 + $0xb10] sm:$0xff]
        %v1600 = vld [vmem:[#allocation6 + $0xb18] sm:$0xff]
        %v1601 = vld [vmem:[#allocation6 + $0xb20] sm:$0xff]
        %v1602 = vld [vmem:[#allocation6 + $0xb28] sm:$0xff]
        %v1603 = vld [vmem:[#allocation6 + $0xb30] sm:$0xff]
        %v1604 = vld [vmem:[#allocation6 + $0xb38] sm:$0xff]
        %v1605 = vld [vmem:[#allocation6 + $0xb40] sm:$0xff]
        %v1606 = vld [vmem:[#allocation6 + $0xb48] sm:$0xff]
        %v1607 = vld [vmem:[#allocation6 + $0xb50] sm:$0xff]
        %v1608 = vld [vmem:[#allocation6 + $0xb58] sm:$0xff]
        %v1609 = vld [vmem:[#allocation6 + $0xb60] sm:$0xff]
        %v1610 = vld [vmem:[#allocation6 + $0xb68] sm:$0xff]
        %v1611 = vld [vmem:[#allocation6 + $0xb70] sm:$0xff]
        %v1612 = vld [vmem:[#allocation6 + $0xb78] sm:$0xff]
        %v1613 = vld [vmem:[#allocation6 + $0xb80] sm:$0xff]
        %v1614 = vld [vmem:[#allocation6 + $0xb88] sm:$0xff]
        %v1615 = vld [vmem:[#allocation6 + $0xb90] sm:$0xff]
        %v1616 = vld [vmem:[#allocation6 + $0xb98] sm:$0xff]
        %v1617 = vld [vmem:[#allocation6 + $0xba0] sm:$0xff]
        %v1618 = vld [vmem:[#allocation6 + $0xba8] sm:$0xff]
        %v1619 = vld [vmem:[#allocation6 + $0xbb0] sm:$0xff]
        %v1620 = vld [vmem:[#allocation6 + $0xbb8] sm:$0xff]
        %v1621 = vld [vmem:[#allocation6 + $0xbc0] sm:$0xff]
        %v1622 = vld [vmem:[#allocation6 + $0xbc8] sm:$0xff]
        %v1623 = vld [vmem:[#allocation6 + $0xbd0] sm:$0xff]
        %v1624 = vld [vmem:[#allocation6 + $0xbd8] sm:$0xff]
        %v1625 = vld [vmem:[#allocation6 + $0xbe0] sm:$0xff]
        %v1626 = vld [vmem:[#allocation6 + $0xbe8] sm:$0xff]
        %v1627 = vld [vmem:[#allocation6 + $0xbf0] sm:$0xff]
        %v1628 = vld [vmem:[#allocation6 + $0xbf8] sm:$0xff]
        %v1629 = vld [vmem:[#allocation6 + $0xc00] sm:$0xff]
        %v1630 = vld [vmem:[#allocation6 + $0xc08] sm:$0xff]
        %v1631 = vld [vmem:[#allocation6 + $0xc10] sm:$0xff]
        %v1632 = vld [vmem:[#allocation6 + $0xc18] sm:$0xff]
        %v1633 = vld [vmem:[#allocation6 + $0xc20] sm:$0xff]
        %v1634 = vld [vmem:[#allocation6 + $0xc28] sm:$0xff]
        %v1635 = vld [vmem:[#allocation6 + $0xc30] sm:$0xff]
        %v1636 = vld [vmem:[#allocation6 + $0xc38] sm:$0xff]
        %v1637 = vld [vmem:[#allocation6 + $0xc40] sm:$0xff]
        %v1638 = vld [vmem:[#allocation6 + $0xc48] sm:$0xff]
        %v1639 = vld [vmem:[#allocation6 + $0xc50] sm:$0xff]
        %v1640 = vld [vmem:[#allocation6 + $0xc58] sm:$0xff]
        %v1641 = vld [vmem:[#allocation6 + $0xc60] sm:$0xff]
        %v1642 = vld [vmem:[#allocation6 + $0xc68] sm:$0xff]
        %v1643 = vld [vmem:[#allocation6 + $0xc70] sm:$0xff]
        %v1644 = vld [vmem:[#allocation6 + $0xc78] sm:$0xff]
        %v1645 = vld [vmem:[#allocation6 + $0xc80] sm:$0xff]
        %v1646 = vld [vmem:[#allocation6 + $0xc88] sm:$0xff]
        %v1647 = vld [vmem:[#allocation6 + $0xc90] sm:$0xff]
        %v1648 = vld [vmem:[#allocation6 + $0xc98] sm:$0xff]
        %v1649 = vld [vmem:[#allocation6 + $0xca0] sm:$0xff]
        %v1650 = vld [vmem:[#allocation6 + $0xca8] sm:$0xff]
        %v1651 = vld [vmem:[#allocation6 + $0xcb0] sm:$0xff]
        %v1652 = vld [vmem:[#allocation6 + $0xcb8] sm:$0xff]
        %v1653 = vld [vmem:[#allocation6 + $0xcc0] sm:$0xff]
        %v1654 = vld [vmem:[#allocation6 + $0xcc8] sm:$0xff]
        %v1655 = vld [vmem:[#allocation6 + $0xcd0] sm:$0xff]
        %v1656 = vld [vmem:[#allocation6 + $0xcd8] sm:$0xff]
        %v1657 = vld [vmem:[#allocation6 + $0xce0] sm:$0xff]
        %v1658 = vld [vmem:[#allocation6 + $0xce8] sm:$0xff]
        %v1659 = vld [vmem:[#allocation6 + $0xcf0] sm:$0xff]
        %v1660 = vld [vmem:[#allocation6 + $0xcf8] sm:$0xff]
        %v1661 = vld [vmem:[#allocation6 + $0xd00] sm:$0xff]
        %v1662 = vld [vmem:[#allocation6 + $0xd08] sm:$0xff]
        %v1663 = vld [vmem:[#allocation6 + $0xd10] sm:$0xff]
        %v1664 = vld [vmem:[#allocation6 + $0xd18] sm:$0xff]
        %v1665 = vld [vmem:[#allocation6 + $0xd20] sm:$0xff]
        %v1666 = vld [vmem:[#allocation6 + $0xd28] sm:$0xff]
        %v1667 = vld [vmem:[#allocation6 + $0xd30] sm:$0xff]
        %v1668 = vld [vmem:[#allocation6 + $0xd38] sm:$0xff]
        %v1669 = vld [vmem:[#allocation6 + $0xd40] sm:$0xff]
        %v1670 = vld [vmem:[#allocation6 + $0xd48] sm:$0xff]
        %v1671 = vld [vmem:[#allocation6 + $0xd50] sm:$0xff]
        %v1672 = vld [vmem:[#allocation6 + $0xd58] sm:$0xff]
        %v1673 = vld [vmem:[#allocation6 + $0xd60] sm:$0xff]
        %v1674 = vld [vmem:[#allocation6 + $0xd68] sm:$0xff]
        %v1675 = vld [vmem:[#allocation6 + $0xd70] sm:$0xff]
        %v1676 = vld [vmem:[#allocation6 + $0xd78] sm:$0xff]
        %v1677 = vld [vmem:[#allocation6 + $0xd80] sm:$0xff]
        %v1678 = vld [vmem:[#allocation6 + $0xd88] sm:$0xff]
        %v1679 = vld [vmem:[#allocation6 + $0xd90] sm:$0xff]
        %v1680 = vld [vmem:[#allocation6 + $0xd98] sm:$0xff]
        %v1681 = vld [vmem:[#allocation6 + $0xda0] sm:$0xff]
        %v1682 = vld [vmem:[#allocation6 + $0xda8] sm:$0xff]
        %v1683 = vld [vmem:[#allocation6 + $0xdb0] sm:$0xff]
        %v1684 = vld [vmem:[#allocation6 + $0xdb8] sm:$0xff]
        %v1685 = vld [vmem:[#allocation6 + $0xdc0] sm:$0xff]
        %v1686 = vld [vmem:[#allocation6 + $0xdc8] sm:$0xff]
        %v1687 = vld [vmem:[#allocation6 + $0xdd0] sm:$0xff]
        %v1688 = vld [vmem:[#allocation6 + $0xdd8] sm:$0xff]
        %v1689 = vld [vmem:[#allocation6 + $0xde0] sm:$0xff]
        %v1690 = vld [vmem:[#allocation6 + $0xde8] sm:$0xff]
        %v1691 = vld [vmem:[#allocation6 + $0xdf0] sm:$0xff]
        %v1692 = vld [vmem:[#allocation6 + $0xdf8] sm:$0xff]
        %v1693 = vld [vmem:[#allocation6 + $0xe00] sm:$0xff]
        %v1694 = vld [vmem:[#allocation6 + $0xe08] sm:$0xff]
        %v1695 = vld [vmem:[#allocation6 + $0xe10] sm:$0xff]
        %v1696 = vld [vmem:[#allocation6 + $0xe18] sm:$0xff]
        %v1697 = vld [vmem:[#allocation6 + $0xe20] sm:$0xff]
        %v1698 = vld [vmem:[#allocation6 + $0xe28] sm:$0xff]
        %v1699 = vld [vmem:[#allocation6 + $0xe30] sm:$0xff]
        %v1700 = vld [vmem:[#allocation6 + $0xe38] sm:$0xff]
        %v1701 = vld [vmem:[#allocation6 + $0xe40] sm:$0xff]
        %v1702 = vld [vmem:[#allocation6 + $0xe48] sm:$0xff]
        %v1703 = vld [vmem:[#allocation6 + $0xe50] sm:$0xff]
        %v1704 = vld [vmem:[#allocation6 + $0xe58] sm:$0xff]
        %v1705 = vld [vmem:[#allocation6 + $0xe60] sm:$0xff]
        %v1706 = vld [vmem:[#allocation6 + $0xe68] sm:$0xff]
        %v1707 = vld [vmem:[#allocation6 + $0xe70] sm:$0xff]
        %v1708 = vld [vmem:[#allocation6 + $0xe78] sm:$0xff]
        %v1709 = vld [vmem:[#allocation6 + $0xe80] sm:$0xff]
        %v1710 = vld [vmem:[#allocation6 + $0xe88] sm:$0xff]
        %v1711 = vld [vmem:[#allocation6 + $0xe90] sm:$0xff]
        %v1712 = vld [vmem:[#allocation6 + $0xe98] sm:$0xff]
        %v1713 = vld [vmem:[#allocation6 + $0xea0] sm:$0xff]
        %v1714 = vld [vmem:[#allocation6 + $0xea8] sm:$0xff]
        %v1715 = vld [vmem:[#allocation6 + $0xeb0] sm:$0xff]
        %v1716 = vld [vmem:[#allocation6 + $0xeb8] sm:$0xff]
        %v1717 = vld [vmem:[#allocation6 + $0xec0] sm:$0xff]
        %v1718 = vld [vmem:[#allocation6 + $0xec8] sm:$0xff]
        %v1719 = vld [vmem:[#allocation6 + $0xed0] sm:$0xff]
        %v1720 = vld [vmem:[#allocation6 + $0xed8] sm:$0xff]
        %v1721 = vld [vmem:[#allocation6 + $0xee0] sm:$0xff]
        %v1722 = vld [vmem:[#allocation6 + $0xee8] sm:$0xff]
        %v1723 = vld [vmem:[#allocation6 + $0xef0] sm:$0xff]
        %v1724 = vld [vmem:[#allocation6 + $0xef8] sm:$0xff]
        %v1725 = vld [vmem:[#allocation6 + $0xf00] sm:$0xff]
        %v1726 = vld [vmem:[#allocation6 + $0xf08] sm:$0xff]
        %v1727 = vld [vmem:[#allocation6 + $0xf10] sm:$0xff]
        %v1728 = vld [vmem:[#allocation6 + $0xf18] sm:$0xff]
        %v1729 = vld [vmem:[#allocation6 + $0xf20] sm:$0xff]
        %v1730 = vld [vmem:[#allocation6 + $0xf28] sm:$0xff]
        %v1731 = vld [vmem:[#allocation6 + $0xf30] sm:$0xff]
        %v1732 = vld [vmem:[#allocation6 + $0xf38] sm:$0xff]
        %v1733 = vld [vmem:[#allocation6 + $0xf40] sm:$0xff]
        %v1734 = vld [vmem:[#allocation6 + $0xf48] sm:$0xff]
        %v1735 = vld [vmem:[#allocation6 + $0xf50] sm:$0xff]
        %v1736 = vld [vmem:[#allocation6 + $0xf58] sm:$0xff]
        %v1737 = vld [vmem:[#allocation6 + $0xf60] sm:$0xff]
        %v1738 = vld [vmem:[#allocation6 + $0xf68] sm:$0xff]
        %v1739 = vld [vmem:[#allocation6 + $0xf70] sm:$0xff]
        %v1740 = vld [vmem:[#allocation6 + $0xf78] sm:$0xff]
        %v1741 = vld [vmem:[#allocation6 + $0xf80] sm:$0xff]
        %v1742 = vld [vmem:[#allocation6 + $0xf88] sm:$0xff]
        %v1743 = vld [vmem:[#allocation6 + $0xf90] sm:$0xff]
        %v1744 = vld [vmem:[#allocation6 + $0xf98] sm:$0xff]
        %v1745 = vld [vmem:[#allocation6 + $0xfa0] sm:$0xff]
        %v1746 = vld [vmem:[#allocation6 + $0xfa8] sm:$0xff]
        %v1747 = vld [vmem:[#allocation6 + $0xfb0] sm:$0xff]
        %v1748 = vld [vmem:[#allocation6 + $0xfb8] sm:$0xff]
        %v1749 = vld [vmem:[#allocation6 + $0xfc0] sm:$0xff]
        %v1750 = vld [vmem:[#allocation6 + $0xfc8] sm:$0xff]
        %v1751 = vld [vmem:[#allocation6 + $0xfd0] sm:$0xff]
        %v1752 = vld [vmem:[#allocation6 + $0xfd8] sm:$0xff]
        %v1753 = vld [vmem:[#allocation6 + $0xfe0] sm:$0xff]
        %v1754 = vld [vmem:[#allocation6 + $0xfe8] sm:$0xff]
        %v1755 = vld [vmem:[#allocation6 + $0xff0] sm:$0xff]
        %v1756 = vld [vmem:[#allocation6 + $0xff8] sm:$0xff]
        %v1757 = vld [vmem:[#allocation6 + $0x1000] sm:$0xff]
        %v1758 = vld [vmem:[#allocation6 + $0x1008] sm:$0xff]
        %v1759 = vld [vmem:[#allocation6 + $0x1010] sm:$0xff]
        %v1760 = vld [vmem:[#allocation6 + $0x1018] sm:$0xff]
        %v1761 = vld [vmem:[#allocation6 + $0x1020] sm:$0xff]
        %v1762 = vld [vmem:[#allocation6 + $0x1028] sm:$0xff]
        %v1763 = vld [vmem:[#allocation6 + $0x1030] sm:$0xff]
        %v1764 = vld [vmem:[#allocation6 + $0x1038] sm:$0xff]
        %v1765 = vld [vmem:[#allocation6 + $0x1040] sm:$0xff]
        %v1766 = vld [vmem:[#allocation6 + $0x1048] sm:$0xff]
        %v1767 = vld [vmem:[#allocation6 + $0x1050] sm:$0xff]
        %v1768 = vld [vmem:[#allocation6 + $0x1058] sm:$0xff]
        %v1769 = vld [vmem:[#allocation6 + $0x1060] sm:$0xff]
        %v1770 = vld [vmem:[#allocation6 + $0x1068] sm:$0xff]
        %v1771 = vld [vmem:[#allocation6 + $0x1070] sm:$0xff]
        %v1772 = vld [vmem:[#allocation6 + $0x1078] sm:$0xff]
        %v1773 = vld [vmem:[#allocation6 + $0x1080] sm:$0xff]
        %v1774 = vld [vmem:[#allocation6 + $0x1088] sm:$0xff]
        %v1775 = vld [vmem:[#allocation6 + $0x1090] sm:$0xff]
        %v1776 = vld [vmem:[#allocation6 + $0x1098] sm:$0xff]
        %v1777 = vld [vmem:[#allocation6 + $0x10a0] sm:$0xff]
        %v1778 = vld [vmem:[#allocation6 + $0x10a8] sm:$0xff]
        %v1779 = vld [vmem:[#allocation6 + $0x10b0] sm:$0xff]
        %v1780 = vld [vmem:[#allocation6 + $0x10b8] sm:$0xff]
        %v1781 = vld [vmem:[#allocation6 + $0x10c0] sm:$0xff]
        %v1782 = vld [vmem:[#allocation6 + $0x10c8] sm:$0xff]
        %v1783 = vld [vmem:[#allocation6 + $0x10d0] sm:$0xff]
        %v1784 = vld [vmem:[#allocation6 + $0x10d8] sm:$0xff]
        %v1785 = vld [vmem:[#allocation6 + $0x10e0] sm:$0xff]
        %v1786 = vld [vmem:[#allocation6 + $0x10e8] sm:$0xff]
        %v1787 = vld [vmem:[#allocation6 + $0x10f0] sm:$0xff]
        %v1788 = vld [vmem:[#allocation6 + $0x10f8] sm:$0xff]
        %v1789 = vld [vmem:[#allocation6 + $0x1100] sm:$0xff]
        %v1790 = vld [vmem:[#allocation6 + $0x1108] sm:$0xff]
        %v1791 = vld [vmem:[#allocation6 + $0x1110] sm:$0xff]
        %v1792 = vld [vmem:[#allocation6 + $0x1118] sm:$0xff]
        %v1793 = vld [vmem:[#allocation6 + $0x1120] sm:$0xff]
        %v1794 = vld [vmem:[#allocation6 + $0x1128] sm:$0xff]
        %v1795 = vld [vmem:[#allocation6 + $0x1130] sm:$0xff]
        %v1796 = vld [vmem:[#allocation6 + $0x1138] sm:$0xff]
        %v1797 = vld [vmem:[#allocation6 + $0x1140] sm:$0xff]
        %v1798 = vld [vmem:[#allocation6 + $0x1148] sm:$0xff]
        %v1799 = vld [vmem:[#allocation6 + $0x1150] sm:$0xff]
        %v1800 = vld [vmem:[#allocation6 + $0x1158] sm:$0xff]
        %v1801 = vld [vmem:[#allocation6 + $0x1160] sm:$0xff]
        %v1802 = vld [vmem:[#allocation6 + $0x1168] sm:$0xff]
        %v1803 = vld [vmem:[#allocation6 + $0x1170] sm:$0xff]
        %v1804 = vld [vmem:[#allocation6 + $0x1178] sm:$0xff]
        %v1805 = vld [vmem:[#allocation6 + $0x1180] sm:$0xff]
        %v1806 = vld [vmem:[#allocation6 + $0x1188] sm:$0xff]
        %v1807 = vld [vmem:[#allocation6 + $0x1190] sm:$0xff]
        %v1808 = vld [vmem:[#allocation6 + $0x1198] sm:$0xff]
        %v1809 = vld [vmem:[#allocation6 + $0x11a0] sm:$0xff]
        %v1810 = vld [vmem:[#allocation6 + $0x11a8] sm:$0xff]
        %v1811 = vld [vmem:[#allocation6 + $0x11b0] sm:$0xff]
        %v1812 = vld [vmem:[#allocation6 + $0x11b8] sm:$0xff]
        %v1813 = vld [vmem:[#allocation6 + $0x11c0] sm:$0xff]
        %v1814 = vld [vmem:[#allocation6 + $0x11c8] sm:$0xff]
        %v1815 = vld [vmem:[#allocation6 + $0x11d0] sm:$0xff]
        %v1816 = vld [vmem:[#allocation6 + $0x11d8] sm:$0xff]
        %v1817 = vld [vmem:[#allocation6 + $0x11e0] sm:$0xff]
        %v1818 = vld [vmem:[#allocation6 + $0x11e8] sm:$0xff]
        %v1819 = vld [vmem:[#allocation6 + $0x11f0] sm:$0xff]
        %v1820 = vld [vmem:[#allocation6 + $0x11f8] sm:$0xff]
        %v1821 = vld [vmem:[#allocation6 + $0x1200] sm:$0xff]
        %v1822 = vld [vmem:[#allocation6 + $0x1208] sm:$0xff]
        %v1823 = vld [vmem:[#allocation6 + $0x1210] sm:$0xff]
        %v1824 = vld [vmem:[#allocation6 + $0x1218] sm:$0xff]
        %v1825 = vld [vmem:[#allocation6 + $0x1220] sm:$0xff]
        %v1826 = vld [vmem:[#allocation6 + $0x1228] sm:$0xff]
        %v1827 = vld [vmem:[#allocation6 + $0x1230] sm:$0xff]
        %v1828 = vld [vmem:[#allocation6 + $0x1238] sm:$0xff]
        %v1829 = vld [vmem:[#allocation6 + $0x1240] sm:$0xff]
        %v1830 = vld [vmem:[#allocation6 + $0x1248] sm:$0xff]
        %v1831 = vld [vmem:[#allocation6 + $0x1250] sm:$0xff]
        %v1832 = vld [vmem:[#allocation6 + $0x1258] sm:$0xff]
        %v1833 = vld [vmem:[#allocation6 + $0x1260] sm:$0xff]
        %v1834 = vld [vmem:[#allocation6 + $0x1268] sm:$0xff]
        %v1835 = vld [vmem:[#allocation6 + $0x1270] sm:$0xff]
        %v1836 = vld [vmem:[#allocation6 + $0x1278] sm:$0xff]
        %v1837 = vld [vmem:[#allocation6 + $0x1280] sm:$0xff]
        %v1838 = vld [vmem:[#allocation6 + $0x1288] sm:$0xff]
        %v1839 = vld [vmem:[#allocation6 + $0x1290] sm:$0xff]
        %v1840 = vld [vmem:[#allocation6 + $0x1298] sm:$0xff]
        %v1841 = vld [vmem:[#allocation6 + $0x12a0] sm:$0xff]
        %v1842 = vld [vmem:[#allocation6 + $0x12a8] sm:$0xff]
        %v1843 = vld [vmem:[#allocation6 + $0x12b0] sm:$0xff]
        %v1844 = vld [vmem:[#allocation6 + $0x12b8] sm:$0xff]
        %v1845 = vld [vmem:[#allocation6 + $0x12c0] sm:$0xff]
        %v1846 = vld [vmem:[#allocation6 + $0x12c8] sm:$0xff]
        %v1847 = vld [vmem:[#allocation6 + $0x12d0] sm:$0xff]
        %v1848 = vld [vmem:[#allocation6 + $0x12d8] sm:$0xff]
        %v1849 = vld [vmem:[#allocation6 + $0x12e0] sm:$0xff]
        %v1850 = vld [vmem:[#allocation6 + $0x12e8] sm:$0xff]
        %v1851 = vld [vmem:[#allocation6 + $0x12f0] sm:$0xff]
        %v1852 = vld [vmem:[#allocation6 + $0x12f8] sm:$0xff]
        %v1853 = vld [vmem:[#allocation6 + $0x1300] sm:$0xff]
        %v1854 = vld [vmem:[#allocation6 + $0x1308] sm:$0xff]
        %v1855 = vld [vmem:[#allocation6 + $0x1310] sm:$0xff]
        %v1856 = vld [vmem:[#allocation6 + $0x1318] sm:$0xff]
        %v1857 = vld [vmem:[#allocation6 + $0x1320] sm:$0xff]
        %v1858 = vld [vmem:[#allocation6 + $0x1328] sm:$0xff]
        %v1859 = vld [vmem:[#allocation6 + $0x1330] sm:$0xff]
        %v1860 = vld [vmem:[#allocation6 + $0x1338] sm:$0xff]
        %v1861 = vld [vmem:[#allocation6 + $0x1340] sm:$0xff]
        %v1862 = vld [vmem:[#allocation6 + $0x1348] sm:$0xff]
        %v1863 = vld [vmem:[#allocation6 + $0x1350] sm:$0xff]
        %v1864 = vld [vmem:[#allocation6 + $0x1358] sm:$0xff]
        %v1865 = vld [vmem:[#allocation6 + $0x1360] sm:$0xff]
        %v1866 = vld [vmem:[#allocation6 + $0x1368] sm:$0xff]
        %v1867 = vld [vmem:[#allocation6 + $0x1370] sm:$0xff]
        %v1868 = vld [vmem:[#allocation6 + $0x1378] sm:$0xff]
        %v1869 = vld [vmem:[#allocation6 + $0x1380] sm:$0xff]
        %v1870 = vld [vmem:[#allocation6 + $0x1388] sm:$0xff]
        %v1871 = vld [vmem:[#allocation6 + $0x1390] sm:$0xff]
        %v1872 = vld [vmem:[#allocation6 + $0x1398] sm:$0xff]
        %v1873 = vld [vmem:[#allocation6 + $0x13a0] sm:$0xff]
        %v1874 = vld [vmem:[#allocation6 + $0x13a8] sm:$0xff]
        %v1875 = vld [vmem:[#allocation6 + $0x13b0] sm:$0xff]
        %v1876 = vld [vmem:[#allocation6 + $0x13b8] sm:$0xff]
        %v1877 = vld [vmem:[#allocation6 + $0x13c0] sm:$0xff]
        %v1878 = vld [vmem:[#allocation6 + $0x13c8] sm:$0xff]
        %v1879 = vld [vmem:[#allocation6 + $0x13d0] sm:$0xff]
        %v1880 = vld [vmem:[#allocation6 + $0x13d8] sm:$0xff]
        %v1881 = vld [vmem:[#allocation6 + $0x13e0] sm:$0xff]
        %v1882 = vld [vmem:[#allocation6 + $0x13e8] sm:$0xff]
        %v1883 = vld [vmem:[#allocation6 + $0x13f0] sm:$0xff]
        %v1884 = vld [vmem:[#allocation6 + $0x13f8] sm:$0xff]
        %v1885 = vld [vmem:[#allocation6 + $0x1400] sm:$0xff]
        %v1886 = vld [vmem:[#allocation6 + $0x1408] sm:$0xff]
        %v1887 = vld [vmem:[#allocation6 + $0x1410] sm:$0xff]
        %v1888 = vld [vmem:[#allocation6 + $0x1418] sm:$0xff]
        %v1889 = vld [vmem:[#allocation6 + $0x1420] sm:$0xff]
        %v1890 = vld [vmem:[#allocation6 + $0x1428] sm:$0xff]
        %v1891 = vld [vmem:[#allocation6 + $0x1430] sm:$0xff]
        %v1892 = vld [vmem:[#allocation6 + $0x1438] sm:$0xff]
        %v1893 = vld [vmem:[#allocation6 + $0x1440] sm:$0xff]
        %v1894 = vld [vmem:[#allocation6 + $0x1448] sm:$0xff]
        %v1895 = vld [vmem:[#allocation6 + $0x1450] sm:$0xff]
        %v1896 = vld [vmem:[#allocation6 + $0x1458] sm:$0xff]
        %v1897 = vld [vmem:[#allocation6 + $0x1460] sm:$0xff]
        %v1898 = vld [vmem:[#allocation6 + $0x1468] sm:$0xff]
        %v1899 = vld [vmem:[#allocation6 + $0x1470] sm:$0xff]
        %v1900 = vld [vmem:[#allocation6 + $0x1478] sm:$0xff]
        %v1901 = vld [vmem:[#allocation6 + $0x1480] sm:$0xff]
        %v1902 = vld [vmem:[#allocation6 + $0x1488] sm:$0xff]
        %v1903 = vld [vmem:[#allocation6 + $0x1490] sm:$0xff]
        %v1904 = vld [vmem:[#allocation6 + $0x1498] sm:$0xff]
        %v1905 = vsel %vm865, %v1102, 0
        %v1908 = vsel %vm865, %v1244, 0
        %v1910 = vsel %vm865, %v1216, 0
        %1912 = vmatprep.subr.mxu0 %v1246
        %1913 = vmatpush1.msra.mxu0 %v1245
        %1914 = vmatprep.subr.mxu0 %v1251
        %1915 = vmatpush1.msra.mxu0 %v1250
        %1916 = vmatprep.subr.mxu0 %v1256
        %1917 = vmatpush1.msra.mxu0 %v1255
        %1918 = vmatprep.subr.mxu0 %v1261
        %1919 = vmatpush1.msra.mxu0 %v1260
        %1920 = vmatprep.subr.mxu0 %v1266
        %1921 = vmatpush1.msra.mxu0 %v1265
        %1922 = vmatprep.subr.mxu0 %v1271
        %1923 = vmatpush1.msra.mxu0 %v1270
        %1924 = vmatprep.subr.mxu0 %v1276
        %1925 = vmatpush1.msra.mxu0 %v1275
        %1926 = vmatprep.subr.mxu0 %v1281
        %1927 = vmatpush1.msra.mxu0 %v1280
        %1928 = vmatprep.subr.mxu0 %v1286
        %1929 = vmatpush1.msra.mxu0 %v1285
        %1930 = vmatprep.subr.mxu0 %v1291
        %1931 = vmatpush1.msra.mxu0 %v1290
        %1932 = vmatprep.subr.mxu0 %v1296
        %1933 = vmatpush1.msra.mxu0 %v1295
        %1934 = vmatprep.subr.mxu0 %v1301
        %1935 = vmatpush1.msra.mxu0 %v1300
        %1936 = vmatprep.subr.mxu0 %v1306
        %1937 = vmatpush1.msra.mxu0 %v1305
        %1938 = vmatprep.subr.mxu0 %v1311
        %1939 = vmatpush1.msra.mxu0 %v1310
        %1940 = vmatprep.subr.mxu0 %v1316
        %1941 = vmatpush1.msra.mxu0 %v1315
        %1942 = vmatprep.subr.mxu0 %v1321
        %1943 = vmatpush1.msra.mxu0 %v1320
        %1944 = vmatprep.subr.mxu0 %v1326
        %1945 = vmatpush1.msra.mxu0 %v1325
        %1946 = vmatprep.subr.mxu0 %v1331
        %1947 = vmatpush1.msra.mxu0 %v1330
        %1948 = vmatprep.subr.mxu0 %v1336
        %1949 = vmatpush1.msra.mxu0 %v1335
        %1950 = vmatprep.subr.mxu0 %v1341
        %1951 = vmatpush1.msra.mxu0 %v1340
        %1952 = vmatprep.subr.mxu0 %v1346
        %1953 = vmatpush1.msra.mxu0 %v1345
        %1954 = vmatprep.subr.mxu0 %v1351
        %1955 = vmatpush1.msra.mxu0 %v1350
        %1956 = vmatprep.subr.mxu0 %v1356
        %1957 = vmatpush1.msra.mxu0 %v1355
        %1958 = vmatprep.subr.mxu0 %v1361
        %1959 = vmatpush1.msra.mxu0 %v1360
        %1960 = vmatprep.subr.mxu0 %v1366
        %1961 = vmatpush1.msra.mxu0 %v1365
        %1962 = vmatprep.subr.mxu0 %v1371
        %1963 = vmatpush1.msra.mxu0 %v1370
        %1964 = vmatprep.subr.mxu0 %v1376
        %1965 = vmatpush1.msra.mxu0 %v1375
        %1966 = vmatprep.subr.mxu0 %v1381
        %1967 = vmatpush1.msra.mxu0 %v1380
        %1968 = vmatprep.subr.mxu0 %v1386
        %1969 = vmatpush1.msra.mxu0 %v1385
        %1970 = vmatprep.subr.mxu0 %v1391
        %1971 = vmatpush1.msra.mxu0 %v1390
        %1972 = vmatprep.subr.mxu0 %v1396
        %1973 = vmatpush1.msra.mxu0 %v1395
        %1974 = vmatprep.subr.mxu0 %v1401
        %1975 = vmatpush1.msra.mxu0 %v1400
        %1976 = vmatprep.mubr.f32.mxu0 %v955
        %1977 = vmatmul.mubr.f32.gmra.mrb[0].mxu0 %v954
        %v1978 = vpop.f32.mrb[0].mxu0
        %v1979 = vadd.f32 0.0, %v1978
        %v1980 = vpop.f32.mrb[0].mxu0
        %v1981 = vadd.f32 0.0, %v1980
        %1982 = vmatprep.mubr.f32.mxu0 %v1237
        %1983 = vmatmul.mubr.f32.gmra.mrb[0].mxu0 %v1236
        %v1984 = vpop.f32.mrb[0].mxu0
        %v1985 = vadd.f32 0.0, %v1984
        %v1986 = vpop.f32.mrb[0].mxu0
        %v1987 = vadd.f32 0.0, %v1986
        %1988 = vmatprep.mubr.f32.mxu0 %v1195
        %1989 = vmatmul.mubr.f32.gmra.mrb[0].mxu0 %v1192
        %v1990 = vpop.f32.mrb[0].mxu0
        %v1991 = vadd.f32 0.0, %v1990
        %v1992 = vpop.f32.mrb[0].mxu0
        %v1993 = vadd.f32 0.0, %v1992
        %1994 = vdwg.mxu0
        %1995 = vmatprep.subr.mxu0 %v1406
        %1996 = vmatpush1.msra.mxu0 %v1405
        %1997 = vmatprep.subr.mxu0 %v1411
        %1998 = vmatpush1.msra.mxu0 %v1410
        %1999 = vmatprep.subr.mxu0 %v1416
        %2000 = vmatpush1.msra.mxu0 %v1415
        %2001 = vmatprep.subr.mxu0 %v1421
        %2002 = vmatpush1.msra.mxu0 %v1420
        %2003 = vmatprep.subr.mxu0 %v1426
        %2004 = vmatpush1.msra.mxu0 %v1425
        %2005 = vmatprep.subr.mxu0 %v1431
        %2006 = vmatpush1.msra.mxu0 %v1430
        %2007 = vmatprep.subr.mxu0 %v1436
        %2008 = vmatpush1.msra.mxu0 %v1435
        %2009 = vmatprep.subr.mxu0 %v1441
        %2010 = vmatpush1.msra.mxu0 %v1440
        %2011 = vmatprep.subr.mxu0 %v1446
        %2012 = vmatpush1.msra.mxu0 %v1445
        %2013 = vmatprep.subr.mxu0 %v1451
        %2014 = vmatpush1.msra.mxu0 %v1450
        %2015 = vmatprep.subr.mxu0 %v1456
        %2016 = vmatpush1.msra.mxu0 %v1455
        %2017 = vmatprep.subr.mxu0 %v1461
        %2018 = vmatpush1.msra.mxu0 %v1460
        %2019 = vmatprep.subr.mxu0 %v1466
        %2020 = vmatpush1.msra.mxu0 %v1465
        %2021 = vmatprep.subr.mxu0 %v1471
        %2022 = vmatpush1.msra.mxu0 %v1470
        %2023 = vmatprep.subr.mxu0 %v1476
        %2024 = vmatpush1.msra.mxu0 %v1475
        %2025 = vmatprep.subr.mxu0 %v1481
        %2026 = vmatpush1.msra.mxu0 %v1480
        %2027 = vmatprep.subr.mxu0 %v1486
        %2028 = vmatpush1.msra.mxu0 %v1485
        %2029 = vmatprep.subr.mxu0 %v1491
        %2030 = vmatpush1.msra.mxu0 %v1490
        %2031 = vmatprep.subr.mxu0 %v1496
        %2032 = vmatpush1.msra.mxu0 %v1495
        %2033 = vmatprep.subr.mxu0 %v1501
        %2034 = vmatpush1.msra.mxu0 %v1500
        %2035 = vmatprep.subr.mxu0 %v1506
        %2036 = vmatpush1.msra.mxu0 %v1505
        %2037 = vmatprep.subr.mxu0 %v1511
        %2038 = vmatpush1.msra.mxu0 %v1510
        %2039 = vmatprep.subr.mxu0 %v1516
        %2040 = vmatpush1.msra.mxu0 %v1515
        %2041 = vmatprep.subr.mxu0 %v1521
        %2042 = vmatpush1.msra.mxu0 %v1520
        %2043 = vmatprep.subr.mxu0 %v1526
        %2044 = vmatpush1.msra.mxu0 %v1525
        %2045 = vmatprep.subr.mxu0 %v1531
        %2046 = vmatpush1.msra.mxu0 %v1530
        %2047 = vmatprep.subr.mxu0 %v1536
        %2048 = vmatpush1.msra.mxu0 %v1535
        %2049 = vmatprep.subr.mxu0 %v1541
        %2050 = vmatpush1.msra.mxu0 %v1540
        %2051 = vmatprep.subr.mxu0 %v1546
        %2052 = vmatpush1.msra.mxu0 %v1545
        %2053 = vmatprep.subr.mxu0 %v1551
        %2054 = vmatpush1.msra.mxu0 %v1550
        %2055 = vmatprep.subr.mxu0 %v1556
        %2056 = vmatpush1.msra.mxu0 %v1555
        %2057 = vmatprep.subr.mxu0 %v1561
        %2058 = vmatpush1.msra.mxu0 %v1560
        %2059 = vmatprep.mubr.f32.mxu0 %v1069
        %2060 = vmatmul.mubr.f32.gmra.mrb[0].mxu0 %v1121
        %v2061 = vpop.f32.mrb[0].mxu0
        %v2062 = vadd.f32 %v1979, %v2061
        %v2063 = vpop.f32.mrb[0].mxu0
        %v2064 = vadd.f32 %v1981, %v2063
        %2065 = vmatprep.mubr.f32.mxu0 %v1239
        %2066 = vmatmul.mubr.f32.gmra.mrb[0].mxu0 %v1238
        %v2067 = vpop.f32.mrb[0].mxu0
        %v2068 = vadd.f32 %v1985, %v2067
        %v2069 = vpop.f32.mrb[0].mxu0
        %v2070 = vadd.f32 %v1987, %v2069
        %2071 = vmatprep.mubr.f32.mxu0 %v1201
        %2072 = vmatmul.mubr.f32.gmra.mrb[0].mxu0 %v1198
        %v2073 = vpop.f32.mrb[0].mxu0
        %v2074 = vadd.f32 %v1991, %v2073
        %v2075 = vpop.f32.mrb[0].mxu0
        %v2076 = vadd.f32 %v1993, %v2075
        %2077 = vdwg.mxu0
        %2078 = vmatprep.subr.mxu0 %v1566
        %2079 = vmatpush1.msra.mxu0 %v1565
        %2080 = vmatprep.subr.mxu0 %v1571
        %2081 = vmatpush1.msra.mxu0 %v1570
        %2082 = vmatprep.subr.mxu0 %v1576
        %2083 = vmatpush1.msra.mxu0 %v1575
        %2084 = vmatprep.subr.mxu0 %v1581
        %2085 = vmatpush1.msra.mxu0 %v1580
        %2086 = vmatprep.subr.mxu0 %v1586
        %2087 = vmatpush1.msra.mxu0 %v1585
        %2088 = vmatprep.subr.mxu0 %v1591
        %2089 = vmatpush1.msra.mxu0 %v1590
        %2090 = vmatprep.subr.mxu0 %v1596
        %2091 = vmatpush1.msra.mxu0 %v1595
        %2092 = vmatprep.subr.mxu0 %v1601
        %2093 = vmatpush1.msra.mxu0 %v1600
        %2094 = vmatprep.subr.mxu0 %v1606
        %2095 = vmatpush1.msra.mxu0 %v1605
        %2096 = vmatprep.subr.mxu0 %v1611
        %2097 = vmatpush1.msra.mxu0 %v1610
        %2098 = vmatprep.subr.mxu0 %v1616
        %2099 = vmatpush1.msra.mxu0 %v1615
        %2100 = vmatprep.subr.mxu0 %v1621
        %2101 = vmatpush1.msra.mxu0 %v1620
        %2102 = vmatprep.subr.mxu0 %v1626
        %2103 = vmatpush1.msra.mxu0 %v1625
        %2104 = vmatprep.subr.mxu0 %v1631
        %2105 = vmatpush1.msra.mxu0 %v1630
        %2106 = vmatprep.subr.mxu0 %v1636
        %2107 = vmatpush1.msra.mxu0 %v1635
        %2108 = vmatprep.subr.mxu0 %v1641
        %2109 = vmatpush1.msra.mxu0 %v1640
        %2110 = vmatprep.subr.mxu0 %v1646
        %2111 = vmatpush1.msra.mxu0 %v1645
        %2112 = vmatprep.subr.mxu0 %v1651
        %2113 = vmatpush1.msra.mxu0 %v1650
        %2114 = vmatprep.subr.mxu0 %v1656
        %2115 = vmatpush1.msra.mxu0 %v1655
        %2116 = vmatprep.subr.mxu0 %v1661
        %2117 = vmatpush1.msra.mxu0 %v1660
        %2118 = vmatprep.subr.mxu0 %v1666
        %2119 = vmatpush1.msra.mxu0 %v1665
        %2120 = vmatprep.subr.mxu0 %v1671
        %2121 = vmatpush1.msra.mxu0 %v1670
        %2122 = vmatprep.subr.mxu0 %v1676
        %2123 = vmatpush1.msra.mxu0 %v1675
        %2124 = vmatprep.subr.mxu0 %v1681
        %2125 = vmatpush1.msra.mxu0 %v1680
        %2126 = vmatprep.subr.mxu0 %v1686
        %2127 = vmatpush1.msra.mxu0 %v1685
        %2128 = vmatprep.subr.mxu0 %v1691
        %2129 = vmatpush1.msra.mxu0 %v1690
        %2130 = vmatprep.subr.mxu0 %v1696
        %2131 = vmatpush1.msra.mxu0 %v1695
        %2132 = vmatprep.subr.mxu0 %v1701
        %2133 = vmatpush1.msra.mxu0 %v1700
        %2134 = vmatprep.subr.mxu0 %v1706
        %2135 = vmatpush1.msra.mxu0 %v1705
        %2136 = vmatprep.subr.mxu0 %v1711
        %2137 = vmatpush1.msra.mxu0 %v1710
        %2138 = vmatprep.subr.mxu0 %v1716
        %2139 = vmatpush1.msra.mxu0 %v1715
        %2140 = vmatprep.subr.mxu0 %v1721
        %2141 = vmatpush1.msra.mxu0 %v1720
        %2142 = vmatprep.mubr.f32.mxu0 %v1123
        %2143 = vmatmul.mubr.f32.gmra.mrb[0].mxu0 %v1070
        %v2144 = vpop.f32.mrb[0].mxu0
        %v2145 = vadd.f32 %v2062, %v2144
        %v2146 = vpop.f32.mrb[0].mxu0
        %v2147 = vadd.f32 %v2064, %v2146
        %2148 = vmatprep.mubr.f32.mxu0 %v1241
        %2149 = vmatmul.mubr.f32.gmra.mrb[0].mxu0 %v1240
        %v2150 = vpop.f32.mrb[0].mxu0
        %v2151 = vadd.f32 %v2068, %v2150
        %v2152 = vpop.f32.mrb[0].mxu0
        %v2153 = vadd.f32 %v2070, %v2152
        %2154 = vmatprep.mubr.f32.mxu0 %v1207
        %2155 = vmatmul.mubr.f32.gmra.mrb[0].mxu0 %v1204
        %v2156 = vpop.f32.mrb[0].mxu0
        %v2157 = vadd.f32 %v2074, %v2156
        %v2158 = vpop.f32.mrb[0].mxu0
        %v2159 = vadd.f32 %v2076, %v2158
        %2160 = vdwg.mxu0
        %2161 = vmatprep.subr.mxu0 %v1726
        %2162 = vmatpush1.msra.mxu0 %v1725
        %2163 = vmatprep.subr.mxu0 %v1731
        %2164 = vmatpush1.msra.mxu0 %v1730
        %2165 = vmatprep.subr.mxu0 %v1736
        %2166 = vmatpush1.msra.mxu0 %v1735
        %2167 = vmatprep.subr.mxu0 %v1741
        %2168 = vmatpush1.msra.mxu0 %v1740
        %2169 = vmatprep.subr.mxu0 %v1746
        %2170 = vmatpush1.msra.mxu0 %v1745
        %2171 = vmatprep.subr.mxu0 %v1751
        %2172 = vmatpush1.msra.mxu0 %v1750
        %2173 = vmatprep.subr.mxu0 %v1756
        %2174 = vmatpush1.msra.mxu0 %v1755
        %2175 = vmatprep.subr.mxu0 %v1761
        %2176 = vmatpush1.msra.mxu0 %v1760
        %2177 = vmatprep.subr.mxu0 %v1766
        %2178 = vmatpush1.msra.mxu0 %v1765
        %2179 = vmatprep.subr.mxu0 %v1771
        %2180 = vmatpush1.msra.mxu0 %v1770
        %2181 = vmatprep.subr.mxu0 %v1776
        %2182 = vmatpush1.msra.mxu0 %v1775
        %2183 = vmatprep.subr.mxu0 %v1781
        %2184 = vmatpush1.msra.mxu0 %v1780
        %2185 = vmatprep.subr.mxu0 %v1786
        %2186 = vmatpush1.msra.mxu0 %v1785
        %2187 = vmatprep.subr.mxu0 %v1791
        %2188 = vmatpush1.msra.mxu0 %v1790
        %2189 = vmatprep.subr.mxu0 %v1796
        %2190 = vmatpush1.msra.mxu0 %v1795
        %2191 = vmatprep.subr.mxu0 %v1801
        %2192 = vmatpush1.msra.mxu0 %v1800
        %2193 = vmatprep.subr.mxu0 %v1806
        %2194 = vmatpush1.msra.mxu0 %v1805
        %2195 = vmatprep.subr.mxu0 %v1811
        %2196 = vmatpush1.msra.mxu0 %v1810
        %2197 = vmatprep.subr.mxu0 %v1816
        %2198 = vmatpush1.msra.mxu0 %v1815
        %2199 = vmatprep.subr.mxu0 %v1821
        %2200 = vmatpush1.msra.mxu0 %v1820
        %2201 = vmatprep.subr.mxu0 %v1826
        %2202 = vmatpush1.msra.mxu0 %v1825
        %2203 = vmatprep.subr.mxu0 %v1831
        %2204 = vmatpush1.msra.mxu0 %v1830
        %2205 = vmatprep.subr.mxu0 %v1836
        %2206 = vmatpush1.msra.mxu0 %v1835
        %2207 = vmatprep.subr.mxu0 %v1841
        %2208 = vmatpush1.msra.mxu0 %v1840
        %2209 = vmatprep.subr.mxu0 %v1846
        %2210 = vmatpush1.msra.mxu0 %v1845
        %2211 = vmatprep.subr.mxu0 %v1851
        %2212 = vmatpush1.msra.mxu0 %v1850
        %2213 = vmatprep.subr.mxu0 %v1856
        %2214 = vmatpush1.msra.mxu0 %v1855
        %2215 = vmatprep.subr.mxu0 %v1861
        %2216 = vmatpush1.msra.mxu0 %v1860
        %2217 = vmatprep.subr.mxu0 %v1866
        %2218 = vmatpush1.msra.mxu0 %v1865
        %2219 = vmatprep.subr.mxu0 %v1871
        %2220 = vmatpush1.msra.mxu0 %v1870
        %2221 = vmatprep.subr.mxu0 %v1876
        %2222 = vmatpush1.msra.mxu0 %v1875
        %2223 = vmatprep.subr.mxu0 %v1881
        %2224 = vmatpush1.msra.mxu0 %v1880
        %2225 = vmatprep.mubr.f32.mxu0 %v1111
        %2226 = vmatmul.mubr.f32.gmra.mrb[0].mxu0 %v1110
        %v2227 = vpop.f32.mrb[0].mxu0
        %v2228 = vadd.f32 %v2145, %v2227
        %v2229 = vpop.f32.mrb[0].mxu0
        %v2230 = vadd.f32 %v2147, %v2229
        %2231 = vmatprep.mubr.f32.mxu0 %v1243
        %2232 = vmatmul.mubr.f32.gmra.mrb[0].mxu0 %v1242
        %v2233 = vpop.f32.mrb[0].mxu0
        %v2234 = vadd.f32 %v2151, %v2233
        %v2235 = vpop.f32.mrb[0].mxu0
        %v2236 = vadd.f32 %v2153, %v2235
        %2237 = vmatprep.mubr.f32.mxu0 %v1213
        %2238 = vmatmul.mubr.f32.gmra.mrb[0].mxu0 %v1210
        %v2239 = vpop.f32.mrb[0].mxu0
        %v2240 = vadd.f32 %v2157, %v2239
        %v2241 = vpop.f32.mrb[0].mxu0
        %v2242 = vadd.f32 %v2159, %v2241
        %2243 = vdwg.mxu0
        %2244 = vmatprep.subr.mxu0 %v1886
        %2245 = vmatpush1.msra.mxu0 %v1885
        %2246 = vmatprep.subr.mxu0 %v1891
        %2247 = vmatpush1.msra.mxu0 %v1890
        %2248 = vmatprep.subr.mxu0 %v1896
        %2249 = vmatpush1.msra.mxu0 %v1895
        %2250 = vmatprep.subr.mxu0 %v1901
        %2251 = vmatpush1.msra.mxu0 %v1900
        %2252 = vmatprep.subr.mxu0 0.0
        %2253 = vmatpush1.msra.mxu0 0.0
        %2254 = vmatprep.subr.mxu0 0.0
        %2255 = vmatpush1.msra.mxu0 0.0
        %2256 = vmatprep.subr.mxu0 0.0
        %2257 = vmatpush1.msra.mxu0 0.0
        %2258 = vmatprep.subr.mxu0 0.0
        %2259 = vmatpush1.msra.mxu0 0.0
        %2260 = vmatprep.subr.mxu0 0.0
        %2261 = vmatpush1.msra.mxu0 0.0
        %2262 = vmatprep.subr.mxu0 0.0
        %2263 = vmatpush1.msra.mxu0 0.0
        %2264 = vmatprep.subr.mxu0 0.0
        %2265 = vmatpush1.msra.mxu0 0.0
        %2266 = vmatprep.subr.mxu0 0.0
        %2267 = vmatpush1.msra.mxu0 0.0
        %2268 = vmatprep.subr.mxu0 0.0
        %2269 = vmatpush1.msra.mxu0 0.0
        %2270 = vmatprep.subr.mxu0 0.0
        %2271 = vmatpush1.msra.mxu0 0.0
        %2272 = vmatprep.subr.mxu0 0.0
        %2273 = vmatpush1.msra.mxu0 0.0
        %2274 = vmatprep.subr.mxu0 0.0
        %2275 = vmatpush1.msra.mxu0 0.0
        %2276 = vmatprep.subr.mxu0 0.0
        %2277 = vmatpush1.msra.mxu0 0.0
        %2278 = vmatprep.subr.mxu0 0.0
        %2279 = vmatpush1.msra.mxu0 0.0
        %2280 = vmatprep.subr.mxu0 0.0
        %2281 = vmatpush1.msra.mxu0 0.0
        %2282 = vmatprep.subr.mxu0 0.0
        %2283 = vmatpush1.msra.mxu0 0.0
        %2284 = vmatprep.subr.mxu0 0.0
        %2285 = vmatpush1.msra.mxu0 0.0
        %2286 = vmatprep.subr.mxu0 0.0
        %2287 = vmatpush1.msra.mxu0 0.0
        %2288 = vmatprep.subr.mxu0 0.0
        %2289 = vmatpush1.msra.mxu0 0.0
        %2290 = vmatprep.subr.mxu0 0.0
        %2291 = vmatpush1.msra.mxu0 0.0
        %2292 = vmatprep.subr.mxu0 0.0
        %2293 = vmatpush1.msra.mxu0 0.0
        %2294 = vmatprep.subr.mxu0 0.0
        %2295 = vmatpush1.msra.mxu0 0.0
        %2296 = vmatprep.subr.mxu0 0.0
        %2297 = vmatpush1.msra.mxu0 0.0
        %2298 = vmatprep.subr.mxu0 0.0
        %2299 = vmatpush1.msra.mxu0 0.0
        %2300 = vmatprep.subr.mxu0 0.0
        %2301 = vmatpush1.msra.mxu0 0.0
        %2302 = vmatprep.subr.mxu0 0.0
        %2303 = vmatpush1.msra.mxu0 0.0
        %2304 = vmatprep.subr.mxu0 0.0
        %2305 = vmatpush1.msra.mxu0 0.0
        %2306 = vmatprep.subr.mxu0 0.0
        %2307 = vmatpush1.msra.mxu0 0.0
        %2308 = vmatprep.mubr.f32.mxu0 0.0
        %2309 = vmatmul.mubr.f32.gmra.mrb[0].mxu0 %v1905
        %v2310 = vpop.f32.mrb[0].mxu0
        %v2311 = vadd.f32 %v2228, %v2310
        %v2312 = vpop.f32.mrb[0].mxu0
        %v2313 = vadd.f32 %v2230, %v2312
        %2314 = vmatprep.mubr.f32.mxu0 0.0
        %2315 = vmatmul.mubr.f32.gmra.mrb[0].mxu0 %v1908
        %v2316 = vpop.f32.mrb[0].mxu0
        %v2317 = vadd.f32 %v2234, %v2316
        %v2318 = vpop.f32.mrb[0].mxu0
        %v2319 = vadd.f32 %v2236, %v2318
        %2320 = vmatprep.mubr.f32.mxu0 0.0
        %2321 = vmatmul.mubr.f32.gmra.mrb[0].mxu0 %v1910
        %v2322 = vpop.f32.mrb[0].mxu0
        %v2323 = vadd.f32 %v2240, %v2322
        %v2324 = vpop.f32.mrb[0].mxu0
        %v2325 = vadd.f32 %v2242, %v2324
        %2326 = vdwg.mxu0
        %2327 = vmatprep.subr.mxu0 %v1248
        %2328 = vmatpush1.msra.mxu0 %v1247
        %2329 = vmatprep.subr.mxu0 %v1253
        %2330 = vmatpush1.msra.mxu0 %v1252
        %2331 = vmatprep.subr.mxu0 %v1258
        %2332 = vmatpush1.msra.mxu0 %v1257
        %2333 = vmatprep.subr.mxu0 %v1263
        %2334 = vmatpush1.msra.mxu0 %v1262
        %2335 = vmatprep.subr.mxu0 %v1268
        %2336 = vmatpush1.msra.mxu0 %v1267
        %2337 = vmatprep.subr.mxu0 %v1273
        %2338 = vmatpush1.msra.mxu0 %v1272
        %2339 = vmatprep.subr.mxu0 %v1278
        %2340 = vmatpush1.msra.mxu0 %v1277
        %2341 = vmatprep.subr.mxu0 %v1283
        %2342 = vmatpush1.msra.mxu0 %v1282
        %2343 = vmatprep.subr.mxu0 %v1288
        %2344 = vmatpush1.msra.mxu0 %v1287
        %2345 = vmatprep.subr.mxu0 %v1293
        %2346 = vmatpush1.msra.mxu0 %v1292
        %2347 = vmatprep.subr.mxu0 %v1298
        %2348 = vmatpush1.msra.mxu0 %v1297
        %2349 = vmatprep.subr.mxu0 %v1303
        %2350 = vmatpush1.msra.mxu0 %v1302
        %2351 = vmatprep.subr.mxu0 %v1308
        %2352 = vmatpush1.msra.mxu0 %v1307
        %2353 = vmatprep.subr.mxu0 %v1313
        %2354 = vmatpush1.msra.mxu0 %v1312
        %2355 = vmatprep.subr.mxu0 %v1318
        %2356 = vmatpush1.msra.mxu0 %v1317
        %2357 = vmatprep.subr.mxu0 %v1323
        %2358 = vmatpush1.msra.mxu0 %v1322
        %2359 = vmatprep.subr.mxu0 %v1328
        %2360 = vmatpush1.msra.mxu0 %v1327
        %2361 = vmatprep.subr.mxu0 %v1333
        %2362 = vmatpush1.msra.mxu0 %v1332
        %2363 = vmatprep.subr.mxu0 %v1338
        %2364 = vmatpush1.msra.mxu0 %v1337
        %2365 = vmatprep.subr.mxu0 %v1343
        %2366 = vmatpush1.msra.mxu0 %v1342
        %2367 = vmatprep.subr.mxu0 %v1348
        %2368 = vmatpush1.msra.mxu0 %v1347
        %2369 = vmatprep.subr.mxu0 %v1353
        %2370 = vmatpush1.msra.mxu0 %v1352
        %2371 = vmatprep.subr.mxu0 %v1358
        %2372 = vmatpush1.msra.mxu0 %v1357
        %2373 = vmatprep.subr.mxu0 %v1363
        %2374 = vmatpush1.msra.mxu0 %v1362
        %2375 = vmatprep.subr.mxu0 %v1368
        %2376 = vmatpush1.msra.mxu0 %v1367
        %2377 = vmatprep.subr.mxu0 %v1373
        %2378 = vmatpush1.msra.mxu0 %v1372
        %2379 = vmatprep.subr.mxu0 %v1378
        %2380 = vmatpush1.msra.mxu0 %v1377
        %2381 = vmatprep.subr.mxu0 %v1383
        %2382 = vmatpush1.msra.mxu0 %v1382
        %2383 = vmatprep.subr.mxu0 %v1388
        %2384 = vmatpush1.msra.mxu0 %v1387
        %2385 = vmatprep.subr.mxu0 %v1393
        %2386 = vmatpush1.msra.mxu0 %v1392
        %2387 = vmatprep.subr.mxu0 %v1398
        %2388 = vmatpush1.msra.mxu0 %v1397
        %2389 = vmatprep.subr.mxu0 %v1403
        %2390 = vmatpush1.msra.mxu0 %v1402
        %2391 = vmatprep.mubr.f32.mxu0 %v955
        %2392 = vmatmul.mubr.f32.gmra.mrb[0].mxu0 %v954
        %v2393 = vpop.f32.mrb[0].mxu0
        %v2394 = vadd.f32 0.0, %v2393
        %v2395 = vpop.f32.mrb[0].mxu0
        %v2396 = vadd.f32 0.0, %v2395
        %2397 = vmatprep.mubr.f32.mxu0 %v1237
        %2398 = vmatmul.mubr.f32.gmra.mrb[0].mxu0 %v1236
        %v2399 = vpop.f32.mrb[0].mxu0
        %v2400 = vadd.f32 0.0, %v2399
        %v2401 = vpop.f32.mrb[0].mxu0
        %v2402 = vadd.f32 0.0, %v2401
        %2403 = vmatprep.mubr.f32.mxu0 %v1195
        %2404 = vmatmul.mubr.f32.gmra.mrb[0].mxu0 %v1192
        %v2405 = vpop.f32.mrb[0].mxu0
        %v2406 = vadd.f32 0.0, %v2405
        %v2407 = vpop.f32.mrb[0].mxu0
        %v2408 = vadd.f32 0.0, %v2407
        %2409 = vdwg.mxu0
        %2410 = vmatprep.subr.mxu0 %v1408
        %2411 = vmatpush1.msra.mxu0 %v1407
        %2412 = vmatprep.subr.mxu0 %v1413
        %2413 = vmatpush1.msra.mxu0 %v1412
        %2414 = vmatprep.subr.mxu0 %v1418
        %2415 = vmatpush1.msra.mxu0 %v1417
        %2416 = vmatprep.subr.mxu0 %v1423
        %2417 = vmatpush1.msra.mxu0 %v1422
        %2418 = vmatprep.subr.mxu0 %v1428
        %2419 = vmatpush1.msra.mxu0 %v1427
        %2420 = vmatprep.subr.mxu0 %v1433
        %2421 = vmatpush1.msra.mxu0 %v1432
        %2422 = vmatprep.subr.mxu0 %v1438
        %2423 = vmatpush1.msra.mxu0 %v1437
        %2424 = vmatprep.subr.mxu0 %v1443
        %2425 = vmatpush1.msra.mxu0 %v1442
        %2426 = vmatprep.subr.mxu0 %v1448
        %2427 = vmatpush1.msra.mxu0 %v1447
        %2428 = vmatprep.subr.mxu0 %v1453
        %2429 = vmatpush1.msra.mxu0 %v1452
        %2430 = vmatprep.subr.mxu0 %v1458
        %2431 = vmatpush1.msra.mxu0 %v1457
        %2432 = vmatprep.subr.mxu0 %v1463
        %2433 = vmatpush1.msra.mxu0 %v1462
        %2434 = vmatprep.subr.mxu0 %v1468
        %2435 = vmatpush1.msra.mxu0 %v1467
        %2436 = vmatprep.subr.mxu0 %v1473
        %2437 = vmatpush1.msra.mxu0 %v1472
        %2438 = vmatprep.subr.mxu0 %v1478
        %2439 = vmatpush1.msra.mxu0 %v1477
        %2440 = vmatprep.subr.mxu0 %v1483
        %2441 = vmatpush1.msra.mxu0 %v1482
        %2442 = vmatprep.subr.mxu0 %v1488
        %2443 = vmatpush1.msra.mxu0 %v1487
        %2444 = vmatprep.subr.mxu0 %v1493
        %2445 = vmatpush1.msra.mxu0 %v1492
        %2446 = vmatprep.subr.mxu0 %v1498
        %2447 = vmatpush1.msra.mxu0 %v1497
        %2448 = vmatprep.subr.mxu0 %v1503
        %2449 = vmatpush1.msra.mxu0 %v1502
        %2450 = vmatprep.subr.mxu0 %v1508
        %2451 = vmatpush1.msra.mxu0 %v1507
        %2452 = vmatprep.subr.mxu0 %v1513
        %2453 = vmatpush1.msra.mxu0 %v1512
        %2454 = vmatprep.subr.mxu0 %v1518
        %2455 = vmatpush1.msra.mxu0 %v1517
        %2456 = vmatprep.subr.mxu0 %v1523
        %2457 = vmatpush1.msra.mxu0 %v1522
        %2458 = vmatprep.subr.mxu0 %v1528
        %2459 = vmatpush1.msra.mxu0 %v1527
        %2460 = vmatprep.subr.mxu0 %v1533
        %2461 = vmatpush1.msra.mxu0 %v1532
        %2462 = vmatprep.subr.mxu0 %v1538
        %2463 = vmatpush1.msra.mxu0 %v1537
        %2464 = vmatprep.subr.mxu0 %v1543
        %2465 = vmatpush1.msra.mxu0 %v1542
        %2466 = vmatprep.subr.mxu0 %v1548
        %2467 = vmatpush1.msra.mxu0 %v1547
        %2468 = vmatprep.subr.mxu0 %v1553
        %2469 = vmatpush1.msra.mxu0 %v1552
        %2470 = vmatprep.subr.mxu0 %v1558
        %2471 = vmatpush1.msra.mxu0 %v1557
        %2472 = vmatprep.subr.mxu0 %v1563
        %2473 = vmatpush1.msra.mxu0 %v1562
        %2474 = vmatprep.mubr.f32.mxu0 %v1069
        %2475 = vmatmul.mubr.f32.gmra.mrb[0].mxu0 %v1121
        %v2476 = vpop.f32.mrb[0].mxu0
        %v2477 = vadd.f32 %v2394, %v2476
        %v2478 = vpop.f32.mrb[0].mxu0
        %v2479 = vadd.f32 %v2396, %v2478
        %2480 = vmatprep.mubr.f32.mxu0 %v1239
        %2481 = vmatmul.mubr.f32.gmra.mrb[0].mxu0 %v1238
        %v2482 = vpop.f32.mrb[0].mxu0
        %v2483 = vadd.f32 %v2400, %v2482
        %v2484 = vpop.f32.mrb[0].mxu0
        %v2485 = vadd.f32 %v2402, %v2484
        %2486 = vmatprep.mubr.f32.mxu0 %v1201
        %2487 = vmatmul.mubr.f32.gmra.mrb[0].mxu0 %v1198
        %v2488 = vpop.f32.mrb[0].mxu0
        %v2489 = vadd.f32 %v2406, %v2488
        %v2490 = vpop.f32.mrb[0].mxu0
        %v2491 = vadd.f32 %v2408, %v2490
        %2492 = vdwg.mxu0
        %2493 = vmatprep.subr.mxu0 %v1568
        %2494 = vmatpush1.msra.mxu0 %v1567
        %2495 = vmatprep.subr.mxu0 %v1573
        %2496 = vmatpush1.msra.mxu0 %v1572
        %2497 = vmatprep.subr.mxu0 %v1578
        %2498 = vmatpush1.msra.mxu0 %v1577
        %2499 = vmatprep.subr.mxu0 %v1583
        %2500 = vmatpush1.msra.mxu0 %v1582
        %2501 = vmatprep.subr.mxu0 %v1588
        %2502 = vmatpush1.msra.mxu0 %v1587
        %2503 = vmatprep.subr.mxu0 %v1593
        %2504 = vmatpush1.msra.mxu0 %v1592
        %2505 = vmatprep.subr.mxu0 %v1598
        %2506 = vmatpush1.msra.mxu0 %v1597
        %2507 = vmatprep.subr.mxu0 %v1603
        %2508 = vmatpush1.msra.mxu0 %v1602
        %2509 = vmatprep.subr.mxu0 %v1608
        %2510 = vmatpush1.msra.mxu0 %v1607
        %2511 = vmatprep.subr.mxu0 %v1613
        %2512 = vmatpush1.msra.mxu0 %v1612
        %2513 = vmatprep.subr.mxu0 %v1618
        %2514 = vmatpush1.msra.mxu0 %v1617
        %2515 = vmatprep.subr.mxu0 %v1623
        %2516 = vmatpush1.msra.mxu0 %v1622
        %2517 = vmatprep.subr.mxu0 %v1628
        %2518 = vmatpush1.msra.mxu0 %v1627
        %2519 = vmatprep.subr.mxu0 %v1633
        %2520 = vmatpush1.msra.mxu0 %v1632
        %2521 = vmatprep.subr.mxu0 %v1638
        %2522 = vmatpush1.msra.mxu0 %v1637
        %2523 = vmatprep.subr.mxu0 %v1643
        %2524 = vmatpush1.msra.mxu0 %v1642
        %2525 = vmatprep.subr.mxu0 %v1648
        %2526 = vmatpush1.msra.mxu0 %v1647
        %2527 = vmatprep.subr.mxu0 %v1653
        %2528 = vmatpush1.msra.mxu0 %v1652
        %2529 = vmatprep.subr.mxu0 %v1658
        %2530 = vmatpush1.msra.mxu0 %v1657
        %2531 = vmatprep.subr.mxu0 %v1663
        %2532 = vmatpush1.msra.mxu0 %v1662
        %2533 = vmatprep.subr.mxu0 %v1668
        %2534 = vmatpush1.msra.mxu0 %v1667
        %2535 = vmatprep.subr.mxu0 %v1673
        %2536 = vmatpush1.msra.mxu0 %v1672
        %2537 = vmatprep.subr.mxu0 %v1678
        %2538 = vmatpush1.msra.mxu0 %v1677
        %2539 = vmatprep.subr.mxu0 %v1683
        %2540 = vmatpush1.msra.mxu0 %v1682
        %2541 = vmatprep.subr.mxu0 %v1688
        %2542 = vmatpush1.msra.mxu0 %v1687
        %2543 = vmatprep.subr.mxu0 %v1693
        %2544 = vmatpush1.msra.mxu0 %v1692
        %2545 = vmatprep.subr.mxu0 %v1698
        %2546 = vmatpush1.msra.mxu0 %v1697
        %2547 = vmatprep.subr.mxu0 %v1703
        %2548 = vmatpush1.msra.mxu0 %v1702
        %2549 = vmatprep.subr.mxu0 %v1708
        %2550 = vmatpush1.msra.mxu0 %v1707
        %2551 = vmatprep.subr.mxu0 %v1713
        %2552 = vmatpush1.msra.mxu0 %v1712
        %2553 = vmatprep.subr.mxu0 %v1718
        %2554 = vmatpush1.msra.mxu0 %v1717
        %2555 = vmatprep.subr.mxu0 %v1723
        %2556 = vmatpush1.msra.mxu0 %v1722
        %2557 = vmatprep.mubr.f32.mxu0 %v1123
        %2558 = vmatmul.mubr.f32.gmra.mrb[0].mxu0 %v1070
        %v2559 = vpop.f32.mrb[0].mxu0
        %v2560 = vadd.f32 %v2477, %v2559
        %v2561 = vpop.f32.mrb[0].mxu0
        %v2562 = vadd.f32 %v2479, %v2561
        %2563 = vmatprep.mubr.f32.mxu0 %v1241
        %2564 = vmatmul.mubr.f32.gmra.mrb[0].mxu0 %v1240
        %v2565 = vpop.f32.mrb[0].mxu0
        %v2566 = vadd.f32 %v2483, %v2565
        %v2567 = vpop.f32.mrb[0].mxu0
        %v2568 = vadd.f32 %v2485, %v2567
        %2569 = vmatprep.mubr.f32.mxu0 %v1207
        %2570 = vmatmul.mubr.f32.gmra.mrb[0].mxu0 %v1204
        %v2571 = vpop.f32.mrb[0].mxu0
        %v2572 = vadd.f32 %v2489, %v2571
        %v2573 = vpop.f32.mrb[0].mxu0
        %v2574 = vadd.f32 %v2491, %v2573
        %2575 = vdwg.mxu0
        %2576 = vmatprep.subr.mxu0 %v1728
        %2577 = vmatpush1.msra.mxu0 %v1727
        %2578 = vmatprep.subr.mxu0 %v1733
        %2579 = vmatpush1.msra.mxu0 %v1732
        %2580 = vmatprep.subr.mxu0 %v1738
        %2581 = vmatpush1.msra.mxu0 %v1737
        %2582 = vmatprep.subr.mxu0 %v1743
        %2583 = vmatpush1.msra.mxu0 %v1742
        %2584 = vmatprep.subr.mxu0 %v1748
        %2585 = vmatpush1.msra.mxu0 %v1747
        %2586 = vmatprep.subr.mxu0 %v1753
        %2587 = vmatpush1.msra.mxu0 %v1752
        %2588 = vmatprep.subr.mxu0 %v1758
        %2589 = vmatpush1.msra.mxu0 %v1757
        %2590 = vmatprep.subr.mxu0 %v1763
        %2591 = vmatpush1.msra.mxu0 %v1762
        %2592 = vmatprep.subr.mxu0 %v1768
        %2593 = vmatpush1.msra.mxu0 %v1767
        %2594 = vmatprep.subr.mxu0 %v1773
        %2595 = vmatpush1.msra.mxu0 %v1772
        %2596 = vmatprep.subr.mxu0 %v1778
        %2597 = vmatpush1.msra.mxu0 %v1777
        %2598 = vmatprep.subr.mxu0 %v1783
        %2599 = vmatpush1.msra.mxu0 %v1782
        %2600 = vmatprep.subr.mxu0 %v1788
        %2601 = vmatpush1.msra.mxu0 %v1787
        %2602 = vmatprep.subr.mxu0 %v1793
        %2603 = vmatpush1.msra.mxu0 %v1792
        %2604 = vmatprep.subr.mxu0 %v1798
        %2605 = vmatpush1.msra.mxu0 %v1797
        %2606 = vmatprep.subr.mxu0 %v1803
        %2607 = vmatpush1.msra.mxu0 %v1802
        %2608 = vmatprep.subr.mxu0 %v1808
        %2609 = vmatpush1.msra.mxu0 %v1807
        %2610 = vmatprep.subr.mxu0 %v1813
        %2611 = vmatpush1.msra.mxu0 %v1812
        %2612 = vmatprep.subr.mxu0 %v1818
        %2613 = vmatpush1.msra.mxu0 %v1817
        %2614 = vmatprep.subr.mxu0 %v1823
        %2615 = vmatpush1.msra.mxu0 %v1822
        %2616 = vmatprep.subr.mxu0 %v1828
        %2617 = vmatpush1.msra.mxu0 %v1827
        %2618 = vmatprep.subr.mxu0 %v1833
        %2619 = vmatpush1.msra.mxu0 %v1832
        %2620 = vmatprep.subr.mxu0 %v1838
        %2621 = vmatpush1.msra.mxu0 %v1837
        %2622 = vmatprep.subr.mxu0 %v1843
        %2623 = vmatpush1.msra.mxu0 %v1842
        %2624 = vmatprep.subr.mxu0 %v1848
        %2625 = vmatpush1.msra.mxu0 %v1847
        %2626 = vmatprep.subr.mxu0 %v1853
        %2627 = vmatpush1.msra.mxu0 %v1852
        %2628 = vmatprep.subr.mxu0 %v1858
        %2629 = vmatpush1.msra.mxu0 %v1857
        %2630 = vmatprep.subr.mxu0 %v1863
        %2631 = vmatpush1.msra.mxu0 %v1862
        %2632 = vmatprep.subr.mxu0 %v1868
        %2633 = vmatpush1.msra.mxu0 %v1867
        %2634 = vmatprep.subr.mxu0 %v1873
        %2635 = vmatpush1.msra.mxu0 %v1872
        %2636 = vmatprep.subr.mxu0 %v1878
        %2637 = vmatpush1.msra.mxu0 %v1877
        %2638 = vmatprep.subr.mxu0 %v1883
        %2639 = vmatpush1.msra.mxu0 %v1882
        %2640 = vmatprep.mubr.f32.mxu0 %v1111
        %2641 = vmatmul.mubr.f32.gmra.mrb[0].mxu0 %v1110
        %v2642 = vpop.f32.mrb[0].mxu0
        %v2643 = vadd.f32 %v2560, %v2642
        %v2644 = vpop.f32.mrb[0].mxu0
        %v2645 = vadd.f32 %v2562, %v2644
        %2646 = vmatprep.mubr.f32.mxu0 %v1243
        %2647 = vmatmul.mubr.f32.gmra.mrb[0].mxu0 %v1242
        %v2648 = vpop.f32.mrb[0].mxu0
        %v2649 = vadd.f32 %v2566, %v2648
        %v2650 = vpop.f32.mrb[0].mxu0
        %v2651 = vadd.f32 %v2568, %v2650
        %2652 = vmatprep.mubr.f32.mxu0 %v1213
        %2653 = vmatmul.mubr.f32.gmra.mrb[0].mxu0 %v1210
        %v2654 = vpop.f32.mrb[0].mxu0
        %v2655 = vadd.f32 %v2572, %v2654
        %v2656 = vpop.f32.mrb[0].mxu0
        %v2657 = vadd.f32 %v2574, %v2656
        %2658 = vdwg.mxu0
        %2659 = vmatprep.subr.mxu0 %v1888
        %2660 = vmatpush1.msra.mxu0 %v1887
        %2661 = vmatprep.subr.mxu0 %v1893
        %2662 = vmatpush1.msra.mxu0 %v1892
        %2663 = vmatprep.subr.mxu0 %v1898
        %2664 = vmatpush1.msra.mxu0 %v1897
        %2665 = vmatprep.subr.mxu0 %v1903
        %2666 = vmatpush1.msra.mxu0 %v1902
        %2667 = vmatprep.subr.mxu0 0.0
        %2668 = vmatpush1.msra.mxu0 0.0
        %2669 = vmatprep.subr.mxu0 0.0
        %2670 = vmatpush1.msra.mxu0 0.0
        %2671 = vmatprep.subr.mxu0 0.0
        %2672 = vmatpush1.msra.mxu0 0.0
        %2673 = vmatprep.subr.mxu0 0.0
        %2674 = vmatpush1.msra.mxu0 0.0
        %2675 = vmatprep.subr.mxu0 0.0
        %2676 = vmatpush1.msra.mxu0 0.0
        %2677 = vmatprep.subr.mxu0 0.0
        %2678 = vmatpush1.msra.mxu0 0.0
        %2679 = vmatprep.subr.mxu0 0.0
        %2680 = vmatpush1.msra.mxu0 0.0
        %2681 = vmatprep.subr.mxu0 0.0
        %2682 = vmatpush1.msra.mxu0 0.0
        %2683 = vmatprep.subr.mxu0 0.0
        %2684 = vmatpush1.msra.mxu0 0.0
        %2685 = vmatprep.subr.mxu0 0.0
        %2686 = vmatpush1.msra.mxu0 0.0
        %2687 = vmatprep.subr.mxu0 0.0
        %2688 = vmatpush1.msra.mxu0 0.0
        %2689 = vmatprep.subr.mxu0 0.0
        %2690 = vmatpush1.msra.mxu0 0.0
        %2691 = vmatprep.subr.mxu0 0.0
        %2692 = vmatpush1.msra.mxu0 0.0
        %2693 = vmatprep.subr.mxu0 0.0
        %2694 = vmatpush1.msra.mxu0 0.0
        %2695 = vmatprep.subr.mxu0 0.0
        %2696 = vmatpush1.msra.mxu0 0.0
        %2697 = vmatprep.subr.mxu0 0.0
        %2698 = vmatpush1.msra.mxu0 0.0
        %2699 = vmatprep.subr.mxu0 0.0
        %2700 = vmatpush1.msra.mxu0 0.0
        %2701 = vmatprep.subr.mxu0 0.0
        %2702 = vmatpush1.msra.mxu0 0.0
        %2703 = vmatprep.subr.mxu0 0.0
        %2704 = vmatpush1.msra.mxu0 0.0
        %2705 = vmatprep.subr.mxu0 0.0
        %2706 = vmatpush1.msra.mxu0 0.0
        %2707 = vmatprep.subr.mxu0 0.0
        %2708 = vmatpush1.msra.mxu0 0.0
        %2709 = vmatprep.subr.mxu0 0.0
        %2710 = vmatpush1.msra.mxu0 0.0
        %2711 = vmatprep.subr.mxu0 0.0
        %2712 = vmatpush1.msra.mxu0 0.0
        %2713 = vmatprep.subr.mxu0 0.0
        %2714 = vmatpush1.msra.mxu0 0.0
        %2715 = vmatprep.subr.mxu0 0.0
        %2716 = vmatpush1.msra.mxu0 0.0
        %2717 = vmatprep.subr.mxu0 0.0
        %2718 = vmatpush1.msra.mxu0 0.0
        %2719 = vmatprep.subr.mxu0 0.0
        %2720 = vmatpush1.msra.mxu0 0.0
        %2721 = vmatprep.subr.mxu0 0.0
        %2722 = vmatpush1.msra.mxu0 0.0
        %2723 = vmatprep.mubr.f32.mxu0 0.0
        %2724 = vmatmul.mubr.f32.gmra.mrb[0].mxu0 %v1905
        %v2725 = vpop.f32.mrb[0].mxu0
        %v2726 = vadd.f32 %v2643, %v2725
        %v2727 = vpop.f32.mrb[0].mxu0
        %v2728 = vadd.f32 %v2645, %v2727
        %2729 = vmatprep.mubr.f32.mxu0 0.0
        %2730 = vmatmul.mubr.f32.gmra.mrb[0].mxu0 %v1908
        %v2731 = vpop.f32.mrb[0].mxu0
        %v2732 = vadd.f32 %v2649, %v2731
        %v2733 = vpop.f32.mrb[0].mxu0
        %v2734 = vadd.f32 %v2651, %v2733
        %2735 = vmatprep.mubr.f32.mxu0 0.0
        %2736 = vmatmul.mubr.f32.gmra.mrb[0].mxu0 %v1910
        %v2737 = vpop.f32.mrb[0].mxu0
        %v2738 = vadd.f32 %v2655, %v2737
        %v2739 = vpop.f32.mrb[0].mxu0
        %v2740 = vadd.f32 %v2657, %v2739
        %2741 = vdwg.mxu0
        %2742 = vmatprep.subr.mxu0 0.0
        %2743 = vmatpush1.msra.mxu0 %v1249
        %2744 = vmatprep.subr.mxu0 0.0
        %2745 = vmatpush1.msra.mxu0 %v1254
        %2746 = vmatprep.subr.mxu0 0.0
        %2747 = vmatpush1.msra.mxu0 %v1259
        %2748 = vmatprep.subr.mxu0 0.0
        %2749 = vmatpush1.msra.mxu0 %v1264
        %2750 = vmatprep.subr.mxu0 0.0
        %2751 = vmatpush1.msra.mxu0 %v1269
        %2752 = vmatprep.subr.mxu0 0.0
        %2753 = vmatpush1.msra.mxu0 %v1274
        %2754 = vmatprep.subr.mxu0 0.0
        %2755 = vmatpush1.msra.mxu0 %v1279
        %2756 = vmatprep.subr.mxu0 0.0
        %2757 = vmatpush1.msra.mxu0 %v1284
        %2758 = vmatprep.subr.mxu0 0.0
        %2759 = vmatpush1.msra.mxu0 %v1289
        %2760 = vmatprep.subr.mxu0 0.0
        %2761 = vmatpush1.msra.mxu0 %v1294
        %2762 = vmatprep.subr.mxu0 0.0
        %2763 = vmatpush1.msra.mxu0 %v1299
        %2764 = vmatprep.subr.mxu0 0.0
        %2765 = vmatpush1.msra.mxu0 %v1304
        %2766 = vmatprep.subr.mxu0 0.0
        %2767 = vmatpush1.msra.mxu0 %v1309
        %2768 = vmatprep.subr.mxu0 0.0
        %2769 = vmatpush1.msra.mxu0 %v1314
        %2770 = vmatprep.subr.mxu0 0.0
        %2771 = vmatpush1.msra.mxu0 %v1319
        %2772 = vmatprep.subr.mxu0 0.0
        %2773 = vmatpush1.msra.mxu0 %v1324
        %2774 = vmatprep.subr.mxu0 0.0
        %2775 = vmatpush1.msra.mxu0 %v1329
        %2776 = vmatprep.subr.mxu0 0.0
        %2777 = vmatpush1.msra.mxu0 %v1334
        %2778 = vmatprep.subr.mxu0 0.0
        %2779 = vmatpush1.msra.mxu0 %v1339
        %2780 = vmatprep.subr.mxu0 0.0
        %2781 = vmatpush1.msra.mxu0 %v1344
        %2782 = vmatprep.subr.mxu0 0.0
        %2783 = vmatpush1.msra.mxu0 %v1349
        %2784 = vmatprep.subr.mxu0 0.0
        %2785 = vmatpush1.msra.mxu0 %v1354
        %2786 = vmatprep.subr.mxu0 0.0
        %2787 = vmatpush1.msra.mxu0 %v1359
        %2788 = vmatprep.subr.mxu0 0.0
        %2789 = vmatpush1.msra.mxu0 %v1364
        %2790 = vmatprep.subr.mxu0 0.0
        %2791 = vmatpush1.msra.mxu0 %v1369
        %2792 = vmatprep.subr.mxu0 0.0
        %2793 = vmatpush1.msra.mxu0 %v1374
        %2794 = vmatprep.subr.mxu0 0.0
        %2795 = vmatpush1.msra.mxu0 %v1379
        %2796 = vmatprep.subr.mxu0 0.0
        %2797 = vmatpush1.msra.mxu0 %v1384
        %2798 = vmatprep.subr.mxu0 0.0
        %2799 = vmatpush1.msra.mxu0 %v1389
        %2800 = vmatprep.subr.mxu0 0.0
        %2801 = vmatpush1.msra.mxu0 %v1394
        %2802 = vmatprep.subr.mxu0 0.0
        %2803 = vmatpush1.msra.mxu0 %v1399
        %2804 = vmatprep.subr.mxu0 0.0
        %2805 = vmatpush1.msra.mxu0 %v1404
        %2806 = vmatprep.mubr.f32.mxu0 %v955
        %2807 = vmatmul.mubr.f32.gmra.mrb[0].mxu0 %v954
        %v2808 = vpop.f32.mrb[0].mxu0
        %v2809 = vadd.f32 0.0, %v2808
        %v2810 = vpop.f32.mrb[0].mxu0
        %2811 = vmatprep.mubr.f32.mxu0 %v1237
        %2812 = vmatmul.mubr.f32.gmra.mrb[0].mxu0 %v1236
        %v2813 = vpop.f32.mrb[0].mxu0
        %v2814 = vadd.f32 0.0, %v2813
        %v2815 = vpop.f32.mrb[0].mxu0
        %2816 = vmatprep.mubr.f32.mxu0 %v1195
        %2817 = vmatmul.mubr.f32.gmra.mrb[0].mxu0 %v1192
        %v2818 = vpop.f32.mrb[0].mxu0
        %v2819 = vadd.f32 0.0, %v2818
        %v2820 = vpop.f32.mrb[0].mxu0
        %2821 = vdwg.mxu0
        %2822 = vmatprep.subr.mxu0 0.0
        %2823 = vmatpush1.msra.mxu0 %v1409
        %2824 = vmatprep.subr.mxu0 0.0
        %2825 = vmatpush1.msra.mxu0 %v1414
        %2826 = vmatprep.subr.mxu0 0.0
        %2827 = vmatpush1.msra.mxu0 %v1419
        %2828 = vmatprep.subr.mxu0 0.0
        %2829 = vmatpush1.msra.mxu0 %v1424
        %2830 = vmatprep.subr.mxu0 0.0
        %2831 = vmatpush1.msra.mxu0 %v1429
        %2832 = vmatprep.subr.mxu0 0.0
        %2833 = vmatpush1.msra.mxu0 %v1434
        %2834 = vmatprep.subr.mxu0 0.0
        %2835 = vmatpush1.msra.mxu0 %v1439
        %2836 = vmatprep.subr.mxu0 0.0
        %2837 = vmatpush1.msra.mxu0 %v1444
        %2838 = vmatprep.subr.mxu0 0.0
        %2839 = vmatpush1.msra.mxu0 %v1449
        %2840 = vmatprep.subr.mxu0 0.0
        %2841 = vmatpush1.msra.mxu0 %v1454
        %2842 = vmatprep.subr.mxu0 0.0
        %2843 = vmatpush1.msra.mxu0 %v1459
        %2844 = vmatprep.subr.mxu0 0.0
        %2845 = vmatpush1.msra.mxu0 %v1464
        %2846 = vmatprep.subr.mxu0 0.0
        %2847 = vmatpush1.msra.mxu0 %v1469
        %2848 = vmatprep.subr.mxu0 0.0
        %2849 = vmatpush1.msra.mxu0 %v1474
        %2850 = vmatprep.subr.mxu0 0.0
        %2851 = vmatpush1.msra.mxu0 %v1479
        %2852 = vmatprep.subr.mxu0 0.0
        %2853 = vmatpush1.msra.mxu0 %v1484
        %2854 = vmatprep.subr.mxu0 0.0
        %2855 = vmatpush1.msra.mxu0 %v1489
        %2856 = vmatprep.subr.mxu0 0.0
        %2857 = vmatpush1.msra.mxu0 %v1494
        %2858 = vmatprep.subr.mxu0 0.0
        %2859 = vmatpush1.msra.mxu0 %v1499
        %2860 = vmatprep.subr.mxu0 0.0
        %2861 = vmatpush1.msra.mxu0 %v1504
        %2862 = vmatprep.subr.mxu0 0.0
        %2863 = vmatpush1.msra.mxu0 %v1509
        %2864 = vmatprep.subr.mxu0 0.0
        %2865 = vmatpush1.msra.mxu0 %v1514
        %2866 = vmatprep.subr.mxu0 0.0
        %2867 = vmatpush1.msra.mxu0 %v1519
        %2868 = vmatprep.subr.mxu0 0.0
        %2869 = vmatpush1.msra.mxu0 %v1524
        %2870 = vmatprep.subr.mxu0 0.0
        %2871 = vmatpush1.msra.mxu0 %v1529
        %2872 = vmatprep.subr.mxu0 0.0
        %2873 = vmatpush1.msra.mxu0 %v1534
        %2874 = vmatprep.subr.mxu0 0.0
        %2875 = vmatpush1.msra.mxu0 %v1539
        %2876 = vmatprep.subr.mxu0 0.0
        %2877 = vmatpush1.msra.mxu0 %v1544
        %2878 = vmatprep.subr.mxu0 0.0
        %2879 = vmatpush1.msra.mxu0 %v1549
        %2880 = vmatprep.subr.mxu0 0.0
        %2881 = vmatpush1.msra.mxu0 %v1554
        %2882 = vmatprep.subr.mxu0 0.0
        %2883 = vmatpush1.msra.mxu0 %v1559
        %2884 = vmatprep.subr.mxu0 0.0
        %2885 = vmatpush1.msra.mxu0 %v1564
        %2886 = vmatprep.mubr.f32.mxu0 %v1069
        %2887 = vmatmul.mubr.f32.gmra.mrb[0].mxu0 %v1121
        %v2888 = vpop.f32.mrb[0].mxu0
        %v2889 = vadd.f32 %v2809, %v2888
        %v2890 = vpop.f32.mrb[0].mxu0
        %2891 = vmatprep.mubr.f32.mxu0 %v1239
        %2892 = vmatmul.mubr.f32.gmra.mrb[0].mxu0 %v1238
        %v2893 = vpop.f32.mrb[0].mxu0
        %v2894 = vadd.f32 %v2814, %v2893
        %v2895 = vpop.f32.mrb[0].mxu0
        %2896 = vmatprep.mubr.f32.mxu0 %v1201
        %2897 = vmatmul.mubr.f32.gmra.mrb[0].mxu0 %v1198
        %v2898 = vpop.f32.mrb[0].mxu0
        %v2899 = vadd.f32 %v2819, %v2898
        %v2900 = vpop.f32.mrb[0].mxu0
        %2901 = vdwg.mxu0
        %2902 = vmatprep.subr.mxu0 0.0
        %2903 = vmatpush1.msra.mxu0 %v1569
        %2904 = vmatprep.subr.mxu0 0.0
        %2905 = vmatpush1.msra.mxu0 %v1574
        %2906 = vmatprep.subr.mxu0 0.0
        %2907 = vmatpush1.msra.mxu0 %v1579
        %2908 = vmatprep.subr.mxu0 0.0
        %2909 = vmatpush1.msra.mxu0 %v1584
        %2910 = vmatprep.subr.mxu0 0.0
        %2911 = vmatpush1.msra.mxu0 %v1589
        %2912 = vmatprep.subr.mxu0 0.0
        %2913 = vmatpush1.msra.mxu0 %v1594
        %2914 = vmatprep.subr.mxu0 0.0
        %2915 = vmatpush1.msra.mxu0 %v1599
        %2916 = vmatprep.subr.mxu0 0.0
        %2917 = vmatpush1.msra.mxu0 %v1604
        %2918 = vmatprep.subr.mxu0 0.0
        %2919 = vmatpush1.msra.mxu0 %v1609
        %2920 = vmatprep.subr.mxu0 0.0
        %2921 = vmatpush1.msra.mxu0 %v1614
        %2922 = vmatprep.subr.mxu0 0.0
        %2923 = vmatpush1.msra.mxu0 %v1619
        %2924 = vmatprep.subr.mxu0 0.0
        %2925 = vmatpush1.msra.mxu0 %v1624
        %2926 = vmatprep.subr.mxu0 0.0
        %2927 = vmatpush1.msra.mxu0 %v1629
        %2928 = vmatprep.subr.mxu0 0.0
        %2929 = vmatpush1.msra.mxu0 %v1634
        %2930 = vmatprep.subr.mxu0 0.0
        %2931 = vmatpush1.msra.mxu0 %v1639
        %2932 = vmatprep.subr.mxu0 0.0
        %2933 = vmatpush1.msra.mxu0 %v1644
        %2934 = vmatprep.subr.mxu0 0.0
        %2935 = vmatpush1.msra.mxu0 %v1649
        %2936 = vmatprep.subr.mxu0 0.0
        %2937 = vmatpush1.msra.mxu0 %v1654
        %2938 = vmatprep.subr.mxu0 0.0
        %2939 = vmatpush1.msra.mxu0 %v1659
        %2940 = vmatprep.subr.mxu0 0.0
        %2941 = vmatpush1.msra.mxu0 %v1664
        %2942 = vmatprep.subr.mxu0 0.0
        %2943 = vmatpush1.msra.mxu0 %v1669
        %2944 = vmatprep.subr.mxu0 0.0
        %2945 = vmatpush1.msra.mxu0 %v1674
        %2946 = vmatprep.subr.mxu0 0.0
        %2947 = vmatpush1.msra.mxu0 %v1679
        %2948 = vmatprep.subr.mxu0 0.0
        %2949 = vmatpush1.msra.mxu0 %v1684
        %2950 = vmatprep.subr.mxu0 0.0
        %2951 = vmatpush1.msra.mxu0 %v1689
        %2952 = vmatprep.subr.mxu0 0.0
        %2953 = vmatpush1.msra.mxu0 %v1694
        %2954 = vmatprep.subr.mxu0 0.0
        %2955 = vmatpush1.msra.mxu0 %v1699
        %2956 = vmatprep.subr.mxu0 0.0
        %2957 = vmatpush1.msra.mxu0 %v1704
        %2958 = vmatprep.subr.mxu0 0.0
        %2959 = vmatpush1.msra.mxu0 %v1709
        %2960 = vmatprep.subr.mxu0 0.0
        %2961 = vmatpush1.msra.mxu0 %v1714
        %2962 = vmatprep.subr.mxu0 0.0
        %2963 = vmatpush1.msra.mxu0 %v1719
        %2964 = vmatprep.subr.mxu0 0.0
        %2965 = vmatpush1.msra.mxu0 %v1724
        %2966 = vmatprep.mubr.f32.mxu0 %v1123
        %2967 = vmatmul.mubr.f32.gmra.mrb[0].mxu0 %v1070
        %v2968 = vpop.f32.mrb[0].mxu0
        %v2969 = vadd.f32 %v2889, %v2968
        %v2970 = vpop.f32.mrb[0].mxu0
        %2971 = vmatprep.mubr.f32.mxu0 %v1241
        %2972 = vmatmul.mubr.f32.gmra.mrb[0].mxu0 %v1240
        %v2973 = vpop.f32.mrb[0].mxu0
        %v2974 = vadd.f32 %v2894, %v2973
        %v2975 = vpop.f32.mrb[0].mxu0
        %2976 = vmatprep.mubr.f32.mxu0 %v1207
        %2977 = vmatmul.mubr.f32.gmra.mrb[0].mxu0 %v1204
        %v2978 = vpop.f32.mrb[0].mxu0
        %v2979 = vadd.f32 %v2899, %v2978
        %v2980 = vpop.f32.mrb[0].mxu0
        %2981 = vdwg.mxu0
        %2982 = vmatprep.subr.mxu0 0.0
        %2983 = vmatpush1.msra.mxu0 %v1729
        %2984 = vmatprep.subr.mxu0 0.0
        %2985 = vmatpush1.msra.mxu0 %v1734
        %2986 = vmatprep.subr.mxu0 0.0
        %2987 = vmatpush1.msra.mxu0 %v1739
        %2988 = vmatprep.subr.mxu0 0.0
        %2989 = vmatpush1.msra.mxu0 %v1744
        %2990 = vmatprep.subr.mxu0 0.0
        %2991 = vmatpush1.msra.mxu0 %v1749
        %2992 = vmatprep.subr.mxu0 0.0
        %2993 = vmatpush1.msra.mxu0 %v1754
        %2994 = vmatprep.subr.mxu0 0.0
        %2995 = vmatpush1.msra.mxu0 %v1759
        %2996 = vmatprep.subr.mxu0 0.0
        %2997 = vmatpush1.msra.mxu0 %v1764
        %2998 = vmatprep.subr.mxu0 0.0
        %2999 = vmatpush1.msra.mxu0 %v1769
        %3000 = vmatprep.subr.mxu0 0.0
        %3001 = vmatpush1.msra.mxu0 %v1774
        %3002 = vmatprep.subr.mxu0 0.0
        %3003 = vmatpush1.msra.mxu0 %v1779
        %3004 = vmatprep.subr.mxu0 0.0
        %3005 = vmatpush1.msra.mxu0 %v1784
        %3006 = vmatprep.subr.mxu0 0.0
        %3007 = vmatpush1.msra.mxu0 %v1789
        %3008 = vmatprep.subr.mxu0 0.0
        %3009 = vmatpush1.msra.mxu0 %v1794
        %3010 = vmatprep.subr.mxu0 0.0
        %3011 = vmatpush1.msra.mxu0 %v1799
        %3012 = vmatprep.subr.mxu0 0.0
        %3013 = vmatpush1.msra.mxu0 %v1804
        %3014 = vmatprep.subr.mxu0 0.0
        %3015 = vmatpush1.msra.mxu0 %v1809
        %3016 = vmatprep.subr.mxu0 0.0
        %3017 = vmatpush1.msra.mxu0 %v1814
        %3018 = vmatprep.subr.mxu0 0.0
        %3019 = vmatpush1.msra.mxu0 %v1819
        %3020 = vmatprep.subr.mxu0 0.0
        %3021 = vmatpush1.msra.mxu0 %v1824
        %3022 = vmatprep.subr.mxu0 0.0
        %3023 = vmatpush1.msra.mxu0 %v1829
        %3024 = vmatprep.subr.mxu0 0.0
        %3025 = vmatpush1.msra.mxu0 %v1834
        %3026 = vmatprep.subr.mxu0 0.0
        %3027 = vmatpush1.msra.mxu0 %v1839
        %3028 = vmatprep.subr.mxu0 0.0
        %3029 = vmatpush1.msra.mxu0 %v1844
        %3030 = vmatprep.subr.mxu0 0.0
        %3031 = vmatpush1.msra.mxu0 %v1849
        %3032 = vmatprep.subr.mxu0 0.0
        %3033 = vmatpush1.msra.mxu0 %v1854
        %3034 = vmatprep.subr.mxu0 0.0
        %3035 = vmatpush1.msra.mxu0 %v1859
        %3036 = vmatprep.subr.mxu0 0.0
        %3037 = vmatpush1.msra.mxu0 %v1864
        %3038 = vmatprep.subr.mxu0 0.0
        %3039 = vmatpush1.msra.mxu0 %v1869
        %3040 = vmatprep.subr.mxu0 0.0
        %3041 = vmatpush1.msra.mxu0 %v1874
        %3042 = vmatprep.subr.mxu0 0.0
        %3043 = vmatpush1.msra.mxu0 %v1879
        %3044 = vmatprep.subr.mxu0 0.0
        %3045 = vmatpush1.msra.mxu0 %v1884
        %3046 = vmatprep.mubr.f32.mxu0 %v1111
        %3047 = vmatmul.mubr.f32.gmra.mrb[0].mxu0 %v1110
        %v3048 = vpop.f32.mrb[0].mxu0
        %v3049 = vadd.f32 %v2969, %v3048
        %v3050 = vpop.f32.mrb[0].mxu0
        %3051 = vmatprep.mubr.f32.mxu0 %v1243
        %3052 = vmatmul.mubr.f32.gmra.mrb[0].mxu0 %v1242
        %v3053 = vpop.f32.mrb[0].mxu0
        %v3054 = vadd.f32 %v2974, %v3053
        %v3055 = vpop.f32.mrb[0].mxu0
        %3056 = vmatprep.mubr.f32.mxu0 %v1213
        %3057 = vmatmul.mubr.f32.gmra.mrb[0].mxu0 %v1210
        %v3058 = vpop.f32.mrb[0].mxu0
        %v3059 = vadd.f32 %v2979, %v3058
        %v3060 = vpop.f32.mrb[0].mxu0
        %3061 = vdwg.mxu0
        %3062 = vmatprep.subr.mxu0 0.0
        %3063 = vmatpush1.msra.mxu0 %v1889
        %3064 = vmatprep.subr.mxu0 0.0
        %3065 = vmatpush1.msra.mxu0 %v1894
        %3066 = vmatprep.subr.mxu0 0.0
        %3067 = vmatpush1.msra.mxu0 %v1899
        %3068 = vmatprep.subr.mxu0 0.0
        %3069 = vmatpush1.msra.mxu0 %v1904
        %3070 = vmatprep.subr.mxu0 0.0
        %3071 = vmatpush1.msra.mxu0 0.0
        %3072 = vmatprep.subr.mxu0 0.0
        %3073 = vmatpush1.msra.mxu0 0.0
        %3074 = vmatprep.subr.mxu0 0.0
        %3075 = vmatpush1.msra.mxu0 0.0
        %3076 = vmatprep.subr.mxu0 0.0
        %3077 = vmatpush1.msra.mxu0 0.0
        %3078 = vmatprep.subr.mxu0 0.0
        %3079 = vmatpush1.msra.mxu0 0.0
        %3080 = vmatprep.subr.mxu0 0.0
        %3081 = vmatpush1.msra.mxu0 0.0
        %3082 = vmatprep.subr.mxu0 0.0
        %3083 = vmatpush1.msra.mxu0 0.0
        %3084 = vmatprep.subr.mxu0 0.0
        %3085 = vmatpush1.msra.mxu0 0.0
        %3086 = vmatprep.subr.mxu0 0.0
        %3087 = vmatpush1.msra.mxu0 0.0
        %3088 = vmatprep.subr.mxu0 0.0
        %3089 = vmatpush1.msra.mxu0 0.0
        %3090 = vmatprep.subr.mxu0 0.0
        %3091 = vmatpush1.msra.mxu0 0.0
        %3092 = vmatprep.subr.mxu0 0.0
        %3093 = vmatpush1.msra.mxu0 0.0
        %3094 = vmatprep.subr.mxu0 0.0
        %3095 = vmatpush1.msra.mxu0 0.0
        %3096 = vmatprep.subr.mxu0 0.0
        %3097 = vmatpush1.msra.mxu0 0.0
        %3098 = vmatprep.subr.mxu0 0.0
        %3099 = vmatpush1.msra.mxu0 0.0
        %3100 = vmatprep.subr.mxu0 0.0
        %3101 = vmatpush1.msra.mxu0 0.0
        %3102 = vmatprep.subr.mxu0 0.0
        %3103 = vmatpush1.msra.mxu0 0.0
        %3104 = vmatprep.subr.mxu0 0.0
        %3105 = vmatpush1.msra.mxu0 0.0
        %3106 = vmatprep.subr.mxu0 0.0
        %3107 = vmatpush1.msra.mxu0 0.0
        %3108 = vmatprep.subr.mxu0 0.0
        %3109 = vmatpush1.msra.mxu0 0.0
        %3110 = vmatprep.subr.mxu0 0.0
        %3111 = vmatpush1.msra.mxu0 0.0
        %3112 = vmatprep.subr.mxu0 0.0
        %3113 = vmatpush1.msra.mxu0 0.0
        %3114 = vmatprep.subr.mxu0 0.0
        %3115 = vmatpush1.msra.mxu0 0.0
        %3116 = vmatprep.subr.mxu0 0.0
        %3117 = vmatpush1.msra.mxu0 0.0
        %3118 = vmatprep.subr.mxu0 0.0
        %3119 = vmatpush1.msra.mxu0 0.0
        %3120 = vmatprep.subr.mxu0 0.0
        %3121 = vmatpush1.msra.mxu0 0.0
        %3122 = vmatprep.subr.mxu0 0.0
        %3123 = vmatpush1.msra.mxu0 0.0
        %3124 = vmatprep.subr.mxu0 0.0
        %3125 = vmatpush1.msra.mxu0 0.0
        %3126 = vmatprep.mubr.f32.mxu0 0.0
        %3127 = vmatmul.mubr.f32.gmra.mrb[0].mxu0 %v1905
        %v3128 = vpop.f32.mrb[0].mxu0
        %v3129 = vadd.f32 %v3049, %v3128
        %v3130 = vpop.f32.mrb[0].mxu0
        %3131 = vmatprep.mubr.f32.mxu0 0.0
        %3132 = vmatmul.mubr.f32.gmra.mrb[0].mxu0 %v1908
        %v3133 = vpop.f32.mrb[0].mxu0
        %v3134 = vadd.f32 %v3054, %v3133
        %v3135 = vpop.f32.mrb[0].mxu0
        %3136 = vmatprep.mubr.f32.mxu0 0.0
        %3137 = vmatmul.mubr.f32.gmra.mrb[0].mxu0 %v1910
        %v3138 = vpop.f32.mrb[0].mxu0
        %v3139 = vadd.f32 %v3059, %v3138
        %v3140 = vpop.f32.mrb[0].mxu0
        %3141 = vdwg.mxu0
        %3148 = vrot.lane.b32.xlu0 %v2726, 64
        %v3149 = vpop.permute.xlu0 %3148
        %3150 = vrot.lane.b32.xlu0 %v2728, 64
        %v3151 = vpop.permute.xlu0 %3150
        %3152 = vrot.lane.b32.xlu0 %v3129, 64
        %v3153 = vpop.permute.xlu0 %3152
        %3154 = vrot.lane.b32.xlu0 %v2732, 64
        %v3155 = vpop.permute.xlu0 %3154
        %3156 = vrot.lane.b32.xlu0 %v2734, 64
        %v3157 = vpop.permute.xlu0 %3156
        %3158 = vrot.lane.b32.xlu0 %v3134, 64
        %v3159 = vpop.permute.xlu0 %3158
        %v3160 = vsel %vm1109, %v3149, %v3151
        %v3161 = vsel %vm1109, %v3151, %v3153
        %v3162 = vsel %vm1109, %v3155, %v3157
        %v3163 = vsel %vm1109, %v3157, %v3159
        %v3170 = vmax.f32 %v2311, %v3160
        %v3171 = vmax.f32 %v2313, %v3161
        %v3172 = vmax.f32 %v2726, %v3153
        %v3173 = vmax.f32 %v2317, %v3162
        %v3174 = vmax.f32 %v2319, %v3163
        %v3175 = vmax.f32 %v2732, %v3159
        %3179 = vrot.lane.b32.xlu0 %v2738, 64
        %v3180 = vpop.permute.xlu0 %3179
        %3181 = vrot.lane.b32.xlu0 %v2740, 64
        %v3182 = vpop.permute.xlu0 %3181
        %3183 = vrot.lane.b32.xlu0 %v3139, 64
        %v3184 = vpop.permute.xlu0 %3183
        %v3185 = vsel %vm1109, %v3180, %v3182
        %v3186 = vsel %vm1109, %v3182, %v3184
        %v3190 = vmax.f32 %v2323, %v3185
        %v3191 = vmax.f32 %v2325, %v3186
        %v3192 = vmax.f32 %v2738, %v3184
        %v3199 = vrot.slane %v3173, 1
        %v3200 = vrot.slane %v3190, 1
        %v3201 = vsel %vm1087, %v3199, %v3200
        %v3202 = vrot.slane %v3174, 1
        %v3203 = vrot.slane %v3191, 1
        %v3204 = vsel %vm1087, %v3202, %v3203
        %v3205 = vrot.slane %v3175, 1
        %v3206 = vrot.slane %v3192, 1
        %v3207 = vsel %vm1087, %v3205, %v3206
        %v3214 = vmax.f32 %v3170, %v3201
        %v3215 = vmax.f32 %v3171, %v3204
        %v3216 = vmax.f32 %v3172, %v3207
        %v3217 = vmax.f32 %v3173, %v3200
        %v3218 = vmax.f32 %v3174, %v3203
        %v3219 = vmax.f32 %v3175, %v3206
        %v3220 = vld [vmem:[#allocation7] sm:$0x7]
        %v3222 = vlaneseq
        %v3223 = vshrl.u32 %v3222, 7
        %v3224 = vsub.s32 0, %v3223
        %v3225 = vrot.slane %v3220, %v3224
        %v3226 = vlaneseq
        %v3227 = vshrl.u32 %v3226, 7
        %v3228 = vsub.s32 1, %v3227
        %v3229 = vrot.slane %v3220, %v3228
        %v3230 = vlaneseq
        %v3231 = vshrl.u32 %v3230, 7
        %v3232 = vsub.s32 2, %v3231
        %v3233 = vrot.slane %v3220, %v3232
        %v3237 = vadd.f32 %v3214, %v3225
        %v3238 = vadd.f32 %v3215, %v3229
        %v3239 = vadd.f32 %v3216, %v3233
        %v3240 = vadd.f32 %v3217, %v3225
        %v3241 = vadd.f32 %v3218, %v3229
        %v3242 = vadd.f32 %v3219, %v3233
        %v3243 = vmax.f32 %v3237, 0.0
        %v3244 = vmax.f32 %v3238, 0.0
        %v3245 = vmax.f32 %v3239, 0.0
        %v3246 = vmax.f32 %v3240, 0.0
        %v3247 = vmax.f32 %v3241, 0.0
        %v3248 = vmax.f32 %v3242, 0.0
        %3249 = vst [vmem:[%s279] sm:$0xff] %v3243
        %3250 = vst [vmem:[%s279 + $0x8] sm:$0xff] %v3244
        %3251 = vst.msk [vmem:[%s279 + $0x10] sm:$0xff] %vm1109, %v3245
        %3252 = vst [vmem:[%s279 + $0x18] sm:$0x1] %v3246
        %3253 = vst [vmem:[%s279 + $0x20] sm:$0x1] %v3247
        %vm3254 = vcmask 516096
        %3255 = vst.msk [vmem:[%s279 + $0x28] sm:$0x1] %vm3254, %v3248
        %p3256 = scmp.lt.s32.totalorder %s19, 1
        %s3257 = scalar_select %p3256, %s19, 1
        %s3258 = smul.addr %s3257, 6
        %s3259 = smul.addr %s3258, 8
        %s3260 = scalar_lea.vmem %s5, %s3259
        // Predicated region
        $region57: #{simple_cnn_forward.2} parent=39 // pred_check
          %p3261 = pneg %p147
        $region58: #{simple_cnn_forward.2} parent=39 // pred_check_branch
          %3263 = sbr.rel (%p3261) target = $region60
        $region59: #{simple_cnn_forward.2} parent=39 // pred_region
          _
        $region60: #{simple_cnn_forward.2} parent=39 // pred_fallthru
          _
      $region40: #{simple_cnn_forward.2} parent=5 // pred_fallthru
        _
      %p3264 = scmp.le.s32.totalorder 2, %s14
      // Predicated region
      $region61: #{simple_cnn_forward.2} parent=5 // pred_check
        %p3265 = pneg %p3264
      $region62: #{simple_cnn_forward.2} parent=5 // pred_check_branch
        %3267 = sbr.rel (%p3265) target = $region64
      $region63: #{simple_cnn_forward.2} parent=5 // pred_region
        %s3268 = ssub.s32 %s14, 2
        // Predicated region
        $region65: #{simple_cnn_forward.2} parent=63 // pred_check
          %p3269 = pneg %p153
        $region66: #{simple_cnn_forward.2} parent=63 // pred_check_branch
          %3271 = sbr.rel (%p3269) target = $region68
        $region67: #{simple_cnn_forward.2} parent=63 // pred_region
          %p3272 = scmp.lt.s32.totalorder %s20, 1
          %s3273 = scalar_select %p3272, %s20, 1
          %s3274 = smul.addr %s3273, 6
          %s3275 = smul.addr %s3274, 8
          %s3276 = scalar_lea.vmem %s5, %s3275
        $region68: #{simple_cnn_forward.2} parent=63 // pred_fallthru
          _
      $region64: #{simple_cnn_forward.2} parent=5 // pred_fallthru
        _
    $region6: #{simple_cnn_forward.2} parent=1 // loop_footer
      %s18 = sadd.s32 1, %s14
    $region7: #{simple_cnn_forward.2} parent=1 // loop_footer_branch
      %13 = sbr.rel target = $region3
    $region8: #{simple_cnn_forward.2} parent=1 // loop_exit
      _
    %3277 = vsyncpa [#allocation3], 1
    %s3278 = scalar_lea.sflag [#allocation3], 1
    %3279 = vsyncpa %s3278, 1
    %3280 = vsyncpa [#allocation5], 1
    %3281 = vsyncpa [#allocation8], 1

</llo_original>
